<compile_context>
chip_gen: v7x
topology: tpu7x:2x2x1
jax: 0.10.0
libtpu: 0.0.40
codegen_flags: <defaults>
</compile_context>

<pallas_src>
import functools

import jax
import jax.numpy as jnp
from jax import lax
from jax.experimental import pallas as pl
from jax.experimental.pallas import tpu as pltpu

_INV_SQRT2 = 0.7071067811865476
_NORM_EPS_SQ = 1e-24  # F.normalize eps=1e-12, squared (rsqrt formulation)


def _mm(a, w):
  # (M, K) x (K, N) canonical MXU contraction; bf16 operands, f32 accumulation.
  return lax.dot_general(a.astype(jnp.bfloat16), w,
                         (((1,), (0,)), ((), ())),
                         preferred_element_type=jnp.float32)


def _l2norm_rows(x):
  ss = jnp.sum(x * x, axis=1, keepdims=True)
  return x * lax.rsqrt(jnp.maximum(ss, _NORM_EPS_SQ))


# ---------------------------------------------------------------------------
# Single fused kernel: class_weights accumulation + encoder + Projector +
# normalized cosine logits.
# ---------------------------------------------------------------------------

def _trex_kernel(labels_ref, feats_ref, x_ref, wenc_ref, w1_ref, b1_ref,
                 w2_ref, b2_ref, w3_ref, b3_ref, wb_ref, o_ref, acc_ref,
                 *, inv_tau):
  i = pl.program_id(0)

  @pl.when(i == 0)
  def _():
    acc_ref[...] = jnp.zeros_like(acc_ref)

  # ---- Memory.class_weights: per-class scatter-add over this memory chunk.
  n_classes = acc_ref.shape[0]
  lab = labels_ref[...]                                        # (1, chunk) i32
  classes = lax.broadcasted_iota(jnp.int32, (n_classes, 1), 0)  # (NC, 1)
  onehot_t = (lab == classes).astype(jnp.bfloat16)             # (NC, chunk)
  feats_bf = feats_ref[...].astype(jnp.bfloat16)               # in-kernel cast
  # index_add_ over labels == onehot^T @ feats  (canonical (M,K)x(K,N)).
  acc_ref[...] += lax.dot_general(onehot_t, feats_bf,
                                  (((1,), (0,)), ((), ())),
                                  preferred_element_type=jnp.float32)

  # ---- Final step: normalize class weights and run the forward chain.
  @pl.when(i == pl.num_programs(0) - 1)
  def _():
    w_cls = _l2norm_rows(acc_ref[...]).astype(jnp.bfloat16)    # (NC, D)

    # Stand-in encoder (see TODO(synk)): single Linear producing ft_dim feats.
    h = _mm(x_ref[...], wenc_ref[...])                         # (B, FT) f32

    # Projector: input L2 norm (F.normalize, dim=1, eps=1e-12).
    h = _l2norm_rows(h)

    # 3x MLPLayer: Linear + BatchNorm1d (training-mode batch stats; affine at
    # init gamma=1, beta=0 -> matches an untrained module) + exact (erf) GELU.
    def mlp(h, w_ref, b_ref):
      z = _mm(h, w_ref[...]) + b_ref[...]
      mean = jnp.mean(z, axis=0, keepdims=True)
      d = z - mean
      var = jnp.mean(d * d, axis=0, keepdims=True)             # biased variance
      zn = d * lax.rsqrt(var + 1e-5)
      return 0.5 * zn * (1.0 + lax.erf(zn * _INV_SQRT2))

    h = mlp(h, w1_ref, b1_ref)
    h = mlp(h, w2_ref, b2_ref)
    h = mlp(h, w3_ref, b3_ref)

    # Bottleneck Linear (no bias) -> embedding.
    h = _mm(h, wb_ref[...])                                    # (B, D)

    # logits = l2norm(h) @ w_cls.T / tau  (single small A @ W^T contraction).
    hn = _l2norm_rows(h).astype(jnp.bfloat16)
    o_ref[...] = lax.dot_general(hn, w_cls, (((1,), (1,)), ((), ())),
                                 preferred_element_type=jnp.float32) * inv_tau


# ---------------------------------------------------------------------------
# Wrapper
# ---------------------------------------------------------------------------

def _pick_chunk(mem_size, d, budget_bytes=8 << 20):
  """Largest lane-friendly chunk whose double-buffered f32 feats tile fits."""
  max_chunk = budget_bytes // (2 * d * 4)
  if mem_size <= max_chunk:
    return mem_size
  c = max((max_chunk // 128) * 128, 128)
  while c > 128 and mem_size % c:
    c -= 128
  return c


def trex_forward(image, params, mem_feats, mem_labels, n_classes, clf_tau):
  B = image.shape[0]
  x = image.reshape(B, -1).astype(jnp.bfloat16)   # flatten NCHW, bf16 for MXU
  chw = x.shape[1]
  mem_size, d = mem_feats.shape

  chunk = _pick_chunk(mem_size, d)
  assert mem_size % chunk == 0, (mem_size, chunk)
  n_chunks = mem_size // chunk
  labels2d = mem_labels.reshape(1, mem_size).astype(jnp.int32)

  ft = params["w_enc_t"].shape[1]
  hid = params["w1_t"].shape[1]
  bot = params["w_bottleneck_t"].shape[1]
  res = lambda shape: pl.BlockSpec(shape, lambda i: tuple(0 for _ in shape))

  grid_spec = pltpu.PrefetchScalarGridSpec(
      num_scalar_prefetch=0,
      grid=(n_chunks,),
      in_specs=[
          pl.BlockSpec((1, chunk), lambda i: (0, i)),   # labels, per-chunk
          pl.BlockSpec((chunk, d), lambda i: (i, 0)),   # feats, pipelined (f32)
          res((B, chw)),                                # image (resident)
          res((chw, ft)),                               # w_enc (K, N)
          res((ft, hid)), res((1, hid)),                # w1, b1
          res((hid, hid)), res((1, hid)),               # w2, b2
          res((hid, hid)), res((1, hid)),               # w3, b3
          res((hid, bot)),                              # w_bottleneck
      ],
      out_specs=pl.BlockSpec((B, n_classes), lambda i: (0, 0)),
      scratch_shapes=[pltpu.VMEM((n_classes, d), jnp.float32)],
  )

  return pl.pallas_call(
      functools.partial(_trex_kernel, inv_tau=1.0 / clf_tau),
      out_shape=jax.ShapeDtypeStruct((B, n_classes), jnp.float32),
      grid_spec=grid_spec,
      compiler_params=pltpu.CompilerParams(
          dimension_semantics=("arbitrary",)),
  )(labels2d, mem_feats, x,
    params["w_enc_t"],
    params["w1_t"], params["b1"],
    params["w2_t"], params["b2"],
    params["w3_t"], params["b3"],
    params["w_bottleneck_t"])


# ---------------------------------------------------------------------------
# Deterministic parameter init + staging + run
# ---------------------------------------------------------------------------

def trunc_normal(key, shape, std=0.02):
  return std * jax.random.truncated_normal(key, -2.0, 2.0, shape, jnp.float32)


def stage_params(raw):
  """Host-side (outside jit) staging: pre-transpose PyTorch (out, in) Linear
  weights to (in, out) and cast to bf16; biases to (1, N) f32."""
  p = {}
  for name in ("w_enc", "w1", "w2", "w3", "w_bottleneck"):
    p[name + "_t"] = jnp.asarray(raw[name].T, jnp.bfloat16)
  for name in ("b1", "b2", "b3"):
    p[name] = raw[name].reshape(1, -1).astype(jnp.float32)
  return p


if __name__ == "__main__":
  # Small, module-consistent shapes (batch >= 16 for bf16 sublane packing).
  B, C, H, W = 16, 3, 16, 16         # image: (16, 3, 16, 16)
  FT_DIM = 128                       # stand-in for resnet ft_dim
  HIDDEN = 256                       # proj_hidden_dim (3 hidden layers)
  BOTTLENECK = 128                   # proj_bottleneck_dim
  N_CLASSES = 256
  MEM_SIZE = 1024
  CLF_TAU = 0.1

  root = jax.random.PRNGKey(0)
  keys = jax.random.split(root, 10)

  raw_params = {
      "w_enc": 0.02 * jax.random.normal(keys[0], (FT_DIM, C * H * W),
                                        jnp.float32),
      "w1": trunc_normal(keys[1], (HIDDEN, FT_DIM)),
      "b1": jnp.zeros((HIDDEN,), jnp.float32),
      "w2": trunc_normal(keys[2], (HIDDEN, HIDDEN)),
      "b2": jnp.zeros((HIDDEN,), jnp.float32),
      "w3": trunc_normal(keys[3], (HIDDEN, HIDDEN)),
      "b3": jnp.zeros((HIDDEN,), jnp.float32),
      "w_bottleneck": trunc_normal(keys[4], (BOTTLENECK, HIDDEN)),
  }
  params = stage_params(raw_params)

  mem_feats = jax.random.normal(keys[5], (MEM_SIZE, BOTTLENECK), jnp.float32)
  mem_labels = jax.random.randint(keys[6], (MEM_SIZE,), 0, N_CLASSES,
                                  dtype=jnp.int32)

  image = jax.random.normal(keys[7], (B, C, H, W), jnp.float32)

  fwd = jax.jit(trex_forward, static_argnums=(4, 5))
  logits = fwd(image, params, mem_feats, mem_labels, N_CLASSES, CLF_TAU)
  jax.block_until_ready(logits)
  assert logits.shape == (B, N_CLASSES)
  print("KERNEL_OK")
</pallas_src>

<mosaic_0001>
module attributes {stable_mosaic.version = 11 : i64} {
  func.func @_trex_kernel(%arg0: i32, %arg1: memref<1x1024xi32, #tpu.memory_space<vmem>>, %arg2: memref<1024x128xf32, #tpu.memory_space<vmem>>, %arg3: memref<16x768xbf16, #tpu.memory_space<vmem>>, %arg4: memref<768x128xbf16, #tpu.memory_space<vmem>>, %arg5: memref<128x256xbf16, #tpu.memory_space<vmem>>, %arg6: memref<1x256xf32, #tpu.memory_space<vmem>>, %arg7: memref<256x256xbf16, #tpu.memory_space<vmem>>, %arg8: memref<1x256xf32, #tpu.memory_space<vmem>>, %arg9: memref<256x256xbf16, #tpu.memory_space<vmem>>, %arg10: memref<1x256xf32, #tpu.memory_space<vmem>>, %arg11: memref<256x128xbf16, #tpu.memory_space<vmem>>, %arg12: memref<16x256xf32, #tpu.memory_space<vmem>>, %arg13: memref<256x128xf32, #tpu.memory_space<vmem>>) attributes {dimension_semantics = [#tpu.dimension_semantics<arbitrary>], iteration_bounds = array<i64: 1>, scalar_prefetch = 0 : i64, scratch_operands = 1 : i64, tpu.core_type = #tpu.core_type<tc>, window_params = [{transform_indices = @transform_0, window_bounds = array<i64: 1, 1024>}, {transform_indices = @transform_1, window_bounds = array<i64: 1024, 128>}, {pipeline_mode = #tpu.pipeline_mode<synchronous>, transform_indices = @transform_2, window_bounds = array<i64: 16, 768>}, {pipeline_mode = #tpu.pipeline_mode<synchronous>, transform_indices = @transform_3, window_bounds = array<i64: 768, 128>}, {pipeline_mode = #tpu.pipeline_mode<synchronous>, transform_indices = @transform_4, window_bounds = array<i64: 128, 256>}, {pipeline_mode = #tpu.pipeline_mode<synchronous>, transform_indices = @transform_5, window_bounds = array<i64: 1, 256>}, {pipeline_mode = #tpu.pipeline_mode<synchronous>, transform_indices = @transform_6, window_bounds = array<i64: 256, 256>}, {pipeline_mode = #tpu.pipeline_mode<synchronous>, transform_indices = @transform_7, window_bounds = array<i64: 1, 256>}, {pipeline_mode = #tpu.pipeline_mode<synchronous>, transform_indices = @transform_8, window_bounds = array<i64: 256, 256>}, {pipeline_mode = #tpu.pipeline_mode<synchronous>, transform_indices = @transform_9, window_bounds = array<i64: 1, 256>}, {pipeline_mode = #tpu.pipeline_mode<synchronous>, transform_indices = @transform_10, window_bounds = array<i64: 256, 128>}, {pipeline_mode = #tpu.pipeline_mode<synchronous>, transform_indices = @transform_11, window_bounds = array<i64: 16, 256>}]} {
    %c0_i32 = arith.constant 0 : i32
    %0 = arith.cmpi eq, %arg0, %c0_i32 : i32
    %1 = arith.extui %0 : i1 to i32
    %c0_i32_0 = arith.constant 0 : i32
    %2 = arith.cmpi ne, %1, %c0_i32_0 : i32
    scf.if %2 {
      %cst_10 = arith.constant 0.000000e+00 : f32
      %20 = vector.broadcast %cst_10 : f32 to vector<256x128xf32>
      %c0_11 = arith.constant 0 : index
      %c0_12 = arith.constant 0 : index
      %21 = vector.load %arg13[%c0_11, %c0_12] : memref<256x128xf32, #tpu.memory_space<vmem>>, vector<256x128xf32>
      tpu.vector_store %arg13[%c0_11, %c0_12], %20 {strides = array<i32>} : memref<256x128xf32, #tpu.memory_space<vmem>>, vector<256x128xf32>,
    } else {
    }
    %c0 = arith.constant 0 : index
    %c0_1 = arith.constant 0 : index
    %3 = vector.load %arg1[%c0, %c0_1] : memref<1x1024xi32, #tpu.memory_space<vmem>>, vector<1x1024xi32>
    %4 = tpu.iota {dimensions = array<i32: 0>} : vector<256x1xi32>
    %5 = vector.broadcast %3 : vector<1x1024xi32> to vector<256x1024xi32>
    %6 = vector.broadcast %4 : vector<256x1xi32> to vector<256x1024xi32>
    %7 = arith.cmpi eq, %5, %6 : vector<256x1024xi32>
    %8 = arith.extui %7 : vector<256x1024xi1> to vector<256x1024xi32>
    %9 = arith.sitofp %8 : vector<256x1024xi32> to vector<256x1024xf32>
    %10 = arith.truncf %9 : vector<256x1024xf32> to vector<256x1024xbf16>
    %c0_2 = arith.constant 0 : index
    %c0_3 = arith.constant 0 : index
    %11 = vector.load %arg2[%c0_2, %c0_3] : memref<1024x128xf32, #tpu.memory_space<vmem>>, vector<1024x128xf32>
    %12 = arith.truncf %11 : vector<1024x128xf32> to vector<1024x128xbf16>
    %c0_4 = arith.constant 0 : index
    %c0_5 = arith.constant 0 : index
    %13 = vector.load %arg13[%c0_4, %c0_5] : memref<256x128xf32, #tpu.memory_space<vmem>>, vector<256x128xf32>
    %cst = arith.constant dense<0.000000e+00> : vector<256x128xf32>
    %14 = tpu.matmul %10, %12, %cst {dimension_numbers = #tpu.dot_dimension_numbers<[1], [0], [0], [1], [0, 0, 1, 1], [], []>} : vector<256x1024xbf16>, vector<1024x128xbf16>, vector<256x128xf32> -> vector<256x128xf32>
    %15 = arith.addf %13, %14 : vector<256x128xf32>
    %c0_6 = arith.constant 0 : index
    %c0_7 = arith.constant 0 : index
    %16 = vector.load %arg13[%c0_6, %c0_7] : memref<256x128xf32, #tpu.memory_space<vmem>>, vector<256x128xf32>
    tpu.vector_store %arg13[%c0_6, %c0_7], %15 {strides = array<i32>} : memref<256x128xf32, #tpu.memory_space<vmem>>, vector<256x128xf32>,
    %c0_i32_8 = arith.constant 0 : i32
    %17 = arith.cmpi eq, %arg0, %c0_i32_8 : i32
    %18 = arith.extui %17 : i1 to i32
    %c0_i32_9 = arith.constant 0 : i32
    %19 = arith.cmpi ne, %18, %c0_i32_9 : i32
    scf.if %19 {
      %c0_10 = arith.constant 0 : index
      %c0_11 = arith.constant 0 : index
      %20 = vector.load %arg13[%c0_10, %c0_11] : memref<256x128xf32, #tpu.memory_space<vmem>>, vector<256x128xf32>
      %21 = arith.mulf %20, %20 : vector<256x128xf32>
      %cst_12 = arith.constant dense<0.000000e+00> : vector<256xf32>
      %22 = vector.multi_reduction <add>, %21, %cst_12 [1] : vector<256x128xf32> to vector<256xf32>
      %23 = vector.shape_cast %22 : vector<256xf32> to vector<256x1xf32>
      %cst_13 = arith.constant 1.000000e-24 : f32
      %24 = vector.broadcast %cst_13 : f32 to vector<256x1xf32>
      %25 = arith.maximumf %23, %24 : vector<256x1xf32>
      %26 = math.rsqrt %25 : vector<256x1xf32>
      %27 = vector.broadcast %26 : vector<256x1xf32> to vector<256x128xf32>
      %28 = arith.mulf %20, %27 : vector<256x128xf32>
      %29 = arith.truncf %28 : vector<256x128xf32> to vector<256x128xbf16>
      %c0_14 = arith.constant 0 : index
      %c0_15 = arith.constant 0 : index
      %30 = vector.load %arg3[%c0_14, %c0_15] : memref<16x768xbf16, #tpu.memory_space<vmem>>, vector<16x768xbf16>
      %c0_16 = arith.constant 0 : index
      %c0_17 = arith.constant 0 : index
      %31 = vector.load %arg4[%c0_16, %c0_17] : memref<768x128xbf16, #tpu.memory_space<vmem>>, vector<768x128xbf16>
      %cst_18 = arith.constant dense<0.000000e+00> : vector<16x128xf32>
      %32 = tpu.matmul %30, %31, %cst_18 {dimension_numbers = #tpu.dot_dimension_numbers<[1], [0], [0], [1], [0, 0, 1, 1], [], []>} : vector<16x768xbf16>, vector<768x128xbf16>, vector<16x128xf32> -> vector<16x128xf32>
      %33 = arith.mulf %32, %32 : vector<16x128xf32>
      %cst_19 = arith.constant dense<0.000000e+00> : vector<16xf32>
      %34 = vector.multi_reduction <add>, %33, %cst_19 [1] : vector<16x128xf32> to vector<16xf32>
      %35 = vector.shape_cast %34 : vector<16xf32> to vector<16x1xf32>
      %cst_20 = arith.constant 1.000000e-24 : f32
      %36 = vector.broadcast %cst_20 : f32 to vector<16x1xf32>
      %37 = arith.maximumf %35, %36 : vector<16x1xf32>
      %38 = math.rsqrt %37 : vector<16x1xf32>
      %39 = vector.broadcast %38 : vector<16x1xf32> to vector<16x128xf32>
      %40 = arith.mulf %32, %39 : vector<16x128xf32>
      %c0_21 = arith.constant 0 : index
      %c0_22 = arith.constant 0 : index
      %41 = vector.load %arg5[%c0_21, %c0_22] : memref<128x256xbf16, #tpu.memory_space<vmem>>, vector<128x256xbf16>
      %42 = arith.truncf %40 : vector<16x128xf32> to vector<16x128xbf16>
      %cst_23 = arith.constant dense<0.000000e+00> : vector<16x256xf32>
      %43 = tpu.matmul %42, %41, %cst_23 {dimension_numbers = #tpu.dot_dimension_numbers<[1], [0], [0], [1], [0, 0, 1, 1], [], []>} : vector<16x128xbf16>, vector<128x256xbf16>, vector<16x256xf32> -> vector<16x256xf32>
      %c0_24 = arith.constant 0 : index
      %c0_25 = arith.constant 0 : index
      %44 = vector.load %arg6[%c0_24, %c0_25] : memref<1x256xf32, #tpu.memory_space<vmem>>, vector<1x256xf32>
      %45 = vector.broadcast %44 : vector<1x256xf32> to vector<16x256xf32>
      %46 = arith.addf %43, %45 : vector<16x256xf32>
      %cst_26 = arith.constant dense<0.000000e+00> : vector<256xf32>
      %47 = vector.multi_reduction <add>, %46, %cst_26 [0] : vector<16x256xf32> to vector<256xf32>
      %48 = vector.shape_cast %47 : vector<256xf32> to vector<1x256xf32>
      %cst_27 = arith.constant 1.600000e+01 : f32
      %49 = vector.broadcast %cst_27 : f32 to vector<1x256xf32>
      %50 = arith.divf %48, %49 : vector<1x256xf32>
      %51 = vector.broadcast %50 : vector<1x256xf32> to vector<16x256xf32>
      %52 = arith.subf %46, %51 : vector<16x256xf32>
      %53 = arith.mulf %52, %52 : vector<16x256xf32>
      %cst_28 = arith.constant dense<0.000000e+00> : vector<256xf32>
      %54 = vector.multi_reduction <add>, %53, %cst_28 [0] : vector<16x256xf32> to vector<256xf32>
      %55 = vector.shape_cast %54 : vector<256xf32> to vector<1x256xf32>
      %cst_29 = arith.constant 1.600000e+01 : f32
      %56 = vector.broadcast %cst_29 : f32 to vector<1x256xf32>
      %57 = arith.divf %55, %56 : vector<1x256xf32>
      %cst_30 = arith.constant 9.99999974E-6 : f32
      %58 = vector.broadcast %cst_30 : f32 to vector<1x256xf32>
      %59 = arith.addf %57, %58 : vector<1x256xf32>
      %60 = math.rsqrt %59 : vector<1x256xf32>
      %61 = vector.broadcast %60 : vector<1x256xf32> to vector<16x256xf32>
      %62 = arith.mulf %52, %61 : vector<16x256xf32>
      %cst_31 = arith.constant 5.000000e-01 : f32
      %63 = vector.broadcast %cst_31 : f32 to vector<16x256xf32>
      %64 = arith.mulf %63, %62 : vector<16x256xf32>
      %cst_32 = arith.constant 0.707106769 : f32
      %65 = vector.broadcast %cst_32 : f32 to vector<16x256xf32>
      %66 = arith.mulf %62, %65 : vector<16x256xf32>
      %67 = math.erf %66 : vector<16x256xf32>
      %cst_33 = arith.constant 1.000000e+00 : f32
      %68 = vector.broadcast %cst_33 : f32 to vector<16x256xf32>
      %69 = arith.addf %68, %67 : vector<16x256xf32>
      %70 = arith.mulf %64, %69 : vector<16x256xf32>
      %c0_34 = arith.constant 0 : index
      %c0_35 = arith.constant 0 : index
      %71 = vector.load %arg7[%c0_34, %c0_35] : memref<256x256xbf16, #tpu.memory_space<vmem>>, vector<256x256xbf16>
      %72 = arith.truncf %70 : vector<16x256xf32> to vector<16x256xbf16>
      %cst_36 = arith.constant dense<0.000000e+00> : vector<16x256xf32>
      %73 = tpu.matmul %72, %71, %cst_36 {dimension_numbers = #tpu.dot_dimension_numbers<[1], [0], [0], [1], [0, 0, 1, 1], [], []>} : vector<16x256xbf16>, vector<256x256xbf16>, vector<16x256xf32> -> vector<16x256xf32>
      %c0_37 = arith.constant 0 : index
      %c0_38 = arith.constant 0 : index
      %74 = vector.load %arg8[%c0_37, %c0_38] : memref<1x256xf32, #tpu.memory_space<vmem>>, vector<1x256xf32>
      %75 = vector.broadcast %74 : vector<1x256xf32> to vector<16x256xf32>
      %76 = arith.addf %73, %75 : vector<16x256xf32>
      %cst_39 = arith.constant dense<0.000000e+00> : vector<256xf32>
      %77 = vector.multi_reduction <add>, %76, %cst_39 [0] : vector<16x256xf32> to vector<256xf32>
      %78 = vector.shape_cast %77 : vector<256xf32> to vector<1x256xf32>
      %cst_40 = arith.constant 1.600000e+01 : f32
      %79 = vector.broadcast %cst_40 : f32 to vector<1x256xf32>
      %80 = arith.divf %78, %79 : vector<1x256xf32>
      %81 = vector.broadcast %80 : vector<1x256xf32> to vector<16x256xf32>
      %82 = arith.subf %76, %81 : vector<16x256xf32>
      %83 = arith.mulf %82, %82 : vector<16x256xf32>
      %cst_41 = arith.constant dense<0.000000e+00> : vector<256xf32>
      %84 = vector.multi_reduction <add>, %83, %cst_41 [0] : vector<16x256xf32> to vector<256xf32>
      %85 = vector.shape_cast %84 : vector<256xf32> to vector<1x256xf32>
      %cst_42 = arith.constant 1.600000e+01 : f32
      %86 = vector.broadcast %cst_42 : f32 to vector<1x256xf32>
      %87 = arith.divf %85, %86 : vector<1x256xf32>
      %cst_43 = arith.constant 9.99999974E-6 : f32
      %88 = vector.broadcast %cst_43 : f32 to vector<1x256xf32>
      %89 = arith.addf %87, %88 : vector<1x256xf32>
      %90 = math.rsqrt %89 : vector<1x256xf32>
      %91 = vector.broadcast %90 : vector<1x256xf32> to vector<16x256xf32>
      %92 = arith.mulf %82, %91 : vector<16x256xf32>
      %cst_44 = arith.constant 5.000000e-01 : f32
      %93 = vector.broadcast %cst_44 : f32 to vector<16x256xf32>
      %94 = arith.mulf %93, %92 : vector<16x256xf32>
      %cst_45 = arith.constant 0.707106769 : f32
      %95 = vector.broadcast %cst_45 : f32 to vector<16x256xf32>
      %96 = arith.mulf %92, %95 : vector<16x256xf32>
      %97 = math.erf %96 : vector<16x256xf32>
      %cst_46 = arith.constant 1.000000e+00 : f32
      %98 = vector.broadcast %cst_46 : f32 to vector<16x256xf32>
      %99 = arith.addf %98, %97 : vector<16x256xf32>
      %100 = arith.mulf %94, %99 : vector<16x256xf32>
      %c0_47 = arith.constant 0 : index
      %c0_48 = arith.constant 0 : index
      %101 = vector.load %arg9[%c0_47, %c0_48] : memref<256x256xbf16, #tpu.memory_space<vmem>>, vector<256x256xbf16>
      %102 = arith.truncf %100 : vector<16x256xf32> to vector<16x256xbf16>
      %cst_49 = arith.constant dense<0.000000e+00> : vector<16x256xf32>
      %103 = tpu.matmul %102, %101, %cst_49 {dimension_numbers = #tpu.dot_dimension_numbers<[1], [0], [0], [1], [0, 0, 1, 1], [], []>} : vector<16x256xbf16>, vector<256x256xbf16>, vector<16x256xf32> -> vector<16x256xf32>
      %c0_50 = arith.constant 0 : index
      %c0_51 = arith.constant 0 : index
      %104 = vector.load %arg10[%c0_50, %c0_51] : memref<1x256xf32, #tpu.memory_space<vmem>>, vector<1x256xf32>
      %105 = vector.broadcast %104 : vector<1x256xf32> to vector<16x256xf32>
      %106 = arith.addf %103, %105 : vector<16x256xf32>
      %cst_52 = arith.constant dense<0.000000e+00> : vector<256xf32>
      %107 = vector.multi_reduction <add>, %106, %cst_52 [0] : vector<16x256xf32> to vector<256xf32>
      %108 = vector.shape_cast %107 : vector<256xf32> to vector<1x256xf32>
      %cst_53 = arith.constant 1.600000e+01 : f32
      %109 = vector.broadcast %cst_53 : f32 to vector<1x256xf32>
      %110 = arith.divf %108, %109 : vector<1x256xf32>
      %111 = vector.broadcast %110 : vector<1x256xf32> to vector<16x256xf32>
      %112 = arith.subf %106, %111 : vector<16x256xf32>
      %113 = arith.mulf %112, %112 : vector<16x256xf32>
      %cst_54 = arith.constant dense<0.000000e+00> : vector<256xf32>
      %114 = vector.multi_reduction <add>, %113, %cst_54 [0] : vector<16x256xf32> to vector<256xf32>
      %115 = vector.shape_cast %114 : vector<256xf32> to vector<1x256xf32>
      %cst_55 = arith.constant 1.600000e+01 : f32
      %116 = vector.broadcast %cst_55 : f32 to vector<1x256xf32>
      %117 = arith.divf %115, %116 : vector<1x256xf32>
      %cst_56 = arith.constant 9.99999974E-6 : f32
      %118 = vector.broadcast %cst_56 : f32 to vector<1x256xf32>
      %119 = arith.addf %117, %118 : vector<1x256xf32>
      %120 = math.rsqrt %119 : vector<1x256xf32>
      %121 = vector.broadcast %120 : vector<1x256xf32> to vector<16x256xf32>
      %122 = arith.mulf %112, %121 : vector<16x256xf32>
      %cst_57 = arith.constant 5.000000e-01 : f32
      %123 = vector.broadcast %cst_57 : f32 to vector<16x256xf32>
      %124 = arith.mulf %123, %122 : vector<16x256xf32>
      %cst_58 = arith.constant 0.707106769 : f32
      %125 = vector.broadcast %cst_58 : f32 to vector<16x256xf32>
      %126 = arith.mulf %122, %125 : vector<16x256xf32>
      %127 = math.erf %126 : vector<16x256xf32>
      %cst_59 = arith.constant 1.000000e+00 : f32
      %128 = vector.broadcast %cst_59 : f32 to vector<16x256xf32>
      %129 = arith.addf %128, %127 : vector<16x256xf32>
      %130 = arith.mulf %124, %129 : vector<16x256xf32>
      %c0_60 = arith.constant 0 : index
      %c0_61 = arith.constant 0 : index
      %131 = vector.load %arg11[%c0_60, %c0_61] : memref<256x128xbf16, #tpu.memory_space<vmem>>, vector<256x128xbf16>
      %132 = arith.truncf %130 : vector<16x256xf32> to vector<16x256xbf16>
      %cst_62 = arith.constant dense<0.000000e+00> : vector<16x128xf32>
      %133 = tpu.matmul %132, %131, %cst_62 {dimension_numbers = #tpu.dot_dimension_numbers<[1], [0], [0], [1], [0, 0, 1, 1], [], []>} : vector<16x256xbf16>, vector<256x128xbf16>, vector<16x128xf32> -> vector<16x128xf32>
      %134 = arith.mulf %133, %133 : vector<16x128xf32>
      %cst_63 = arith.constant dense<0.000000e+00> : vector<16xf32>
      %135 = vector.multi_reduction <add>, %134, %cst_63 [1] : vector<16x128xf32> to vector<16xf32>
      %136 = vector.shape_cast %135 : vector<16xf32> to vector<16x1xf32>
      %cst_64 = arith.constant 1.000000e-24 : f32
      %137 = vector.broadcast %cst_64 : f32 to vector<16x1xf32>
      %138 = arith.maximumf %136, %137 : vector<16x1xf32>
      %139 = math.rsqrt %138 : vector<16x1xf32>
      %140 = vector.broadcast %139 : vector<16x1xf32> to vector<16x128xf32>
      %141 = arith.mulf %133, %140 : vector<16x128xf32>
      %142 = arith.truncf %141 : vector<16x128xf32> to vector<16x128xbf16>
      %cst_65 = arith.constant dense<0.000000e+00> : vector<16x256xf32>
      %143 = tpu.matmul %142, %29, %cst_65 {dimension_numbers = #tpu.dot_dimension_numbers<[1], [1], [0], [0], [0, 0, 1, 0], [], []>} : vector<16x128xbf16>, vector<256x128xbf16>, vector<16x256xf32> -> vector<16x256xf32>
      %cst_66 = arith.constant 1.000000e+01 : f32
      %144 = vector.broadcast %cst_66 : f32 to vector<16x256xf32>
      %145 = arith.mulf %143, %144 : vector<16x256xf32>
      %c0_67 = arith.constant 0 : index
      %c0_68 = arith.constant 0 : index
      %146 = vector.load %arg12[%c0_67, %c0_68] : memref<16x256xf32, #tpu.memory_space<vmem>>, vector<16x256xf32>
      tpu.vector_store %arg12[%c0_67, %c0_68], %145 {strides = array<i32>} : memref<16x256xf32, #tpu.memory_space<vmem>>, vector<16x256xf32>,
    } else {
    }
    return
  }
  func.func @transform_0(%arg0: i32) -> (i32, i32) {
    %c0_i32 = arith.constant 0 : i32
    %c0_i32_0 = arith.constant 0 : i32
    return %c0_i32, %arg0 : i32, i32
  }
  func.func @transform_1(%arg0: i32) -> (i32, i32) {
    %c0_i32 = arith.constant 0 : i32
    %c0_i32_0 = arith.constant 0 : i32
    return %arg0, %c0_i32 : i32, i32
  }
  func.func @transform_2(%arg0: i32) -> (i32, i32) {
    %c0_i32 = arith.constant 0 : i32
    %c0_i32_0 = arith.constant 0 : i32
    %c0_i32_1 = arith.constant 0 : i32
    return %c0_i32, %c0_i32_0 : i32, i32
  }
  func.func @transform_3(%arg0: i32) -> (i32, i32) {
    %c0_i32 = arith.constant 0 : i32
    %c0_i32_0 = arith.constant 0 : i32
    %c0_i32_1 = arith.constant 0 : i32
    return %c0_i32, %c0_i32_0 : i32, i32
  }
  func.func @transform_4(%arg0: i32) -> (i32, i32) {
    %c0_i32 = arith.constant 0 : i32
    %c0_i32_0 = arith.constant 0 : i32
    %c0_i32_1 = arith.constant 0 : i32
    return %c0_i32, %c0_i32_0 : i32, i32
  }
  func.func @transform_5(%arg0: i32) -> (i32, i32) {
    %c0_i32 = arith.constant 0 : i32
    %c0_i32_0 = arith.constant 0 : i32
    %c0_i32_1 = arith.constant 0 : i32
    return %c0_i32, %c0_i32_0 : i32, i32
  }
  func.func @transform_6(%arg0: i32) -> (i32, i32) {
    %c0_i32 = arith.constant 0 : i32
    %c0_i32_0 = arith.constant 0 : i32
    %c0_i32_1 = arith.constant 0 : i32
    return %c0_i32, %c0_i32_0 : i32, i32
  }
  func.func @transform_7(%arg0: i32) -> (i32, i32) {
    %c0_i32 = arith.constant 0 : i32
    %c0_i32_0 = arith.constant 0 : i32
    %c0_i32_1 = arith.constant 0 : i32
    return %c0_i32, %c0_i32_0 : i32, i32
  }
  func.func @transform_8(%arg0: i32) -> (i32, i32) {
    %c0_i32 = arith.constant 0 : i32
    %c0_i32_0 = arith.constant 0 : i32
    %c0_i32_1 = arith.constant 0 : i32
    return %c0_i32, %c0_i32_0 : i32, i32
  }
  func.func @transform_9(%arg0: i32) -> (i32, i32) {
    %c0_i32 = arith.constant 0 : i32
    %c0_i32_0 = arith.constant 0 : i32
    %c0_i32_1 = arith.constant 0 : i32
    return %c0_i32, %c0_i32_0 : i32, i32
  }
  func.func @transform_10(%arg0: i32) -> (i32, i32) {
    %c0_i32 = arith.constant 0 : i32
    %c0_i32_0 = arith.constant 0 : i32
    %c0_i32_1 = arith.constant 0 : i32
    return %c0_i32, %c0_i32_0 : i32, i32
  }
  func.func @transform_11(%arg0: i32) -> (i32, i32) {
    %c0_i32 = arith.constant 0 : i32
    %c0_i32_0 = arith.constant 0 : i32
    %c0_i32_1 = arith.constant 0 : i32
    return %c0_i32, %c0_i32_0 : i32, i32
  }
}

</mosaic_0001>

<llo_original>
// kernel: trex_forward.1
$region0: #{trex_forward.1}
  #allocation0 [shape = 'u32[]', space=smem, size = 0x4, offset = 0x4, fixed_abs, tag = 'smem constant byte address 0x4 - core index']
  #allocation1 [shape = 'u32[144,128]{1,0:T(1,128)}', space=vmem, size = 0x12000, scoped, tag = 'internal scratch']
  #allocation2 [shape = 'f32[256,128]{1,0:T(8,128)}', space=vmem, size = 0x20000, scoped, tag = 'scratch operand']
  %s0 = inlined_call_operand.vmem [shape: s32[1,1024], index: 0, kind: input, shape index: {}]
  %s1 = inlined_call_operand.vmem [shape: f32[1024,128], index: 1, kind: input, shape index: {}]
  %s2 = inlined_call_operand.vmem [shape: bf16[16,768], index: 2, kind: input, shape index: {}]
  %s3 = inlined_call_operand.vmem [shape: bf16[768,128], index: 3, kind: input, shape index: {}]
  %s4 = inlined_call_operand.vmem [shape: bf16[128,256], index: 4, kind: input, shape index: {}]
  %s5 = inlined_call_operand.vmem [shape: f32[1,256], index: 5, kind: input, shape index: {}]
  %s6 = inlined_call_operand.hbm [shape: bf16[256,256], index: 6, kind: input, shape index: {}]
  %s7 = inlined_call_operand.vmem [shape: f32[1,256], index: 7, kind: input, shape index: {}]
  %s8 = inlined_call_operand.hbm [shape: bf16[256,256], index: 8, kind: input, shape index: {}]
  %s9 = inlined_call_operand.vmem [shape: f32[1,256], index: 9, kind: input, shape index: {}]
  %s10 = inlined_call_operand.hbm [shape: bf16[256,128], index: 10, kind: input, shape index: {}]
  %s11 = inlined_call_operand.hbm [shape: f32[16,256], index: 11, kind: output, shape index: {}]
  %s12 = sld [smem:[#allocation0]]
  $region74: #{trex_forward.1} parent=0
    _
  %s14 = ssub.s32 1, %s12
  %s15 = scalar_select 0, %s14, %s12
  $region1: #{trex_forward.1} parent=0
    #allocation3 [shape = 'u8[131072]{0}', space=vmem, size = 0x20000, scoped, tag = 'input window, operand 6, single buffered']
    #allocation4 [shape = 's32[1]{0}', space=sflag, size = 0x4, scoped, tag = 'scoped memory for trex_forward.1']
    #allocation5 [shape = 's32[1]{0}', space=sflag, size = 0x4, scoped, tag = 'scoped memory for trex_forward.1']
    #allocation6 [shape = 'u8[131072]{0}', space=vmem, size = 0x20000, scoped, tag = 'input window, operand 8, single buffered']
    #allocation7 [shape = 's32[1]{0}', space=sflag, size = 0x4, scoped, tag = 'scoped memory for trex_forward.1']
    #allocation8 [shape = 'u8[65536]{0}', space=vmem, size = 0x10000, scoped, tag = 'input window, operand 10, single buffered']
    #allocation9 [shape = 'u8[16384]{0}', space=vmem, size = 0x4000, scoped, tag = 'output window, operand 0, single buffered']
    %16 = vsyncpa [#allocation4], 0
    %17 = vsyncpa [#allocation7], 0
    %18 = vsyncpa [#allocation5], 0
    // Predicated region
    $region2: #{trex_forward.1} parent=1 // pred_check
      _
    $region3: #{trex_forward.1} parent=1 // pred_check_branch
      %20 = sbr.rel (0) target = $region5
    $region4: #{trex_forward.1} parent=1 // pred_region
      _
    $region5: #{trex_forward.1} parent=1 // pred_fallthru
      _
    // Predicated region
    $region6: #{trex_forward.1} parent=1 // pred_check
      _
    $region7: #{trex_forward.1} parent=1 // pred_check_branch
      %22 = sbr.rel (0) target = $region9
    $region8: #{trex_forward.1} parent=1 // pred_region
      _
    $region9: #{trex_forward.1} parent=1 // pred_fallthru
      _
    // Predicated region
    $region10: #{trex_forward.1} parent=1 // pred_check
      _
    $region11: #{trex_forward.1} parent=1 // pred_check_branch
      %24 = sbr.rel (0) target = $region13
    $region12: #{trex_forward.1} parent=1 // pred_region
      _
    $region13: #{trex_forward.1} parent=1 // pred_fallthru
      _
    // Predicated region
    $region14: #{trex_forward.1} parent=1 // pred_check
      _
    $region15: #{trex_forward.1} parent=1 // pred_check_branch
      %26 = sbr.rel (0) target = $region17
    $region16: #{trex_forward.1} parent=1 // pred_region
      _
    $region17: #{trex_forward.1} parent=1 // pred_fallthru
      _
    // Predicated region
    $region18: #{trex_forward.1} parent=1 // pred_check
      _
    $region19: #{trex_forward.1} parent=1 // pred_check_branch
      %28 = sbr.rel (0) target = $region21
    $region20: #{trex_forward.1} parent=1 // pred_region
      _
    $region21: #{trex_forward.1} parent=1 // pred_fallthru
      _
    // Predicated region
    $region22: #{trex_forward.1} parent=1 // pred_check
      _
    $region23: #{trex_forward.1} parent=1 // pred_check_branch
      %30 = sbr.rel (0) target = $region25
    $region24: #{trex_forward.1} parent=1 // pred_region
      _
    $region25: #{trex_forward.1} parent=1 // pred_fallthru
      _
    // Predicated region
    $region26: #{trex_forward.1} parent=1 // pred_check
      _
    $region27: #{trex_forward.1} parent=1 // pred_check_branch
      %32 = sbr.rel (0) target = $region29
    $region28: #{trex_forward.1} parent=1 // pred_region
      %s34 = ssub.s32 4096, 4096
      %35 = vsyncadd [#allocation4], %s34
      %s36 = sshll.u32 [#allocation3], 4
      %s37 = int_to_ptr.vmem [resolvable:$true] %s36
      %42 = dma.hbm_to_vmem [thread:$0]  %s6, 4096, %s37, [#allocation4], 128, 128, 8
    $region29: #{trex_forward.1} parent=1 // pred_fallthru
      _
    // Predicated region
    $region30: #{trex_forward.1} parent=1 // pred_check
      _
    $region31: #{trex_forward.1} parent=1 // pred_check_branch
      %44 = sbr.rel (0) target = $region33
    $region32: #{trex_forward.1} parent=1 // pred_region
      _
    $region33: #{trex_forward.1} parent=1 // pred_fallthru
      _
    // Predicated region
    $region34: #{trex_forward.1} parent=1 // pred_check
      _
    $region35: #{trex_forward.1} parent=1 // pred_check_branch
      %46 = sbr.rel (0) target = $region37
    $region36: #{trex_forward.1} parent=1 // pred_region
      %s48 = ssub.s32 4096, 4096
      %49 = vsyncadd [#allocation7], %s48
      %s50 = sshll.u32 [#allocation6], 4
      %s51 = int_to_ptr.vmem [resolvable:$true] %s50
      %56 = dma.hbm_to_vmem [thread:$0]  %s8, 4096, %s51, [#allocation7], 128, 128, 8
    $region37: #{trex_forward.1} parent=1 // pred_fallthru
      _
    // Predicated region
    $region38: #{trex_forward.1} parent=1 // pred_check
      _
    $region39: #{trex_forward.1} parent=1 // pred_check_branch
      %58 = sbr.rel (0) target = $region41
    $region40: #{trex_forward.1} parent=1 // pred_region
      _
    $region41: #{trex_forward.1} parent=1 // pred_fallthru
      _
    // Predicated region
    $region42: #{trex_forward.1} parent=1 // pred_check
      _
    $region43: #{trex_forward.1} parent=1 // pred_check_branch
      %60 = sbr.rel (0) target = $region45
    $region44: #{trex_forward.1} parent=1 // pred_region
      %s62 = ssub.s32 2048, 2048
      %63 = vsyncadd [#allocation7], %s62
      %s64 = sshll.u32 [#allocation8], 4
      %s65 = int_to_ptr.vmem [resolvable:$true] %s64
      %70 = dma.hbm_to_vmem [thread:$0]  %s10, 2048, %s65, [#allocation7], 64, 64, 4
    $region45: #{trex_forward.1} parent=1 // pred_fallthru
      _
    // Predicated region
    $region46: #{trex_forward.1} parent=1 // pred_check
      _
    $region47: #{trex_forward.1} parent=1 // pred_check_branch
      %72 = sbr.rel (0) target = $region49
    $region48: #{trex_forward.1} parent=1 // pred_region
      %73 = dma.done [#allocation4], 4096
    $region49: #{trex_forward.1} parent=1 // pred_fallthru
      _
    // Predicated region
    $region50: #{trex_forward.1} parent=1 // pred_check
      _
    $region51: #{trex_forward.1} parent=1 // pred_check_branch
      %75 = sbr.rel (0) target = $region53
    $region52: #{trex_forward.1} parent=1 // pred_region
      %76 = dma.done [#allocation7], 4096
    $region53: #{trex_forward.1} parent=1 // pred_fallthru
      _
    // Predicated region
    $region54: #{trex_forward.1} parent=1 // pred_check
      _
    $region55: #{trex_forward.1} parent=1 // pred_check_branch
      %78 = sbr.rel (0) target = $region57
    $region56: #{trex_forward.1} parent=1 // pred_region
      %79 = dma.done [#allocation7], 2048
    $region57: #{trex_forward.1} parent=1 // pred_fallthru
      _
    %p81 = scmp.eq.s32.totalorder 0, 0
    // Predicated region
    $region58: #{trex_forward.1} parent=1 // pred_check
      %p82 = pneg %p81
    $region59: #{trex_forward.1} parent=1 // pred_check_branch
      %84 = sbr.rel (%p82) target = $region61
    $region60: #{trex_forward.1} parent=1 // pred_region
      %85 = vst [vmem:[#allocation2] sm:$0xff] 0.0
      %86 = vst [vmem:[#allocation2 + $0x8] sm:$0xff] 0.0
      %87 = vst [vmem:[#allocation2 + $0x10] sm:$0xff] 0.0
      %88 = vst [vmem:[#allocation2 + $0x18] sm:$0xff] 0.0
      %89 = vst [vmem:[#allocation2 + $0x20] sm:$0xff] 0.0
      %90 = vst [vmem:[#allocation2 + $0x28] sm:$0xff] 0.0
      %91 = vst [vmem:[#allocation2 + $0x30] sm:$0xff] 0.0
      %92 = vst [vmem:[#allocation2 + $0x38] sm:$0xff] 0.0
      %93 = vst [vmem:[#allocation2 + $0x40] sm:$0xff] 0.0
      %94 = vst [vmem:[#allocation2 + $0x48] sm:$0xff] 0.0
      %95 = vst [vmem:[#allocation2 + $0x50] sm:$0xff] 0.0
      %96 = vst [vmem:[#allocation2 + $0x58] sm:$0xff] 0.0
      %97 = vst [vmem:[#allocation2 + $0x60] sm:$0xff] 0.0
      %98 = vst [vmem:[#allocation2 + $0x68] sm:$0xff] 0.0
      %99 = vst [vmem:[#allocation2 + $0x70] sm:$0xff] 0.0
      %100 = vst [vmem:[#allocation2 + $0x78] sm:$0xff] 0.0
      %101 = vst [vmem:[#allocation2 + $0x80] sm:$0xff] 0.0
      %102 = vst [vmem:[#allocation2 + $0x88] sm:$0xff] 0.0
      %103 = vst [vmem:[#allocation2 + $0x90] sm:$0xff] 0.0
      %104 = vst [vmem:[#allocation2 + $0x98] sm:$0xff] 0.0
      %105 = vst [vmem:[#allocation2 + $0xa0] sm:$0xff] 0.0
      %106 = vst [vmem:[#allocation2 + $0xa8] sm:$0xff] 0.0
      %107 = vst [vmem:[#allocation2 + $0xb0] sm:$0xff] 0.0
      %108 = vst [vmem:[#allocation2 + $0xb8] sm:$0xff] 0.0
      %109 = vst [vmem:[#allocation2 + $0xc0] sm:$0xff] 0.0
      %110 = vst [vmem:[#allocation2 + $0xc8] sm:$0xff] 0.0
      %111 = vst [vmem:[#allocation2 + $0xd0] sm:$0xff] 0.0
      %112 = vst [vmem:[#allocation2 + $0xd8] sm:$0xff] 0.0
      %113 = vst [vmem:[#allocation2 + $0xe0] sm:$0xff] 0.0
      %114 = vst [vmem:[#allocation2 + $0xe8] sm:$0xff] 0.0
      %115 = vst [vmem:[#allocation2 + $0xf0] sm:$0xff] 0.0
      %116 = vst [vmem:[#allocation2 + $0xf8] sm:$0xff] 0.0
    $region61: #{trex_forward.1} parent=1 // pred_fallthru
      _
    %v117 = vld [vmem:[%s0] sm:$0xff]
    %v118 = vlaneseq
    %v119 = vshrl.u32 %v118, 7
    %v120 = vadd.s32 %v119, 8
    %v121 = vadd.s32 %v119, 16
    %v122 = vadd.s32 %v119, 24
    %v123 = vadd.s32 %v119, 32
    %v124 = vadd.s32 %v119, 40
    %v125 = vadd.s32 %v119, 48
    %v126 = vadd.s32 %v119, 56
    %v127 = vadd.s32 %v119, 64
    %v128 = vadd.s32 %v119, 72
    %v129 = vadd.s32 %v119, 80
    %v130 = vadd.s32 %v119, 88
    %v131 = vadd.s32 %v119, 96
    %v132 = vadd.s32 %v119, 104
    %v133 = vadd.s32 %v119, 112
    %v134 = vadd.s32 %v119, 120
    %v135 = vadd.s32 %v119, 128
    %v136 = vadd.s32 %v119, 136
    %v137 = vadd.s32 %v119, 144
    %v138 = vadd.s32 %v119, 152
    %v139 = vadd.s32 %v119, 160
    %v140 = vadd.s32 %v119, 168
    %v141 = vadd.s32 %v119, 176
    %v142 = vadd.s32 %v119, 184
    %v143 = vadd.s32 %v119, 192
    %v144 = vadd.s32 %v119, 200
    %v145 = vadd.s32 %v119, 208
    %v146 = vadd.s32 %v119, 216
    %v147 = vadd.s32 %v119, 224
    %v148 = vadd.s32 %v119, 232
    %v149 = vadd.s32 %v119, 240
    %v150 = vadd.s32 %v119, 248
    %v151 = vlaneseq
    %v152 = vshrl.u32 %v151, 7
    %v153 = vsub.s32 0, %v152
    %v154 = vrot.slane %v117, %v153
    %v155 = vlaneseq
    %v156 = vshrl.u32 %v155, 7
    %v157 = vsub.s32 1, %v156
    %v158 = vrot.slane %v117, %v157
    %v159 = vlaneseq
    %v160 = vshrl.u32 %v159, 7
    %v161 = vsub.s32 2, %v160
    %v162 = vrot.slane %v117, %v161
    %v163 = vlaneseq
    %v164 = vshrl.u32 %v163, 7
    %v165 = vsub.s32 3, %v164
    %v166 = vrot.slane %v117, %v165
    %v167 = vlaneseq
    %v168 = vshrl.u32 %v167, 7
    %v169 = vsub.s32 4, %v168
    %v170 = vrot.slane %v117, %v169
    %v171 = vlaneseq
    %v172 = vshrl.u32 %v171, 7
    %v173 = vsub.s32 5, %v172
    %v174 = vrot.slane %v117, %v173
    %v175 = vlaneseq
    %v176 = vshrl.u32 %v175, 7
    %v177 = vsub.s32 6, %v176
    %v178 = vrot.slane %v117, %v177
    %v179 = vlaneseq
    %v180 = vshrl.u32 %v179, 7
    %v181 = vsub.s32 7, %v180
    %v182 = vrot.slane %v117, %v181
    %vm183 = vcmp.eq.s32.totalorder %v154, %v119
    %vm184 = vcmp.eq.s32.totalorder %v158, %v119
    %vm185 = vcmp.eq.s32.totalorder %v162, %v119
    %vm186 = vcmp.eq.s32.totalorder %v166, %v119
    %vm187 = vcmp.eq.s32.totalorder %v170, %v119
    %vm188 = vcmp.eq.s32.totalorder %v174, %v119
    %vm189 = vcmp.eq.s32.totalorder %v178, %v119
    %vm190 = vcmp.eq.s32.totalorder %v182, %v119
    %vm191 = vcmp.eq.s32.totalorder %v154, %v120
    %vm192 = vcmp.eq.s32.totalorder %v158, %v120
    %vm193 = vcmp.eq.s32.totalorder %v162, %v120
    %vm194 = vcmp.eq.s32.totalorder %v166, %v120
    %vm195 = vcmp.eq.s32.totalorder %v170, %v120
    %vm196 = vcmp.eq.s32.totalorder %v174, %v120
    %vm197 = vcmp.eq.s32.totalorder %v178, %v120
    %vm198 = vcmp.eq.s32.totalorder %v182, %v120
    %vm199 = vcmp.eq.s32.totalorder %v154, %v121
    %vm200 = vcmp.eq.s32.totalorder %v158, %v121
    %vm201 = vcmp.eq.s32.totalorder %v162, %v121
    %vm202 = vcmp.eq.s32.totalorder %v166, %v121
    %vm203 = vcmp.eq.s32.totalorder %v170, %v121
    %vm204 = vcmp.eq.s32.totalorder %v174, %v121
    %vm205 = vcmp.eq.s32.totalorder %v178, %v121
    %vm206 = vcmp.eq.s32.totalorder %v182, %v121
    %vm207 = vcmp.eq.s32.totalorder %v154, %v122
    %vm208 = vcmp.eq.s32.totalorder %v158, %v122
    %vm209 = vcmp.eq.s32.totalorder %v162, %v122
    %vm210 = vcmp.eq.s32.totalorder %v166, %v122
    %vm211 = vcmp.eq.s32.totalorder %v170, %v122
    %vm212 = vcmp.eq.s32.totalorder %v174, %v122
    %vm213 = vcmp.eq.s32.totalorder %v178, %v122
    %vm214 = vcmp.eq.s32.totalorder %v182, %v122
    %vm215 = vcmp.eq.s32.totalorder %v154, %v123
    %vm216 = vcmp.eq.s32.totalorder %v158, %v123
    %vm217 = vcmp.eq.s32.totalorder %v162, %v123
    %vm218 = vcmp.eq.s32.totalorder %v166, %v123
    %vm219 = vcmp.eq.s32.totalorder %v170, %v123
    %vm220 = vcmp.eq.s32.totalorder %v174, %v123
    %vm221 = vcmp.eq.s32.totalorder %v178, %v123
    %vm222 = vcmp.eq.s32.totalorder %v182, %v123
    %vm223 = vcmp.eq.s32.totalorder %v154, %v124
    %vm224 = vcmp.eq.s32.totalorder %v158, %v124
    %vm225 = vcmp.eq.s32.totalorder %v162, %v124
    %vm226 = vcmp.eq.s32.totalorder %v166, %v124
    %vm227 = vcmp.eq.s32.totalorder %v170, %v124
    %vm228 = vcmp.eq.s32.totalorder %v174, %v124
    %vm229 = vcmp.eq.s32.totalorder %v178, %v124
    %vm230 = vcmp.eq.s32.totalorder %v182, %v124
    %vm231 = vcmp.eq.s32.totalorder %v154, %v125
    %vm232 = vcmp.eq.s32.totalorder %v158, %v125
    %vm233 = vcmp.eq.s32.totalorder %v162, %v125
    %vm234 = vcmp.eq.s32.totalorder %v166, %v125
    %vm235 = vcmp.eq.s32.totalorder %v170, %v125
    %vm236 = vcmp.eq.s32.totalorder %v174, %v125
    %vm237 = vcmp.eq.s32.totalorder %v178, %v125
    %vm238 = vcmp.eq.s32.totalorder %v182, %v125
    %vm239 = vcmp.eq.s32.totalorder %v154, %v126
    %vm240 = vcmp.eq.s32.totalorder %v158, %v126
    %vm241 = vcmp.eq.s32.totalorder %v162, %v126
    %vm242 = vcmp.eq.s32.totalorder %v166, %v126
    %vm243 = vcmp.eq.s32.totalorder %v170, %v126
    %vm244 = vcmp.eq.s32.totalorder %v174, %v126
    %vm245 = vcmp.eq.s32.totalorder %v178, %v126
    %vm246 = vcmp.eq.s32.totalorder %v182, %v126
    %vm247 = vcmp.eq.s32.totalorder %v154, %v127
    %vm248 = vcmp.eq.s32.totalorder %v158, %v127
    %vm249 = vcmp.eq.s32.totalorder %v162, %v127
    %vm250 = vcmp.eq.s32.totalorder %v166, %v127
    %vm251 = vcmp.eq.s32.totalorder %v170, %v127
    %vm252 = vcmp.eq.s32.totalorder %v174, %v127
    %vm253 = vcmp.eq.s32.totalorder %v178, %v127
    %vm254 = vcmp.eq.s32.totalorder %v182, %v127
    %vm255 = vcmp.eq.s32.totalorder %v154, %v128
    %vm256 = vcmp.eq.s32.totalorder %v158, %v128
    %vm257 = vcmp.eq.s32.totalorder %v162, %v128
    %vm258 = vcmp.eq.s32.totalorder %v166, %v128
    %vm259 = vcmp.eq.s32.totalorder %v170, %v128
    %vm260 = vcmp.eq.s32.totalorder %v174, %v128
    %vm261 = vcmp.eq.s32.totalorder %v178, %v128
    %vm262 = vcmp.eq.s32.totalorder %v182, %v128
    %vm263 = vcmp.eq.s32.totalorder %v154, %v129
    %vm264 = vcmp.eq.s32.totalorder %v158, %v129
    %vm265 = vcmp.eq.s32.totalorder %v162, %v129
    %vm266 = vcmp.eq.s32.totalorder %v166, %v129
    %vm267 = vcmp.eq.s32.totalorder %v170, %v129
    %vm268 = vcmp.eq.s32.totalorder %v174, %v129
    %vm269 = vcmp.eq.s32.totalorder %v178, %v129
    %vm270 = vcmp.eq.s32.totalorder %v182, %v129
    %vm271 = vcmp.eq.s32.totalorder %v154, %v130
    %vm272 = vcmp.eq.s32.totalorder %v158, %v130
    %vm273 = vcmp.eq.s32.totalorder %v162, %v130
    %vm274 = vcmp.eq.s32.totalorder %v166, %v130
    %vm275 = vcmp.eq.s32.totalorder %v170, %v130
    %vm276 = vcmp.eq.s32.totalorder %v174, %v130
    %vm277 = vcmp.eq.s32.totalorder %v178, %v130
    %vm278 = vcmp.eq.s32.totalorder %v182, %v130
    %vm279 = vcmp.eq.s32.totalorder %v154, %v131
    %vm280 = vcmp.eq.s32.totalorder %v158, %v131
    %vm281 = vcmp.eq.s32.totalorder %v162, %v131
    %vm282 = vcmp.eq.s32.totalorder %v166, %v131
    %vm283 = vcmp.eq.s32.totalorder %v170, %v131
    %vm284 = vcmp.eq.s32.totalorder %v174, %v131
    %vm285 = vcmp.eq.s32.totalorder %v178, %v131
    %vm286 = vcmp.eq.s32.totalorder %v182, %v131
    %vm287 = vcmp.eq.s32.totalorder %v154, %v132
    %vm288 = vcmp.eq.s32.totalorder %v158, %v132
    %vm289 = vcmp.eq.s32.totalorder %v162, %v132
    %vm290 = vcmp.eq.s32.totalorder %v166, %v132
    %vm291 = vcmp.eq.s32.totalorder %v170, %v132
    %vm292 = vcmp.eq.s32.totalorder %v174, %v132
    %vm293 = vcmp.eq.s32.totalorder %v178, %v132
    %vm294 = vcmp.eq.s32.totalorder %v182, %v132
    %vm295 = vcmp.eq.s32.totalorder %v154, %v133
    %vm296 = vcmp.eq.s32.totalorder %v158, %v133
    %vm297 = vcmp.eq.s32.totalorder %v162, %v133
    %vm298 = vcmp.eq.s32.totalorder %v166, %v133
    %vm299 = vcmp.eq.s32.totalorder %v170, %v133
    %vm300 = vcmp.eq.s32.totalorder %v174, %v133
    %vm301 = vcmp.eq.s32.totalorder %v178, %v133
    %vm302 = vcmp.eq.s32.totalorder %v182, %v133
    %vm303 = vcmp.eq.s32.totalorder %v154, %v134
    %vm304 = vcmp.eq.s32.totalorder %v158, %v134
    %vm305 = vcmp.eq.s32.totalorder %v162, %v134
    %vm306 = vcmp.eq.s32.totalorder %v166, %v134
    %vm307 = vcmp.eq.s32.totalorder %v170, %v134
    %vm308 = vcmp.eq.s32.totalorder %v174, %v134
    %vm309 = vcmp.eq.s32.totalorder %v178, %v134
    %vm310 = vcmp.eq.s32.totalorder %v182, %v134
    %vm311 = vcmp.eq.s32.totalorder %v154, %v135
    %vm312 = vcmp.eq.s32.totalorder %v158, %v135
    %vm313 = vcmp.eq.s32.totalorder %v162, %v135
    %vm314 = vcmp.eq.s32.totalorder %v166, %v135
    %vm315 = vcmp.eq.s32.totalorder %v170, %v135
    %vm316 = vcmp.eq.s32.totalorder %v174, %v135
    %vm317 = vcmp.eq.s32.totalorder %v178, %v135
    %vm318 = vcmp.eq.s32.totalorder %v182, %v135
    %vm319 = vcmp.eq.s32.totalorder %v154, %v136
    %vm320 = vcmp.eq.s32.totalorder %v158, %v136
    %vm321 = vcmp.eq.s32.totalorder %v162, %v136
    %vm322 = vcmp.eq.s32.totalorder %v166, %v136
    %vm323 = vcmp.eq.s32.totalorder %v170, %v136
    %vm324 = vcmp.eq.s32.totalorder %v174, %v136
    %vm325 = vcmp.eq.s32.totalorder %v178, %v136
    %vm326 = vcmp.eq.s32.totalorder %v182, %v136
    %vm327 = vcmp.eq.s32.totalorder %v154, %v137
    %vm328 = vcmp.eq.s32.totalorder %v158, %v137
    %vm329 = vcmp.eq.s32.totalorder %v162, %v137
    %vm330 = vcmp.eq.s32.totalorder %v166, %v137
    %vm331 = vcmp.eq.s32.totalorder %v170, %v137
    %vm332 = vcmp.eq.s32.totalorder %v174, %v137
    %vm333 = vcmp.eq.s32.totalorder %v178, %v137
    %vm334 = vcmp.eq.s32.totalorder %v182, %v137
    %vm335 = vcmp.eq.s32.totalorder %v154, %v138
    %vm336 = vcmp.eq.s32.totalorder %v158, %v138
    %vm337 = vcmp.eq.s32.totalorder %v162, %v138
    %vm338 = vcmp.eq.s32.totalorder %v166, %v138
    %vm339 = vcmp.eq.s32.totalorder %v170, %v138
    %vm340 = vcmp.eq.s32.totalorder %v174, %v138
    %vm341 = vcmp.eq.s32.totalorder %v178, %v138
    %vm342 = vcmp.eq.s32.totalorder %v182, %v138
    %vm343 = vcmp.eq.s32.totalorder %v154, %v139
    %vm344 = vcmp.eq.s32.totalorder %v158, %v139
    %vm345 = vcmp.eq.s32.totalorder %v162, %v139
    %vm346 = vcmp.eq.s32.totalorder %v166, %v139
    %vm347 = vcmp.eq.s32.totalorder %v170, %v139
    %vm348 = vcmp.eq.s32.totalorder %v174, %v139
    %vm349 = vcmp.eq.s32.totalorder %v178, %v139
    %vm350 = vcmp.eq.s32.totalorder %v182, %v139
    %vm351 = vcmp.eq.s32.totalorder %v154, %v140
    %vm352 = vcmp.eq.s32.totalorder %v158, %v140
    %vm353 = vcmp.eq.s32.totalorder %v162, %v140
    %vm354 = vcmp.eq.s32.totalorder %v166, %v140
    %vm355 = vcmp.eq.s32.totalorder %v170, %v140
    %vm356 = vcmp.eq.s32.totalorder %v174, %v140
    %vm357 = vcmp.eq.s32.totalorder %v178, %v140
    %vm358 = vcmp.eq.s32.totalorder %v182, %v140
    %vm359 = vcmp.eq.s32.totalorder %v154, %v141
    %vm360 = vcmp.eq.s32.totalorder %v158, %v141
    %vm361 = vcmp.eq.s32.totalorder %v162, %v141
    %vm362 = vcmp.eq.s32.totalorder %v166, %v141
    %vm363 = vcmp.eq.s32.totalorder %v170, %v141
    %vm364 = vcmp.eq.s32.totalorder %v174, %v141
    %vm365 = vcmp.eq.s32.totalorder %v178, %v141
    %vm366 = vcmp.eq.s32.totalorder %v182, %v141
    %vm367 = vcmp.eq.s32.totalorder %v154, %v142
    %vm368 = vcmp.eq.s32.totalorder %v158, %v142
    %vm369 = vcmp.eq.s32.totalorder %v162, %v142
    %vm370 = vcmp.eq.s32.totalorder %v166, %v142
    %vm371 = vcmp.eq.s32.totalorder %v170, %v142
    %vm372 = vcmp.eq.s32.totalorder %v174, %v142
    %vm373 = vcmp.eq.s32.totalorder %v178, %v142
    %vm374 = vcmp.eq.s32.totalorder %v182, %v142
    %vm375 = vcmp.eq.s32.totalorder %v154, %v143
    %vm376 = vcmp.eq.s32.totalorder %v158, %v143
    %vm377 = vcmp.eq.s32.totalorder %v162, %v143
    %vm378 = vcmp.eq.s32.totalorder %v166, %v143
    %vm379 = vcmp.eq.s32.totalorder %v170, %v143
    %vm380 = vcmp.eq.s32.totalorder %v174, %v143
    %vm381 = vcmp.eq.s32.totalorder %v178, %v143
    %vm382 = vcmp.eq.s32.totalorder %v182, %v143
    %vm383 = vcmp.eq.s32.totalorder %v154, %v144
    %vm384 = vcmp.eq.s32.totalorder %v158, %v144
    %vm385 = vcmp.eq.s32.totalorder %v162, %v144
    %vm386 = vcmp.eq.s32.totalorder %v166, %v144
    %vm387 = vcmp.eq.s32.totalorder %v170, %v144
    %vm388 = vcmp.eq.s32.totalorder %v174, %v144
    %vm389 = vcmp.eq.s32.totalorder %v178, %v144
    %vm390 = vcmp.eq.s32.totalorder %v182, %v144
    %vm391 = vcmp.eq.s32.totalorder %v154, %v145
    %vm392 = vcmp.eq.s32.totalorder %v158, %v145
    %vm393 = vcmp.eq.s32.totalorder %v162, %v145
    %vm394 = vcmp.eq.s32.totalorder %v166, %v145
    %vm395 = vcmp.eq.s32.totalorder %v170, %v145
    %vm396 = vcmp.eq.s32.totalorder %v174, %v145
    %vm397 = vcmp.eq.s32.totalorder %v178, %v145
    %vm398 = vcmp.eq.s32.totalorder %v182, %v145
    %vm399 = vcmp.eq.s32.totalorder %v154, %v146
    %vm400 = vcmp.eq.s32.totalorder %v158, %v146
    %vm401 = vcmp.eq.s32.totalorder %v162, %v146
    %vm402 = vcmp.eq.s32.totalorder %v166, %v146
    %vm403 = vcmp.eq.s32.totalorder %v170, %v146
    %vm404 = vcmp.eq.s32.totalorder %v174, %v146
    %vm405 = vcmp.eq.s32.totalorder %v178, %v146
    %vm406 = vcmp.eq.s32.totalorder %v182, %v146
    %vm407 = vcmp.eq.s32.totalorder %v154, %v147
    %vm408 = vcmp.eq.s32.totalorder %v158, %v147
    %vm409 = vcmp.eq.s32.totalorder %v162, %v147
    %vm410 = vcmp.eq.s32.totalorder %v166, %v147
    %vm411 = vcmp.eq.s32.totalorder %v170, %v147
    %vm412 = vcmp.eq.s32.totalorder %v174, %v147
    %vm413 = vcmp.eq.s32.totalorder %v178, %v147
    %vm414 = vcmp.eq.s32.totalorder %v182, %v147
    %vm415 = vcmp.eq.s32.totalorder %v154, %v148
    %vm416 = vcmp.eq.s32.totalorder %v158, %v148
    %vm417 = vcmp.eq.s32.totalorder %v162, %v148
    %vm418 = vcmp.eq.s32.totalorder %v166, %v148
    %vm419 = vcmp.eq.s32.totalorder %v170, %v148
    %vm420 = vcmp.eq.s32.totalorder %v174, %v148
    %vm421 = vcmp.eq.s32.totalorder %v178, %v148
    %vm422 = vcmp.eq.s32.totalorder %v182, %v148
    %vm423 = vcmp.eq.s32.totalorder %v154, %v149
    %vm424 = vcmp.eq.s32.totalorder %v158, %v149
    %vm425 = vcmp.eq.s32.totalorder %v162, %v149
    %vm426 = vcmp.eq.s32.totalorder %v166, %v149
    %vm427 = vcmp.eq.s32.totalorder %v170, %v149
    %vm428 = vcmp.eq.s32.totalorder %v174, %v149
    %vm429 = vcmp.eq.s32.totalorder %v178, %v149
    %vm430 = vcmp.eq.s32.totalorder %v182, %v149
    %vm431 = vcmp.eq.s32.totalorder %v154, %v150
    %vm432 = vcmp.eq.s32.totalorder %v158, %v150
    %vm433 = vcmp.eq.s32.totalorder %v162, %v150
    %vm434 = vcmp.eq.s32.totalorder %v166, %v150
    %vm435 = vcmp.eq.s32.totalorder %v170, %v150
    %vm436 = vcmp.eq.s32.totalorder %v174, %v150
    %vm437 = vcmp.eq.s32.totalorder %v178, %v150
    %vm438 = vcmp.eq.s32.totalorder %v182, %v150
    %v439 = vsel %vm183, 1, 0
    %v440 = vsel %vm184, 1, 0
    %v441 = vsel %vm185, 1, 0
    %v442 = vsel %vm186, 1, 0
    %v443 = vsel %vm187, 1, 0
    %v444 = vsel %vm188, 1, 0
    %v445 = vsel %vm189, 1, 0
    %v446 = vsel %vm190, 1, 0
    %v447 = vsel %vm191, 1, 0
    %v448 = vsel %vm192, 1, 0
    %v449 = vsel %vm193, 1, 0
    %v450 = vsel %vm194, 1, 0
    %v451 = vsel %vm195, 1, 0
    %v452 = vsel %vm196, 1, 0
    %v453 = vsel %vm197, 1, 0
    %v454 = vsel %vm198, 1, 0
    %v455 = vsel %vm199, 1, 0
    %v456 = vsel %vm200, 1, 0
    %v457 = vsel %vm201, 1, 0
    %v458 = vsel %vm202, 1, 0
    %v459 = vsel %vm203, 1, 0
    %v460 = vsel %vm204, 1, 0
    %v461 = vsel %vm205, 1, 0
    %v462 = vsel %vm206, 1, 0
    %v463 = vsel %vm207, 1, 0
    %v464 = vsel %vm208, 1, 0
    %v465 = vsel %vm209, 1, 0
    %v466 = vsel %vm210, 1, 0
    %v467 = vsel %vm211, 1, 0
    %v468 = vsel %vm212, 1, 0
    %v469 = vsel %vm213, 1, 0
    %v470 = vsel %vm214, 1, 0
    %v471 = vsel %vm215, 1, 0
    %v472 = vsel %vm216, 1, 0
    %v473 = vsel %vm217, 1, 0
    %v474 = vsel %vm218, 1, 0
    %v475 = vsel %vm219, 1, 0
    %v476 = vsel %vm220, 1, 0
    %v477 = vsel %vm221, 1, 0
    %v478 = vsel %vm222, 1, 0
    %v479 = vsel %vm223, 1, 0
    %v480 = vsel %vm224, 1, 0
    %v481 = vsel %vm225, 1, 0
    %v482 = vsel %vm226, 1, 0
    %v483 = vsel %vm227, 1, 0
    %v484 = vsel %vm228, 1, 0
    %v485 = vsel %vm229, 1, 0
    %v486 = vsel %vm230, 1, 0
    %v487 = vsel %vm231, 1, 0
    %v488 = vsel %vm232, 1, 0
    %v489 = vsel %vm233, 1, 0
    %v490 = vsel %vm234, 1, 0
    %v491 = vsel %vm235, 1, 0
    %v492 = vsel %vm236, 1, 0
    %v493 = vsel %vm237, 1, 0
    %v494 = vsel %vm238, 1, 0
    %v495 = vsel %vm239, 1, 0
    %v496 = vsel %vm240, 1, 0
    %v497 = vsel %vm241, 1, 0
    %v498 = vsel %vm242, 1, 0
    %v499 = vsel %vm243, 1, 0
    %v500 = vsel %vm244, 1, 0
    %v501 = vsel %vm245, 1, 0
    %v502 = vsel %vm246, 1, 0
    %v503 = vsel %vm247, 1, 0
    %v504 = vsel %vm248, 1, 0
    %v505 = vsel %vm249, 1, 0
    %v506 = vsel %vm250, 1, 0
    %v507 = vsel %vm251, 1, 0
    %v508 = vsel %vm252, 1, 0
    %v509 = vsel %vm253, 1, 0
    %v510 = vsel %vm254, 1, 0
    %v511 = vsel %vm255, 1, 0
    %v512 = vsel %vm256, 1, 0
    %v513 = vsel %vm257, 1, 0
    %v514 = vsel %vm258, 1, 0
    %v515 = vsel %vm259, 1, 0
    %v516 = vsel %vm260, 1, 0
    %v517 = vsel %vm261, 1, 0
    %v518 = vsel %vm262, 1, 0
    %v519 = vsel %vm263, 1, 0
    %v520 = vsel %vm264, 1, 0
    %v521 = vsel %vm265, 1, 0
    %v522 = vsel %vm266, 1, 0
    %v523 = vsel %vm267, 1, 0
    %v524 = vsel %vm268, 1, 0
    %v525 = vsel %vm269, 1, 0
    %v526 = vsel %vm270, 1, 0
    %v527 = vsel %vm271, 1, 0
    %v528 = vsel %vm272, 1, 0
    %v529 = vsel %vm273, 1, 0
    %v530 = vsel %vm274, 1, 0
    %v531 = vsel %vm275, 1, 0
    %v532 = vsel %vm276, 1, 0
    %v533 = vsel %vm277, 1, 0
    %v534 = vsel %vm278, 1, 0
    %v535 = vsel %vm279, 1, 0
    %v536 = vsel %vm280, 1, 0
    %v537 = vsel %vm281, 1, 0
    %v538 = vsel %vm282, 1, 0
    %v539 = vsel %vm283, 1, 0
    %v540 = vsel %vm284, 1, 0
    %v541 = vsel %vm285, 1, 0
    %v542 = vsel %vm286, 1, 0
    %v543 = vsel %vm287, 1, 0
    %v544 = vsel %vm288, 1, 0
    %v545 = vsel %vm289, 1, 0
    %v546 = vsel %vm290, 1, 0
    %v547 = vsel %vm291, 1, 0
    %v548 = vsel %vm292, 1, 0
    %v549 = vsel %vm293, 1, 0
    %v550 = vsel %vm294, 1, 0
    %v551 = vsel %vm295, 1, 0
    %v552 = vsel %vm296, 1, 0
    %v553 = vsel %vm297, 1, 0
    %v554 = vsel %vm298, 1, 0
    %v555 = vsel %vm299, 1, 0
    %v556 = vsel %vm300, 1, 0
    %v557 = vsel %vm301, 1, 0
    %v558 = vsel %vm302, 1, 0
    %v559 = vsel %vm303, 1, 0
    %v560 = vsel %vm304, 1, 0
    %v561 = vsel %vm305, 1, 0
    %v562 = vsel %vm306, 1, 0
    %v563 = vsel %vm307, 1, 0
    %v564 = vsel %vm308, 1, 0
    %v565 = vsel %vm309, 1, 0
    %v566 = vsel %vm310, 1, 0
    %v567 = vsel %vm311, 1, 0
    %v568 = vsel %vm312, 1, 0
    %v569 = vsel %vm313, 1, 0
    %v570 = vsel %vm314, 1, 0
    %v571 = vsel %vm315, 1, 0
    %v572 = vsel %vm316, 1, 0
    %v573 = vsel %vm317, 1, 0
    %v574 = vsel %vm318, 1, 0
    %v575 = vsel %vm319, 1, 0
    %v576 = vsel %vm320, 1, 0
    %v577 = vsel %vm321, 1, 0
    %v578 = vsel %vm322, 1, 0
    %v579 = vsel %vm323, 1, 0
    %v580 = vsel %vm324, 1, 0
    %v581 = vsel %vm325, 1, 0
    %v582 = vsel %vm326, 1, 0
    %v583 = vsel %vm327, 1, 0
    %v584 = vsel %vm328, 1, 0
    %v585 = vsel %vm329, 1, 0
    %v586 = vsel %vm330, 1, 0
    %v587 = vsel %vm331, 1, 0
    %v588 = vsel %vm332, 1, 0
    %v589 = vsel %vm333, 1, 0
    %v590 = vsel %vm334, 1, 0
    %v591 = vsel %vm335, 1, 0
    %v592 = vsel %vm336, 1, 0
    %v593 = vsel %vm337, 1, 0
    %v594 = vsel %vm338, 1, 0
    %v595 = vsel %vm339, 1, 0
    %v596 = vsel %vm340, 1, 0
    %v597 = vsel %vm341, 1, 0
    %v598 = vsel %vm342, 1, 0
    %v599 = vsel %vm343, 1, 0
    %v600 = vsel %vm344, 1, 0
    %v601 = vsel %vm345, 1, 0
    %v602 = vsel %vm346, 1, 0
    %v603 = vsel %vm347, 1, 0
    %v604 = vsel %vm348, 1, 0
    %v605 = vsel %vm349, 1, 0
    %v606 = vsel %vm350, 1, 0
    %v607 = vsel %vm351, 1, 0
    %v608 = vsel %vm352, 1, 0
    %v609 = vsel %vm353, 1, 0
    %v610 = vsel %vm354, 1, 0
    %v611 = vsel %vm355, 1, 0
    %v612 = vsel %vm356, 1, 0
    %v613 = vsel %vm357, 1, 0
    %v614 = vsel %vm358, 1, 0
    %v615 = vsel %vm359, 1, 0
    %v616 = vsel %vm360, 1, 0
    %v617 = vsel %vm361, 1, 0
    %v618 = vsel %vm362, 1, 0
    %v619 = vsel %vm363, 1, 0
    %v620 = vsel %vm364, 1, 0
    %v621 = vsel %vm365, 1, 0
    %v622 = vsel %vm366, 1, 0
    %v623 = vsel %vm367, 1, 0
    %v624 = vsel %vm368, 1, 0
    %v625 = vsel %vm369, 1, 0
    %v626 = vsel %vm370, 1, 0
    %v627 = vsel %vm371, 1, 0
    %v628 = vsel %vm372, 1, 0
    %v629 = vsel %vm373, 1, 0
    %v630 = vsel %vm374, 1, 0
    %v631 = vsel %vm375, 1, 0
    %v632 = vsel %vm376, 1, 0
    %v633 = vsel %vm377, 1, 0
    %v634 = vsel %vm378, 1, 0
    %v635 = vsel %vm379, 1, 0
    %v636 = vsel %vm380, 1, 0
    %v637 = vsel %vm381, 1, 0
    %v638 = vsel %vm382, 1, 0
    %v639 = vsel %vm383, 1, 0
    %v640 = vsel %vm384, 1, 0
    %v641 = vsel %vm385, 1, 0
    %v642 = vsel %vm386, 1, 0
    %v643 = vsel %vm387, 1, 0
    %v644 = vsel %vm388, 1, 0
    %v645 = vsel %vm389, 1, 0
    %v646 = vsel %vm390, 1, 0
    %v647 = vsel %vm391, 1, 0
    %v648 = vsel %vm392, 1, 0
    %v649 = vsel %vm393, 1, 0
    %v650 = vsel %vm394, 1, 0
    %v651 = vsel %vm395, 1, 0
    %v652 = vsel %vm396, 1, 0
    %v653 = vsel %vm397, 1, 0
    %v654 = vsel %vm398, 1, 0
    %v655 = vsel %vm399, 1, 0
    %v656 = vsel %vm400, 1, 0
    %v657 = vsel %vm401, 1, 0
    %v658 = vsel %vm402, 1, 0
    %v659 = vsel %vm403, 1, 0
    %v660 = vsel %vm404, 1, 0
    %v661 = vsel %vm405, 1, 0
    %v662 = vsel %vm406, 1, 0
    %v663 = vsel %vm407, 1, 0
    %v664 = vsel %vm408, 1, 0
    %v665 = vsel %vm409, 1, 0
    %v666 = vsel %vm410, 1, 0
    %v667 = vsel %vm411, 1, 0
    %v668 = vsel %vm412, 1, 0
    %v669 = vsel %vm413, 1, 0
    %v670 = vsel %vm414, 1, 0
    %v671 = vsel %vm415, 1, 0
    %v672 = vsel %vm416, 1, 0
    %v673 = vsel %vm417, 1, 0
    %v674 = vsel %vm418, 1, 0
    %v675 = vsel %vm419, 1, 0
    %v676 = vsel %vm420, 1, 0
    %v677 = vsel %vm421, 1, 0
    %v678 = vsel %vm422, 1, 0
    %v679 = vsel %vm423, 1, 0
    %v680 = vsel %vm424, 1, 0
    %v681 = vsel %vm425, 1, 0
    %v682 = vsel %vm426, 1, 0
    %v683 = vsel %vm427, 1, 0
    %v684 = vsel %vm428, 1, 0
    %v685 = vsel %vm429, 1, 0
    %v686 = vsel %vm430, 1, 0
    %v687 = vsel %vm431, 1, 0
    %v688 = vsel %vm432, 1, 0
    %v689 = vsel %vm433, 1, 0
    %v690 = vsel %vm434, 1, 0
    %v691 = vsel %vm435, 1, 0
    %v692 = vsel %vm436, 1, 0
    %v693 = vsel %vm437, 1, 0
    %v694 = vsel %vm438, 1, 0
    %v695 = vcvt.s32.f32 %v439
    %v696 = vcvt.s32.f32 %v440
    %v697 = vcvt.s32.f32 %v441
    %v698 = vcvt.s32.f32 %v442
    %v699 = vcvt.s32.f32 %v443
    %v700 = vcvt.s32.f32 %v444
    %v701 = vcvt.s32.f32 %v445
    %v702 = vcvt.s32.f32 %v446
    %v703 = vcvt.s32.f32 %v447
    %v704 = vcvt.s32.f32 %v448
    %v705 = vcvt.s32.f32 %v449
    %v706 = vcvt.s32.f32 %v450
    %v707 = vcvt.s32.f32 %v451
    %v708 = vcvt.s32.f32 %v452
    %v709 = vcvt.s32.f32 %v453
    %v710 = vcvt.s32.f32 %v454
    %v711 = vcvt.s32.f32 %v455
    %v712 = vcvt.s32.f32 %v456
    %v713 = vcvt.s32.f32 %v457
    %v714 = vcvt.s32.f32 %v458
    %v715 = vcvt.s32.f32 %v459
    %v716 = vcvt.s32.f32 %v460
    %v717 = vcvt.s32.f32 %v461
    %v718 = vcvt.s32.f32 %v462
    %v719 = vcvt.s32.f32 %v463
    %v720 = vcvt.s32.f32 %v464
    %v721 = vcvt.s32.f32 %v465
    %v722 = vcvt.s32.f32 %v466
    %v723 = vcvt.s32.f32 %v467
    %v724 = vcvt.s32.f32 %v468
    %v725 = vcvt.s32.f32 %v469
    %v726 = vcvt.s32.f32 %v470
    %v727 = vcvt.s32.f32 %v471
    %v728 = vcvt.s32.f32 %v472
    %v729 = vcvt.s32.f32 %v473
    %v730 = vcvt.s32.f32 %v474
    %v731 = vcvt.s32.f32 %v475
    %v732 = vcvt.s32.f32 %v476
    %v733 = vcvt.s32.f32 %v477
    %v734 = vcvt.s32.f32 %v478
    %v735 = vcvt.s32.f32 %v479
    %v736 = vcvt.s32.f32 %v480
    %v737 = vcvt.s32.f32 %v481
    %v738 = vcvt.s32.f32 %v482
    %v739 = vcvt.s32.f32 %v483
    %v740 = vcvt.s32.f32 %v484
    %v741 = vcvt.s32.f32 %v485
    %v742 = vcvt.s32.f32 %v486
    %v743 = vcvt.s32.f32 %v487
    %v744 = vcvt.s32.f32 %v488
    %v745 = vcvt.s32.f32 %v489
    %v746 = vcvt.s32.f32 %v490
    %v747 = vcvt.s32.f32 %v491
    %v748 = vcvt.s32.f32 %v492
    %v749 = vcvt.s32.f32 %v493
    %v750 = vcvt.s32.f32 %v494
    %v751 = vcvt.s32.f32 %v495
    %v752 = vcvt.s32.f32 %v496
    %v753 = vcvt.s32.f32 %v497
    %v754 = vcvt.s32.f32 %v498
    %v755 = vcvt.s32.f32 %v499
    %v756 = vcvt.s32.f32 %v500
    %v757 = vcvt.s32.f32 %v501
    %v758 = vcvt.s32.f32 %v502
    %v759 = vcvt.s32.f32 %v503
    %v760 = vcvt.s32.f32 %v504
    %v761 = vcvt.s32.f32 %v505
    %v762 = vcvt.s32.f32 %v506
    %v763 = vcvt.s32.f32 %v507
    %v764 = vcvt.s32.f32 %v508
    %v765 = vcvt.s32.f32 %v509
    %v766 = vcvt.s32.f32 %v510
    %v767 = vcvt.s32.f32 %v511
    %v768 = vcvt.s32.f32 %v512
    %v769 = vcvt.s32.f32 %v513
    %v770 = vcvt.s32.f32 %v514
    %v771 = vcvt.s32.f32 %v515
    %v772 = vcvt.s32.f32 %v516
    %v773 = vcvt.s32.f32 %v517
    %v774 = vcvt.s32.f32 %v518
    %v775 = vcvt.s32.f32 %v519
    %v776 = vcvt.s32.f32 %v520
    %v777 = vcvt.s32.f32 %v521
    %v778 = vcvt.s32.f32 %v522
    %v779 = vcvt.s32.f32 %v523
    %v780 = vcvt.s32.f32 %v524
    %v781 = vcvt.s32.f32 %v525
    %v782 = vcvt.s32.f32 %v526
    %v783 = vcvt.s32.f32 %v527
    %v784 = vcvt.s32.f32 %v528
    %v785 = vcvt.s32.f32 %v529
    %v786 = vcvt.s32.f32 %v530
    %v787 = vcvt.s32.f32 %v531
    %v788 = vcvt.s32.f32 %v532
    %v789 = vcvt.s32.f32 %v533
    %v790 = vcvt.s32.f32 %v534
    %v791 = vcvt.s32.f32 %v535
    %v792 = vcvt.s32.f32 %v536
    %v793 = vcvt.s32.f32 %v537
    %v794 = vcvt.s32.f32 %v538
    %v795 = vcvt.s32.f32 %v539
    %v796 = vcvt.s32.f32 %v540
    %v797 = vcvt.s32.f32 %v541
    %v798 = vcvt.s32.f32 %v542
    %v799 = vcvt.s32.f32 %v543
    %v800 = vcvt.s32.f32 %v544
    %v801 = vcvt.s32.f32 %v545
    %v802 = vcvt.s32.f32 %v546
    %v803 = vcvt.s32.f32 %v547
    %v804 = vcvt.s32.f32 %v548
    %v805 = vcvt.s32.f32 %v549
    %v806 = vcvt.s32.f32 %v550
    %v807 = vcvt.s32.f32 %v551
    %v808 = vcvt.s32.f32 %v552
    %v809 = vcvt.s32.f32 %v553
    %v810 = vcvt.s32.f32 %v554
    %v811 = vcvt.s32.f32 %v555
    %v812 = vcvt.s32.f32 %v556
    %v813 = vcvt.s32.f32 %v557
    %v814 = vcvt.s32.f32 %v558
    %v815 = vcvt.s32.f32 %v559
    %v816 = vcvt.s32.f32 %v560
    %v817 = vcvt.s32.f32 %v561
    %v818 = vcvt.s32.f32 %v562
    %v819 = vcvt.s32.f32 %v563
    %v820 = vcvt.s32.f32 %v564
    %v821 = vcvt.s32.f32 %v565
    %v822 = vcvt.s32.f32 %v566
    %v823 = vcvt.s32.f32 %v567
    %v824 = vcvt.s32.f32 %v568
    %v825 = vcvt.s32.f32 %v569
    %v826 = vcvt.s32.f32 %v570
    %v827 = vcvt.s32.f32 %v571
    %v828 = vcvt.s32.f32 %v572
    %v829 = vcvt.s32.f32 %v573
    %v830 = vcvt.s32.f32 %v574
    %v831 = vcvt.s32.f32 %v575
    %v832 = vcvt.s32.f32 %v576
    %v833 = vcvt.s32.f32 %v577
    %v834 = vcvt.s32.f32 %v578
    %v835 = vcvt.s32.f32 %v579
    %v836 = vcvt.s32.f32 %v580
    %v837 = vcvt.s32.f32 %v581
    %v838 = vcvt.s32.f32 %v582
    %v839 = vcvt.s32.f32 %v583
    %v840 = vcvt.s32.f32 %v584
    %v841 = vcvt.s32.f32 %v585
    %v842 = vcvt.s32.f32 %v586
    %v843 = vcvt.s32.f32 %v587
    %v844 = vcvt.s32.f32 %v588
    %v845 = vcvt.s32.f32 %v589
    %v846 = vcvt.s32.f32 %v590
    %v847 = vcvt.s32.f32 %v591
    %v848 = vcvt.s32.f32 %v592
    %v849 = vcvt.s32.f32 %v593
    %v850 = vcvt.s32.f32 %v594
    %v851 = vcvt.s32.f32 %v595
    %v852 = vcvt.s32.f32 %v596
    %v853 = vcvt.s32.f32 %v597
    %v854 = vcvt.s32.f32 %v598
    %v855 = vcvt.s32.f32 %v599
    %v856 = vcvt.s32.f32 %v600
    %v857 = vcvt.s32.f32 %v601
    %v858 = vcvt.s32.f32 %v602
    %v859 = vcvt.s32.f32 %v603
    %v860 = vcvt.s32.f32 %v604
    %v861 = vcvt.s32.f32 %v605
    %v862 = vcvt.s32.f32 %v606
    %v863 = vcvt.s32.f32 %v607
    %v864 = vcvt.s32.f32 %v608
    %v865 = vcvt.s32.f32 %v609
    %v866 = vcvt.s32.f32 %v610
    %v867 = vcvt.s32.f32 %v611
    %v868 = vcvt.s32.f32 %v612
    %v869 = vcvt.s32.f32 %v613
    %v870 = vcvt.s32.f32 %v614
    %v871 = vcvt.s32.f32 %v615
    %v872 = vcvt.s32.f32 %v616
    %v873 = vcvt.s32.f32 %v617
    %v874 = vcvt.s32.f32 %v618
    %v875 = vcvt.s32.f32 %v619
    %v876 = vcvt.s32.f32 %v620
    %v877 = vcvt.s32.f32 %v621
    %v878 = vcvt.s32.f32 %v622
    %v879 = vcvt.s32.f32 %v623
    %v880 = vcvt.s32.f32 %v624
    %v881 = vcvt.s32.f32 %v625
    %v882 = vcvt.s32.f32 %v626
    %v883 = vcvt.s32.f32 %v627
    %v884 = vcvt.s32.f32 %v628
    %v885 = vcvt.s32.f32 %v629
    %v886 = vcvt.s32.f32 %v630
    %v887 = vcvt.s32.f32 %v631
    %v888 = vcvt.s32.f32 %v632
    %v889 = vcvt.s32.f32 %v633
    %v890 = vcvt.s32.f32 %v634
    %v891 = vcvt.s32.f32 %v635
    %v892 = vcvt.s32.f32 %v636
    %v893 = vcvt.s32.f32 %v637
    %v894 = vcvt.s32.f32 %v638
    %v895 = vcvt.s32.f32 %v639
    %v896 = vcvt.s32.f32 %v640
    %v897 = vcvt.s32.f32 %v641
    %v898 = vcvt.s32.f32 %v642
    %v899 = vcvt.s32.f32 %v643
    %v900 = vcvt.s32.f32 %v644
    %v901 = vcvt.s32.f32 %v645
    %v902 = vcvt.s32.f32 %v646
    %v903 = vcvt.s32.f32 %v647
    %v904 = vcvt.s32.f32 %v648
    %v905 = vcvt.s32.f32 %v649
    %v906 = vcvt.s32.f32 %v650
    %v907 = vcvt.s32.f32 %v651
    %v908 = vcvt.s32.f32 %v652
    %v909 = vcvt.s32.f32 %v653
    %v910 = vcvt.s32.f32 %v654
    %v911 = vcvt.s32.f32 %v655
    %v912 = vcvt.s32.f32 %v656
    %v913 = vcvt.s32.f32 %v657
    %v914 = vcvt.s32.f32 %v658
    %v915 = vcvt.s32.f32 %v659
    %v916 = vcvt.s32.f32 %v660
    %v917 = vcvt.s32.f32 %v661
    %v918 = vcvt.s32.f32 %v662
    %v919 = vcvt.s32.f32 %v663
    %v920 = vcvt.s32.f32 %v664
    %v921 = vcvt.s32.f32 %v665
    %v922 = vcvt.s32.f32 %v666
    %v923 = vcvt.s32.f32 %v667
    %v924 = vcvt.s32.f32 %v668
    %v925 = vcvt.s32.f32 %v669
    %v926 = vcvt.s32.f32 %v670
    %v927 = vcvt.s32.f32 %v671
    %v928 = vcvt.s32.f32 %v672
    %v929 = vcvt.s32.f32 %v673
    %v930 = vcvt.s32.f32 %v674
    %v931 = vcvt.s32.f32 %v675
    %v932 = vcvt.s32.f32 %v676
    %v933 = vcvt.s32.f32 %v677
    %v934 = vcvt.s32.f32 %v678
    %v935 = vcvt.s32.f32 %v679
    %v936 = vcvt.s32.f32 %v680
    %v937 = vcvt.s32.f32 %v681
    %v938 = vcvt.s32.f32 %v682
    %v939 = vcvt.s32.f32 %v683
    %v940 = vcvt.s32.f32 %v684
    %v941 = vcvt.s32.f32 %v685
    %v942 = vcvt.s32.f32 %v686
    %v943 = vcvt.s32.f32 %v687
    %v944 = vcvt.s32.f32 %v688
    %v945 = vcvt.s32.f32 %v689
    %v946 = vcvt.s32.f32 %v690
    %v947 = vcvt.s32.f32 %v691
    %v948 = vcvt.s32.f32 %v692
    %v949 = vcvt.s32.f32 %v693
    %v950 = vcvt.s32.f32 %v694
    %v951 = vpack.c.bf16 %v703, %v695
    %v952 = vpack.c.bf16 %v704, %v696
    %v953 = vpack.c.bf16 %v705, %v697
    %v954 = vpack.c.bf16 %v706, %v698
    %v955 = vpack.c.bf16 %v707, %v699
    %v956 = vpack.c.bf16 %v708, %v700
    %v957 = vpack.c.bf16 %v709, %v701
    %v958 = vpack.c.bf16 %v710, %v702
    %v959 = vpack.c.bf16 %v719, %v711
    %v960 = vpack.c.bf16 %v720, %v712
    %v961 = vpack.c.bf16 %v721, %v713
    %v962 = vpack.c.bf16 %v722, %v714
    %v963 = vpack.c.bf16 %v723, %v715
    %v964 = vpack.c.bf16 %v724, %v716
    %v965 = vpack.c.bf16 %v725, %v717
    %v966 = vpack.c.bf16 %v726, %v718
    %v967 = vpack.c.bf16 %v735, %v727
    %v968 = vpack.c.bf16 %v736, %v728
    %v969 = vpack.c.bf16 %v737, %v729
    %v970 = vpack.c.bf16 %v738, %v730
    %v971 = vpack.c.bf16 %v739, %v731
    %v972 = vpack.c.bf16 %v740, %v732
    %v973 = vpack.c.bf16 %v741, %v733
    %v974 = vpack.c.bf16 %v742, %v734
    %v975 = vpack.c.bf16 %v751, %v743
    %v976 = vpack.c.bf16 %v752, %v744
    %v977 = vpack.c.bf16 %v753, %v745
    %v978 = vpack.c.bf16 %v754, %v746
    %v979 = vpack.c.bf16 %v755, %v747
    %v980 = vpack.c.bf16 %v756, %v748
    %v981 = vpack.c.bf16 %v757, %v749
    %v982 = vpack.c.bf16 %v758, %v750
    %v983 = vpack.c.bf16 %v767, %v759
    %v984 = vpack.c.bf16 %v768, %v760
    %v985 = vpack.c.bf16 %v769, %v761
    %v986 = vpack.c.bf16 %v770, %v762
    %v987 = vpack.c.bf16 %v771, %v763
    %v988 = vpack.c.bf16 %v772, %v764
    %v989 = vpack.c.bf16 %v773, %v765
    %v990 = vpack.c.bf16 %v774, %v766
    %v991 = vpack.c.bf16 %v783, %v775
    %v992 = vpack.c.bf16 %v784, %v776
    %v993 = vpack.c.bf16 %v785, %v777
    %v994 = vpack.c.bf16 %v786, %v778
    %v995 = vpack.c.bf16 %v787, %v779
    %v996 = vpack.c.bf16 %v788, %v780
    %v997 = vpack.c.bf16 %v789, %v781
    %v998 = vpack.c.bf16 %v790, %v782
    %v999 = vpack.c.bf16 %v799, %v791
    %v1000 = vpack.c.bf16 %v800, %v792
    %v1001 = vpack.c.bf16 %v801, %v793
    %v1002 = vpack.c.bf16 %v802, %v794
    %v1003 = vpack.c.bf16 %v803, %v795
    %v1004 = vpack.c.bf16 %v804, %v796
    %v1005 = vpack.c.bf16 %v805, %v797
    %v1006 = vpack.c.bf16 %v806, %v798
    %v1007 = vpack.c.bf16 %v815, %v807
    %v1008 = vpack.c.bf16 %v816, %v808
    %v1009 = vpack.c.bf16 %v817, %v809
    %v1010 = vpack.c.bf16 %v818, %v810
    %v1011 = vpack.c.bf16 %v819, %v811
    %v1012 = vpack.c.bf16 %v820, %v812
    %v1013 = vpack.c.bf16 %v821, %v813
    %v1014 = vpack.c.bf16 %v822, %v814
    %v1015 = vpack.c.bf16 %v831, %v823
    %v1016 = vpack.c.bf16 %v832, %v824
    %v1017 = vpack.c.bf16 %v833, %v825
    %v1018 = vpack.c.bf16 %v834, %v826
    %v1019 = vpack.c.bf16 %v835, %v827
    %v1020 = vpack.c.bf16 %v836, %v828
    %v1021 = vpack.c.bf16 %v837, %v829
    %v1022 = vpack.c.bf16 %v838, %v830
    %v1023 = vpack.c.bf16 %v847, %v839
    %v1024 = vpack.c.bf16 %v848, %v840
    %v1025 = vpack.c.bf16 %v849, %v841
    %v1026 = vpack.c.bf16 %v850, %v842
    %v1027 = vpack.c.bf16 %v851, %v843
    %v1028 = vpack.c.bf16 %v852, %v844
    %v1029 = vpack.c.bf16 %v853, %v845
    %v1030 = vpack.c.bf16 %v854, %v846
    %v1031 = vpack.c.bf16 %v863, %v855
    %v1032 = vpack.c.bf16 %v864, %v856
    %v1033 = vpack.c.bf16 %v865, %v857
    %v1034 = vpack.c.bf16 %v866, %v858
    %v1035 = vpack.c.bf16 %v867, %v859
    %v1036 = vpack.c.bf16 %v868, %v860
    %v1037 = vpack.c.bf16 %v869, %v861
    %v1038 = vpack.c.bf16 %v870, %v862
    %v1039 = vpack.c.bf16 %v879, %v871
    %v1040 = vpack.c.bf16 %v880, %v872
    %v1041 = vpack.c.bf16 %v881, %v873
    %v1042 = vpack.c.bf16 %v882, %v874
    %v1043 = vpack.c.bf16 %v883, %v875
    %v1044 = vpack.c.bf16 %v884, %v876
    %v1045 = vpack.c.bf16 %v885, %v877
    %v1046 = vpack.c.bf16 %v886, %v878
    %v1047 = vpack.c.bf16 %v895, %v887
    %v1048 = vpack.c.bf16 %v896, %v888
    %v1049 = vpack.c.bf16 %v897, %v889
    %v1050 = vpack.c.bf16 %v898, %v890
    %v1051 = vpack.c.bf16 %v899, %v891
    %v1052 = vpack.c.bf16 %v900, %v892
    %v1053 = vpack.c.bf16 %v901, %v893
    %v1054 = vpack.c.bf16 %v902, %v894
    %v1055 = vpack.c.bf16 %v911, %v903
    %v1056 = vpack.c.bf16 %v912, %v904
    %v1057 = vpack.c.bf16 %v913, %v905
    %v1058 = vpack.c.bf16 %v914, %v906
    %v1059 = vpack.c.bf16 %v915, %v907
    %v1060 = vpack.c.bf16 %v916, %v908
    %v1061 = vpack.c.bf16 %v917, %v909
    %v1062 = vpack.c.bf16 %v918, %v910
    %v1063 = vpack.c.bf16 %v927, %v919
    %v1064 = vpack.c.bf16 %v928, %v920
    %v1065 = vpack.c.bf16 %v929, %v921
    %v1066 = vpack.c.bf16 %v930, %v922
    %v1067 = vpack.c.bf16 %v931, %v923
    %v1068 = vpack.c.bf16 %v932, %v924
    %v1069 = vpack.c.bf16 %v933, %v925
    %v1070 = vpack.c.bf16 %v934, %v926
    %v1071 = vpack.c.bf16 %v943, %v935
    %v1072 = vpack.c.bf16 %v944, %v936
    %v1073 = vpack.c.bf16 %v945, %v937
    %v1074 = vpack.c.bf16 %v946, %v938
    %v1075 = vpack.c.bf16 %v947, %v939
    %v1076 = vpack.c.bf16 %v948, %v940
    %v1077 = vpack.c.bf16 %v949, %v941
    %v1078 = vpack.c.bf16 %v950, %v942
    %v1079 = vld [vmem:[%s1] sm:$0xff]
    %v1080 = vld [vmem:[%s1 + $0x8] sm:$0xff]
    %v1081 = vld [vmem:[%s1 + $0x10] sm:$0xff]
    %v1082 = vld [vmem:[%s1 + $0x18] sm:$0xff]
    %v1083 = vld [vmem:[%s1 + $0x20] sm:$0xff]
    %v1084 = vld [vmem:[%s1 + $0x28] sm:$0xff]
    %v1085 = vld [vmem:[%s1 + $0x30] sm:$0xff]
    %v1086 = vld [vmem:[%s1 + $0x38] sm:$0xff]
    %v1087 = vld [vmem:[%s1 + $0x40] sm:$0xff]
    %v1088 = vld [vmem:[%s1 + $0x48] sm:$0xff]
    %v1089 = vld [vmem:[%s1 + $0x50] sm:$0xff]
    %v1090 = vld [vmem:[%s1 + $0x58] sm:$0xff]
    %v1091 = vld [vmem:[%s1 + $0x60] sm:$0xff]
    %v1092 = vld [vmem:[%s1 + $0x68] sm:$0xff]
    %v1093 = vld [vmem:[%s1 + $0x70] sm:$0xff]
    %v1094 = vld [vmem:[%s1 + $0x78] sm:$0xff]
    %v1095 = vld [vmem:[%s1 + $0x80] sm:$0xff]
    %v1096 = vld [vmem:[%s1 + $0x88] sm:$0xff]
    %v1097 = vld [vmem:[%s1 + $0x90] sm:$0xff]
    %v1098 = vld [vmem:[%s1 + $0x98] sm:$0xff]
    %v1099 = vld [vmem:[%s1 + $0xa0] sm:$0xff]
    %v1100 = vld [vmem:[%s1 + $0xa8] sm:$0xff]
    %v1101 = vld [vmem:[%s1 + $0xb0] sm:$0xff]
    %v1102 = vld [vmem:[%s1 + $0xb8] sm:$0xff]
    %v1103 = vld [vmem:[%s1 + $0xc0] sm:$0xff]
    %v1104 = vld [vmem:[%s1 + $0xc8] sm:$0xff]
    %v1105 = vld [vmem:[%s1 + $0xd0] sm:$0xff]
    %v1106 = vld [vmem:[%s1 + $0xd8] sm:$0xff]
    %v1107 = vld [vmem:[%s1 + $0xe0] sm:$0xff]
    %v1108 = vld [vmem:[%s1 + $0xe8] sm:$0xff]
    %v1109 = vld [vmem:[%s1 + $0xf0] sm:$0xff]
    %v1110 = vld [vmem:[%s1 + $0xf8] sm:$0xff]
    %v1111 = vld [vmem:[%s1 + $0x100] sm:$0xff]
    %v1112 = vld [vmem:[%s1 + $0x108] sm:$0xff]
    %v1113 = vld [vmem:[%s1 + $0x110] sm:$0xff]
    %v1114 = vld [vmem:[%s1 + $0x118] sm:$0xff]
    %v1115 = vld [vmem:[%s1 + $0x120] sm:$0xff]
    %v1116 = vld [vmem:[%s1 + $0x128] sm:$0xff]
    %v1117 = vld [vmem:[%s1 + $0x130] sm:$0xff]
    %v1118 = vld [vmem:[%s1 + $0x138] sm:$0xff]
    %v1119 = vld [vmem:[%s1 + $0x140] sm:$0xff]
    %v1120 = vld [vmem:[%s1 + $0x148] sm:$0xff]
    %v1121 = vld [vmem:[%s1 + $0x150] sm:$0xff]
    %v1122 = vld [vmem:[%s1 + $0x158] sm:$0xff]
    %v1123 = vld [vmem:[%s1 + $0x160] sm:$0xff]
    %v1124 = vld [vmem:[%s1 + $0x168] sm:$0xff]
    %v1125 = vld [vmem:[%s1 + $0x170] sm:$0xff]
    %v1126 = vld [vmem:[%s1 + $0x178] sm:$0xff]
    %v1127 = vld [vmem:[%s1 + $0x180] sm:$0xff]
    %v1128 = vld [vmem:[%s1 + $0x188] sm:$0xff]
    %v1129 = vld [vmem:[%s1 + $0x190] sm:$0xff]
    %v1130 = vld [vmem:[%s1 + $0x198] sm:$0xff]
    %v1131 = vld [vmem:[%s1 + $0x1a0] sm:$0xff]
    %v1132 = vld [vmem:[%s1 + $0x1a8] sm:$0xff]
    %v1133 = vld [vmem:[%s1 + $0x1b0] sm:$0xff]
    %v1134 = vld [vmem:[%s1 + $0x1b8] sm:$0xff]
    %v1135 = vld [vmem:[%s1 + $0x1c0] sm:$0xff]
    %v1136 = vld [vmem:[%s1 + $0x1c8] sm:$0xff]
    %v1137 = vld [vmem:[%s1 + $0x1d0] sm:$0xff]
    %v1138 = vld [vmem:[%s1 + $0x1d8] sm:$0xff]
    %v1139 = vld [vmem:[%s1 + $0x1e0] sm:$0xff]
    %v1140 = vld [vmem:[%s1 + $0x1e8] sm:$0xff]
    %v1141 = vld [vmem:[%s1 + $0x1f0] sm:$0xff]
    %v1142 = vld [vmem:[%s1 + $0x1f8] sm:$0xff]
    %v1143 = vld [vmem:[%s1 + $0x200] sm:$0xff]
    %v1144 = vld [vmem:[%s1 + $0x208] sm:$0xff]
    %v1145 = vld [vmem:[%s1 + $0x210] sm:$0xff]
    %v1146 = vld [vmem:[%s1 + $0x218] sm:$0xff]
    %v1147 = vld [vmem:[%s1 + $0x220] sm:$0xff]
    %v1148 = vld [vmem:[%s1 + $0x228] sm:$0xff]
    %v1149 = vld [vmem:[%s1 + $0x230] sm:$0xff]
    %v1150 = vld [vmem:[%s1 + $0x238] sm:$0xff]
    %v1151 = vld [vmem:[%s1 + $0x240] sm:$0xff]
    %v1152 = vld [vmem:[%s1 + $0x248] sm:$0xff]
    %v1153 = vld [vmem:[%s1 + $0x250] sm:$0xff]
    %v1154 = vld [vmem:[%s1 + $0x258] sm:$0xff]
    %v1155 = vld [vmem:[%s1 + $0x260] sm:$0xff]
    %v1156 = vld [vmem:[%s1 + $0x268] sm:$0xff]
    %v1157 = vld [vmem:[%s1 + $0x270] sm:$0xff]
    %v1158 = vld [vmem:[%s1 + $0x278] sm:$0xff]
    %v1159 = vld [vmem:[%s1 + $0x280] sm:$0xff]
    %v1160 = vld [vmem:[%s1 + $0x288] sm:$0xff]
    %v1161 = vld [vmem:[%s1 + $0x290] sm:$0xff]
    %v1162 = vld [vmem:[%s1 + $0x298] sm:$0xff]
    %v1163 = vld [vmem:[%s1 + $0x2a0] sm:$0xff]
    %v1164 = vld [vmem:[%s1 + $0x2a8] sm:$0xff]
    %v1165 = vld [vmem:[%s1 + $0x2b0] sm:$0xff]
    %v1166 = vld [vmem:[%s1 + $0x2b8] sm:$0xff]
    %v1167 = vld [vmem:[%s1 + $0x2c0] sm:$0xff]
    %v1168 = vld [vmem:[%s1 + $0x2c8] sm:$0xff]
    %v1169 = vld [vmem:[%s1 + $0x2d0] sm:$0xff]
    %v1170 = vld [vmem:[%s1 + $0x2d8] sm:$0xff]
    %v1171 = vld [vmem:[%s1 + $0x2e0] sm:$0xff]
    %v1172 = vld [vmem:[%s1 + $0x2e8] sm:$0xff]
    %v1173 = vld [vmem:[%s1 + $0x2f0] sm:$0xff]
    %v1174 = vld [vmem:[%s1 + $0x2f8] sm:$0xff]
    %v1175 = vld [vmem:[%s1 + $0x300] sm:$0xff]
    %v1176 = vld [vmem:[%s1 + $0x308] sm:$0xff]
    %v1177 = vld [vmem:[%s1 + $0x310] sm:$0xff]
    %v1178 = vld [vmem:[%s1 + $0x318] sm:$0xff]
    %v1179 = vld [vmem:[%s1 + $0x320] sm:$0xff]
    %v1180 = vld [vmem:[%s1 + $0x328] sm:$0xff]
    %v1181 = vld [vmem:[%s1 + $0x330] sm:$0xff]
    %v1182 = vld [vmem:[%s1 + $0x338] sm:$0xff]
    %v1183 = vld [vmem:[%s1 + $0x340] sm:$0xff]
    %v1184 = vld [vmem:[%s1 + $0x348] sm:$0xff]
    %v1185 = vld [vmem:[%s1 + $0x350] sm:$0xff]
    %v1186 = vld [vmem:[%s1 + $0x358] sm:$0xff]
    %v1187 = vld [vmem:[%s1 + $0x360] sm:$0xff]
    %v1188 = vld [vmem:[%s1 + $0x368] sm:$0xff]
    %v1189 = vld [vmem:[%s1 + $0x370] sm:$0xff]
    %v1190 = vld [vmem:[%s1 + $0x378] sm:$0xff]
    %v1191 = vld [vmem:[%s1 + $0x380] sm:$0xff]
    %v1192 = vld [vmem:[%s1 + $0x388] sm:$0xff]
    %v1193 = vld [vmem:[%s1 + $0x390] sm:$0xff]
    %v1194 = vld [vmem:[%s1 + $0x398] sm:$0xff]
    %v1195 = vld [vmem:[%s1 + $0x3a0] sm:$0xff]
    %v1196 = vld [vmem:[%s1 + $0x3a8] sm:$0xff]
    %v1197 = vld [vmem:[%s1 + $0x3b0] sm:$0xff]
    %v1198 = vld [vmem:[%s1 + $0x3b8] sm:$0xff]
    %v1199 = vld [vmem:[%s1 + $0x3c0] sm:$0xff]
    %v1200 = vld [vmem:[%s1 + $0x3c8] sm:$0xff]
    %v1201 = vld [vmem:[%s1 + $0x3d0] sm:$0xff]
    %v1202 = vld [vmem:[%s1 + $0x3d8] sm:$0xff]
    %v1203 = vld [vmem:[%s1 + $0x3e0] sm:$0xff]
    %v1204 = vld [vmem:[%s1 + $0x3e8] sm:$0xff]
    %v1205 = vld [vmem:[%s1 + $0x3f0] sm:$0xff]
    %v1206 = vld [vmem:[%s1 + $0x3f8] sm:$0xff]
    %v1207 = vpack.c.bf16 %v1080, %v1079
    %v1208 = vpack.c.bf16 %v1082, %v1081
    %v1209 = vpack.c.bf16 %v1084, %v1083
    %v1210 = vpack.c.bf16 %v1086, %v1085
    %v1211 = vpack.c.bf16 %v1088, %v1087
    %v1212 = vpack.c.bf16 %v1090, %v1089
    %v1213 = vpack.c.bf16 %v1092, %v1091
    %v1214 = vpack.c.bf16 %v1094, %v1093
    %v1215 = vpack.c.bf16 %v1096, %v1095
    %v1216 = vpack.c.bf16 %v1098, %v1097
    %v1217 = vpack.c.bf16 %v1100, %v1099
    %v1218 = vpack.c.bf16 %v1102, %v1101
    %v1219 = vpack.c.bf16 %v1104, %v1103
    %v1220 = vpack.c.bf16 %v1106, %v1105
    %v1221 = vpack.c.bf16 %v1108, %v1107
    %v1222 = vpack.c.bf16 %v1110, %v1109
    %v1223 = vpack.c.bf16 %v1112, %v1111
    %v1224 = vpack.c.bf16 %v1114, %v1113
    %v1225 = vpack.c.bf16 %v1116, %v1115
    %v1226 = vpack.c.bf16 %v1118, %v1117
    %v1227 = vpack.c.bf16 %v1120, %v1119
    %v1228 = vpack.c.bf16 %v1122, %v1121
    %v1229 = vpack.c.bf16 %v1124, %v1123
    %v1230 = vpack.c.bf16 %v1126, %v1125
    %v1231 = vpack.c.bf16 %v1128, %v1127
    %v1232 = vpack.c.bf16 %v1130, %v1129
    %v1233 = vpack.c.bf16 %v1132, %v1131
    %v1234 = vpack.c.bf16 %v1134, %v1133
    %v1235 = vpack.c.bf16 %v1136, %v1135
    %v1236 = vpack.c.bf16 %v1138, %v1137
    %v1237 = vpack.c.bf16 %v1140, %v1139
    %v1238 = vpack.c.bf16 %v1142, %v1141
    %v1239 = vpack.c.bf16 %v1144, %v1143
    %v1240 = vpack.c.bf16 %v1146, %v1145
    %v1241 = vpack.c.bf16 %v1148, %v1147
    %v1242 = vpack.c.bf16 %v1150, %v1149
    %v1243 = vpack.c.bf16 %v1152, %v1151
    %v1244 = vpack.c.bf16 %v1154, %v1153
    %v1245 = vpack.c.bf16 %v1156, %v1155
    %v1246 = vpack.c.bf16 %v1158, %v1157
    %v1247 = vpack.c.bf16 %v1160, %v1159
    %v1248 = vpack.c.bf16 %v1162, %v1161
    %v1249 = vpack.c.bf16 %v1164, %v1163
    %v1250 = vpack.c.bf16 %v1166, %v1165
    %v1251 = vpack.c.bf16 %v1168, %v1167
    %v1252 = vpack.c.bf16 %v1170, %v1169
    %v1253 = vpack.c.bf16 %v1172, %v1171
    %v1254 = vpack.c.bf16 %v1174, %v1173
    %v1255 = vpack.c.bf16 %v1176, %v1175
    %v1256 = vpack.c.bf16 %v1178, %v1177
    %v1257 = vpack.c.bf16 %v1180, %v1179
    %v1258 = vpack.c.bf16 %v1182, %v1181
    %v1259 = vpack.c.bf16 %v1184, %v1183
    %v1260 = vpack.c.bf16 %v1186, %v1185
    %v1261 = vpack.c.bf16 %v1188, %v1187
    %v1262 = vpack.c.bf16 %v1190, %v1189
    %v1263 = vpack.c.bf16 %v1192, %v1191
    %v1264 = vpack.c.bf16 %v1194, %v1193
    %v1265 = vpack.c.bf16 %v1196, %v1195
    %v1266 = vpack.c.bf16 %v1198, %v1197
    %v1267 = vpack.c.bf16 %v1200, %v1199
    %v1268 = vpack.c.bf16 %v1202, %v1201
    %v1269 = vpack.c.bf16 %v1204, %v1203
    %v1270 = vpack.c.bf16 %v1206, %v1205
    %v1271 = vld [vmem:[#allocation2] sm:$0xff]
    %v1272 = vld [vmem:[#allocation2 + $0x8] sm:$0xff]
    %v1273 = vld [vmem:[#allocation2 + $0x10] sm:$0xff]
    %v1274 = vld [vmem:[#allocation2 + $0x18] sm:$0xff]
    %v1275 = vld [vmem:[#allocation2 + $0x20] sm:$0xff]
    %v1276 = vld [vmem:[#allocation2 + $0x28] sm:$0xff]
    %v1277 = vld [vmem:[#allocation2 + $0x30] sm:$0xff]
    %v1278 = vld [vmem:[#allocation2 + $0x38] sm:$0xff]
    %v1279 = vld [vmem:[#allocation2 + $0x40] sm:$0xff]
    %v1280 = vld [vmem:[#allocation2 + $0x48] sm:$0xff]
    %v1281 = vld [vmem:[#allocation2 + $0x50] sm:$0xff]
    %v1282 = vld [vmem:[#allocation2 + $0x58] sm:$0xff]
    %v1283 = vld [vmem:[#allocation2 + $0x60] sm:$0xff]
    %v1284 = vld [vmem:[#allocation2 + $0x68] sm:$0xff]
    %v1285 = vld [vmem:[#allocation2 + $0x70] sm:$0xff]
    %v1286 = vld [vmem:[#allocation2 + $0x78] sm:$0xff]
    %v1287 = vld [vmem:[#allocation2 + $0x80] sm:$0xff]
    %v1288 = vld [vmem:[#allocation2 + $0x88] sm:$0xff]
    %v1289 = vld [vmem:[#allocation2 + $0x90] sm:$0xff]
    %v1290 = vld [vmem:[#allocation2 + $0x98] sm:$0xff]
    %v1291 = vld [vmem:[#allocation2 + $0xa0] sm:$0xff]
    %v1292 = vld [vmem:[#allocation2 + $0xa8] sm:$0xff]
    %v1293 = vld [vmem:[#allocation2 + $0xb0] sm:$0xff]
    %v1294 = vld [vmem:[#allocation2 + $0xb8] sm:$0xff]
    %v1295 = vld [vmem:[#allocation2 + $0xc0] sm:$0xff]
    %v1296 = vld [vmem:[#allocation2 + $0xc8] sm:$0xff]
    %v1297 = vld [vmem:[#allocation2 + $0xd0] sm:$0xff]
    %v1298 = vld [vmem:[#allocation2 + $0xd8] sm:$0xff]
    %v1299 = vld [vmem:[#allocation2 + $0xe0] sm:$0xff]
    %v1300 = vld [vmem:[#allocation2 + $0xe8] sm:$0xff]
    %v1301 = vld [vmem:[#allocation2 + $0xf0] sm:$0xff]
    %v1302 = vld [vmem:[#allocation2 + $0xf8] sm:$0xff]
    %1303 = vmatprep.subr.bf16.mxu0 0
    %1304 = vmatpush1.bf16.msra.mxu0 %v1207
    %1305 = vmatprep.subr.bf16.mxu0 0
    %1306 = vmatpush1.bf16.msra.mxu0 %v1208
    %1307 = vmatprep.subr.bf16.mxu0 0
    %1308 = vmatpush1.bf16.msra.mxu0 %v1209
    %1309 = vmatprep.subr.bf16.mxu0 0
    %1310 = vmatpush1.bf16.msra.mxu0 %v1210
    %1311 = vmatprep.subr.bf16.mxu0 0
    %1312 = vmatpush1.bf16.msra.mxu0 %v1211
    %1313 = vmatprep.subr.bf16.mxu0 0
    %1314 = vmatpush1.bf16.msra.mxu0 %v1212
    %1315 = vmatprep.subr.bf16.mxu0 0
    %1316 = vmatpush1.bf16.msra.mxu0 %v1213
    %1317 = vmatprep.subr.bf16.mxu0 0
    %1318 = vmatpush1.bf16.msra.mxu0 %v1214
    %1319 = vmatprep.subr.bf16.mxu0 0
    %1320 = vmatpush1.bf16.msra.mxu0 %v1215
    %1321 = vmatprep.subr.bf16.mxu0 0
    %1322 = vmatpush1.bf16.msra.mxu0 %v1216
    %1323 = vmatprep.subr.bf16.mxu0 0
    %1324 = vmatpush1.bf16.msra.mxu0 %v1217
    %1325 = vmatprep.subr.bf16.mxu0 0
    %1326 = vmatpush1.bf16.msra.mxu0 %v1218
    %1327 = vmatprep.subr.bf16.mxu0 0
    %1328 = vmatpush1.bf16.msra.mxu0 %v1219
    %1329 = vmatprep.subr.bf16.mxu0 0
    %1330 = vmatpush1.bf16.msra.mxu0 %v1220
    %1331 = vmatprep.subr.bf16.mxu0 0
    %1332 = vmatpush1.bf16.msra.mxu0 %v1221
    %1333 = vmatprep.subr.bf16.mxu0 0
    %1334 = vmatpush1.bf16.msra.mxu0 %v1222
    %1335 = vmatprep.mubr.bf16.mxu0 %v952
    %1336 = vmatmul.mubr.bf16.gmra.mrb[0].mxu0 %v951
    %v1337 = vpop.f32.mrb[0].mxu0
    %v1338 = vadd.f32 0.0, %v1337
    %v1339 = vpop.f32.mrb[0].mxu0
    %v1340 = vpop.f32.mrb[0].mxu0
    %v1341 = vadd.f32 0.0, %v1340
    %v1342 = vpop.f32.mrb[0].mxu0
    %1343 = vmatprep.mubr.bf16.mxu0 %v960
    %1344 = vmatmul.mubr.bf16.gmra.mrb[0].mxu0 %v959
    %v1345 = vpop.f32.mrb[0].mxu0
    %v1346 = vadd.f32 0.0, %v1345
    %v1347 = vpop.f32.mrb[0].mxu0
    %v1348 = vpop.f32.mrb[0].mxu0
    %v1349 = vadd.f32 0.0, %v1348
    %v1350 = vpop.f32.mrb[0].mxu0
    %1351 = vmatprep.mubr.bf16.mxu0 %v968
    %1352 = vmatmul.mubr.bf16.gmra.mrb[0].mxu0 %v967
    %v1353 = vpop.f32.mrb[0].mxu0
    %v1354 = vadd.f32 0.0, %v1353
    %v1355 = vpop.f32.mrb[0].mxu0
    %v1356 = vpop.f32.mrb[0].mxu0
    %v1357 = vadd.f32 0.0, %v1356
    %v1358 = vpop.f32.mrb[0].mxu0
    %1359 = vmatprep.mubr.bf16.mxu0 %v976
    %1360 = vmatmul.mubr.bf16.gmra.mrb[0].mxu0 %v975
    %v1361 = vpop.f32.mrb[0].mxu0
    %v1362 = vadd.f32 0.0, %v1361
    %v1363 = vpop.f32.mrb[0].mxu0
    %v1364 = vpop.f32.mrb[0].mxu0
    %v1365 = vadd.f32 0.0, %v1364
    %v1366 = vpop.f32.mrb[0].mxu0
    %1367 = vmatprep.mubr.bf16.mxu0 %v984
    %1368 = vmatmul.mubr.bf16.gmra.mrb[0].mxu0 %v983
    %v1369 = vpop.f32.mrb[0].mxu0
    %v1370 = vadd.f32 0.0, %v1369
    %v1371 = vpop.f32.mrb[0].mxu0
    %v1372 = vpop.f32.mrb[0].mxu0
    %v1373 = vadd.f32 0.0, %v1372
    %v1374 = vpop.f32.mrb[0].mxu0
    %1375 = vmatprep.mubr.bf16.mxu0 %v992
    %1376 = vmatmul.mubr.bf16.gmra.mrb[0].mxu0 %v991
    %v1377 = vpop.f32.mrb[0].mxu0
    %v1378 = vadd.f32 0.0, %v1377
    %v1379 = vpop.f32.mrb[0].mxu0
    %v1380 = vpop.f32.mrb[0].mxu0
    %v1381 = vadd.f32 0.0, %v1380
    %v1382 = vpop.f32.mrb[0].mxu0
    %1383 = vmatprep.mubr.bf16.mxu0 %v1000
    %1384 = vmatmul.mubr.bf16.gmra.mrb[0].mxu0 %v999
    %v1385 = vpop.f32.mrb[0].mxu0
    %v1386 = vadd.f32 0.0, %v1385
    %v1387 = vpop.f32.mrb[0].mxu0
    %v1388 = vpop.f32.mrb[0].mxu0
    %v1389 = vadd.f32 0.0, %v1388
    %v1390 = vpop.f32.mrb[0].mxu0
    %1391 = vmatprep.mubr.bf16.mxu0 %v1008
    %1392 = vmatmul.mubr.bf16.gmra.mrb[0].mxu0 %v1007
    %v1393 = vpop.f32.mrb[0].mxu0
    %v1394 = vadd.f32 0.0, %v1393
    %v1395 = vpop.f32.mrb[0].mxu0
    %v1396 = vpop.f32.mrb[0].mxu0
    %v1397 = vadd.f32 0.0, %v1396
    %v1398 = vpop.f32.mrb[0].mxu0
    %1399 = vmatprep.mubr.bf16.mxu0 %v1016
    %1400 = vmatmul.mubr.bf16.gmra.mrb[0].mxu0 %v1015
    %v1401 = vpop.f32.mrb[0].mxu0
    %v1402 = vadd.f32 0.0, %v1401
    %v1403 = vpop.f32.mrb[0].mxu0
    %v1404 = vpop.f32.mrb[0].mxu0
    %v1405 = vadd.f32 0.0, %v1404
    %v1406 = vpop.f32.mrb[0].mxu0
    %1407 = vmatprep.mubr.bf16.mxu0 %v1024
    %1408 = vmatmul.mubr.bf16.gmra.mrb[0].mxu0 %v1023
    %v1409 = vpop.f32.mrb[0].mxu0
    %v1410 = vadd.f32 0.0, %v1409
    %v1411 = vpop.f32.mrb[0].mxu0
    %v1412 = vpop.f32.mrb[0].mxu0
    %v1413 = vadd.f32 0.0, %v1412
    %v1414 = vpop.f32.mrb[0].mxu0
    %1415 = vmatprep.mubr.bf16.mxu0 %v1032
    %1416 = vmatmul.mubr.bf16.gmra.mrb[0].mxu0 %v1031
    %v1417 = vpop.f32.mrb[0].mxu0
    %v1418 = vadd.f32 0.0, %v1417
    %v1419 = vpop.f32.mrb[0].mxu0
    %v1420 = vpop.f32.mrb[0].mxu0
    %v1421 = vadd.f32 0.0, %v1420
    %v1422 = vpop.f32.mrb[0].mxu0
    %1423 = vmatprep.mubr.bf16.mxu0 %v1040
    %1424 = vmatmul.mubr.bf16.gmra.mrb[0].mxu0 %v1039
    %v1425 = vpop.f32.mrb[0].mxu0
    %v1426 = vadd.f32 0.0, %v1425
    %v1427 = vpop.f32.mrb[0].mxu0
    %v1428 = vpop.f32.mrb[0].mxu0
    %v1429 = vadd.f32 0.0, %v1428
    %v1430 = vpop.f32.mrb[0].mxu0
    %1431 = vmatprep.mubr.bf16.mxu0 %v1048
    %1432 = vmatmul.mubr.bf16.gmra.mrb[0].mxu0 %v1047
    %v1433 = vpop.f32.mrb[0].mxu0
    %v1434 = vadd.f32 0.0, %v1433
    %v1435 = vpop.f32.mrb[0].mxu0
    %v1436 = vpop.f32.mrb[0].mxu0
    %v1437 = vadd.f32 0.0, %v1436
    %v1438 = vpop.f32.mrb[0].mxu0
    %1439 = vmatprep.mubr.bf16.mxu0 %v1056
    %1440 = vmatmul.mubr.bf16.gmra.mrb[0].mxu0 %v1055
    %v1441 = vpop.f32.mrb[0].mxu0
    %v1442 = vadd.f32 0.0, %v1441
    %v1443 = vpop.f32.mrb[0].mxu0
    %v1444 = vpop.f32.mrb[0].mxu0
    %v1445 = vadd.f32 0.0, %v1444
    %v1446 = vpop.f32.mrb[0].mxu0
    %1447 = vmatprep.mubr.bf16.mxu0 %v1064
    %1448 = vmatmul.mubr.bf16.gmra.mrb[0].mxu0 %v1063
    %v1449 = vpop.f32.mrb[0].mxu0
    %v1450 = vadd.f32 0.0, %v1449
    %v1451 = vpop.f32.mrb[0].mxu0
    %v1452 = vpop.f32.mrb[0].mxu0
    %v1453 = vadd.f32 0.0, %v1452
    %v1454 = vpop.f32.mrb[0].mxu0
    %1455 = vmatprep.mubr.bf16.mxu0 %v1072
    %1456 = vmatmul.mubr.bf16.gmra.mrb[0].mxu0 %v1071
    %v1457 = vpop.f32.mrb[0].mxu0
    %v1458 = vadd.f32 0.0, %v1457
    %v1459 = vpop.f32.mrb[0].mxu0
    %v1460 = vpop.f32.mrb[0].mxu0
    %v1461 = vadd.f32 0.0, %v1460
    %v1462 = vpop.f32.mrb[0].mxu0
    %1463 = vdwg.mxu0
    %1464 = vmatprep.subr.bf16.mxu0 0
    %1465 = vmatpush1.bf16.msra.mxu0 %v1223
    %1466 = vmatprep.subr.bf16.mxu0 0
    %1467 = vmatpush1.bf16.msra.mxu0 %v1224
    %1468 = vmatprep.subr.bf16.mxu0 0
    %1469 = vmatpush1.bf16.msra.mxu0 %v1225
    %1470 = vmatprep.subr.bf16.mxu0 0
    %1471 = vmatpush1.bf16.msra.mxu0 %v1226
    %1472 = vmatprep.subr.bf16.mxu0 0
    %1473 = vmatpush1.bf16.msra.mxu0 %v1227
    %1474 = vmatprep.subr.bf16.mxu0 0
    %1475 = vmatpush1.bf16.msra.mxu0 %v1228
    %1476 = vmatprep.subr.bf16.mxu0 0
    %1477 = vmatpush1.bf16.msra.mxu0 %v1229
    %1478 = vmatprep.subr.bf16.mxu0 0
    %1479 = vmatpush1.bf16.msra.mxu0 %v1230
    %1480 = vmatprep.subr.bf16.mxu0 0
    %1481 = vmatpush1.bf16.msra.mxu0 %v1231
    %1482 = vmatprep.subr.bf16.mxu0 0
    %1483 = vmatpush1.bf16.msra.mxu0 %v1232
    %1484 = vmatprep.subr.bf16.mxu0 0
    %1485 = vmatpush1.bf16.msra.mxu0 %v1233
    %1486 = vmatprep.subr.bf16.mxu0 0
    %1487 = vmatpush1.bf16.msra.mxu0 %v1234
    %1488 = vmatprep.subr.bf16.mxu0 0
    %1489 = vmatpush1.bf16.msra.mxu0 %v1235
    %1490 = vmatprep.subr.bf16.mxu0 0
    %1491 = vmatpush1.bf16.msra.mxu0 %v1236
    %1492 = vmatprep.subr.bf16.mxu0 0
    %1493 = vmatpush1.bf16.msra.mxu0 %v1237
    %1494 = vmatprep.subr.bf16.mxu0 0
    %1495 = vmatpush1.bf16.msra.mxu0 %v1238
    %1496 = vmatprep.mubr.bf16.mxu0 %v954
    %1497 = vmatmul.mubr.bf16.gmra.mrb[0].mxu0 %v953
    %v1498 = vpop.f32.mrb[0].mxu0
    %v1499 = vadd.f32 %v1338, %v1498
    %v1500 = vpop.f32.mrb[0].mxu0
    %v1501 = vpop.f32.mrb[0].mxu0
    %v1502 = vadd.f32 %v1341, %v1501
    %v1503 = vpop.f32.mrb[0].mxu0
    %1504 = vmatprep.mubr.bf16.mxu0 %v962
    %1505 = vmatmul.mubr.bf16.gmra.mrb[0].mxu0 %v961
    %v1506 = vpop.f32.mrb[0].mxu0
    %v1507 = vadd.f32 %v1346, %v1506
    %v1508 = vpop.f32.mrb[0].mxu0
    %v1509 = vpop.f32.mrb[0].mxu0
    %v1510 = vadd.f32 %v1349, %v1509
    %v1511 = vpop.f32.mrb[0].mxu0
    %1512 = vmatprep.mubr.bf16.mxu0 %v970
    %1513 = vmatmul.mubr.bf16.gmra.mrb[0].mxu0 %v969
    %v1514 = vpop.f32.mrb[0].mxu0
    %v1515 = vadd.f32 %v1354, %v1514
    %v1516 = vpop.f32.mrb[0].mxu0
    %v1517 = vpop.f32.mrb[0].mxu0
    %v1518 = vadd.f32 %v1357, %v1517
    %v1519 = vpop.f32.mrb[0].mxu0
    %1520 = vmatprep.mubr.bf16.mxu0 %v978
    %1521 = vmatmul.mubr.bf16.gmra.mrb[0].mxu0 %v977
    %v1522 = vpop.f32.mrb[0].mxu0
    %v1523 = vadd.f32 %v1362, %v1522
    %v1524 = vpop.f32.mrb[0].mxu0
    %v1525 = vpop.f32.mrb[0].mxu0
    %v1526 = vadd.f32 %v1365, %v1525
    %v1527 = vpop.f32.mrb[0].mxu0
    %1528 = vmatprep.mubr.bf16.mxu0 %v986
    %1529 = vmatmul.mubr.bf16.gmra.mrb[0].mxu0 %v985
    %v1530 = vpop.f32.mrb[0].mxu0
    %v1531 = vadd.f32 %v1370, %v1530
    %v1532 = vpop.f32.mrb[0].mxu0
    %v1533 = vpop.f32.mrb[0].mxu0
    %v1534 = vadd.f32 %v1373, %v1533
    %v1535 = vpop.f32.mrb[0].mxu0
    %1536 = vmatprep.mubr.bf16.mxu0 %v994
    %1537 = vmatmul.mubr.bf16.gmra.mrb[0].mxu0 %v993
    %v1538 = vpop.f32.mrb[0].mxu0
    %v1539 = vadd.f32 %v1378, %v1538
    %v1540 = vpop.f32.mrb[0].mxu0
    %v1541 = vpop.f32.mrb[0].mxu0
    %v1542 = vadd.f32 %v1381, %v1541
    %v1543 = vpop.f32.mrb[0].mxu0
    %1544 = vmatprep.mubr.bf16.mxu0 %v1002
    %1545 = vmatmul.mubr.bf16.gmra.mrb[0].mxu0 %v1001
    %v1546 = vpop.f32.mrb[0].mxu0
    %v1547 = vadd.f32 %v1386, %v1546
    %v1548 = vpop.f32.mrb[0].mxu0
    %v1549 = vpop.f32.mrb[0].mxu0
    %v1550 = vadd.f32 %v1389, %v1549
    %v1551 = vpop.f32.mrb[0].mxu0
    %1552 = vmatprep.mubr.bf16.mxu0 %v1010
    %1553 = vmatmul.mubr.bf16.gmra.mrb[0].mxu0 %v1009
    %v1554 = vpop.f32.mrb[0].mxu0
    %v1555 = vadd.f32 %v1394, %v1554
    %v1556 = vpop.f32.mrb[0].mxu0
    %v1557 = vpop.f32.mrb[0].mxu0
    %v1558 = vadd.f32 %v1397, %v1557
    %v1559 = vpop.f32.mrb[0].mxu0
    %1560 = vmatprep.mubr.bf16.mxu0 %v1018
    %1561 = vmatmul.mubr.bf16.gmra.mrb[0].mxu0 %v1017
    %v1562 = vpop.f32.mrb[0].mxu0
    %v1563 = vadd.f32 %v1402, %v1562
    %v1564 = vpop.f32.mrb[0].mxu0
    %v1565 = vpop.f32.mrb[0].mxu0
    %v1566 = vadd.f32 %v1405, %v1565
    %v1567 = vpop.f32.mrb[0].mxu0
    %1568 = vmatprep.mubr.bf16.mxu0 %v1026
    %1569 = vmatmul.mubr.bf16.gmra.mrb[0].mxu0 %v1025
    %v1570 = vpop.f32.mrb[0].mxu0
    %v1571 = vadd.f32 %v1410, %v1570
    %v1572 = vpop.f32.mrb[0].mxu0
    %v1573 = vpop.f32.mrb[0].mxu0
    %v1574 = vadd.f32 %v1413, %v1573
    %v1575 = vpop.f32.mrb[0].mxu0
    %1576 = vmatprep.mubr.bf16.mxu0 %v1034
    %1577 = vmatmul.mubr.bf16.gmra.mrb[0].mxu0 %v1033
    %v1578 = vpop.f32.mrb[0].mxu0
    %v1579 = vadd.f32 %v1418, %v1578
    %v1580 = vpop.f32.mrb[0].mxu0
    %v1581 = vpop.f32.mrb[0].mxu0
    %v1582 = vadd.f32 %v1421, %v1581
    %v1583 = vpop.f32.mrb[0].mxu0
    %1584 = vmatprep.mubr.bf16.mxu0 %v1042
    %1585 = vmatmul.mubr.bf16.gmra.mrb[0].mxu0 %v1041
    %v1586 = vpop.f32.mrb[0].mxu0
    %v1587 = vadd.f32 %v1426, %v1586
    %v1588 = vpop.f32.mrb[0].mxu0
    %v1589 = vpop.f32.mrb[0].mxu0
    %v1590 = vadd.f32 %v1429, %v1589
    %v1591 = vpop.f32.mrb[0].mxu0
    %1592 = vmatprep.mubr.bf16.mxu0 %v1050
    %1593 = vmatmul.mubr.bf16.gmra.mrb[0].mxu0 %v1049
    %v1594 = vpop.f32.mrb[0].mxu0
    %v1595 = vadd.f32 %v1434, %v1594
    %v1596 = vpop.f32.mrb[0].mxu0
    %v1597 = vpop.f32.mrb[0].mxu0
    %v1598 = vadd.f32 %v1437, %v1597
    %v1599 = vpop.f32.mrb[0].mxu0
    %1600 = vmatprep.mubr.bf16.mxu0 %v1058
    %1601 = vmatmul.mubr.bf16.gmra.mrb[0].mxu0 %v1057
    %v1602 = vpop.f32.mrb[0].mxu0
    %v1603 = vadd.f32 %v1442, %v1602
    %v1604 = vpop.f32.mrb[0].mxu0
    %v1605 = vpop.f32.mrb[0].mxu0
    %v1606 = vadd.f32 %v1445, %v1605
    %v1607 = vpop.f32.mrb[0].mxu0
    %1608 = vmatprep.mubr.bf16.mxu0 %v1066
    %1609 = vmatmul.mubr.bf16.gmra.mrb[0].mxu0 %v1065
    %v1610 = vpop.f32.mrb[0].mxu0
    %v1611 = vadd.f32 %v1450, %v1610
    %v1612 = vpop.f32.mrb[0].mxu0
    %v1613 = vpop.f32.mrb[0].mxu0
    %v1614 = vadd.f32 %v1453, %v1613
    %v1615 = vpop.f32.mrb[0].mxu0
    %1616 = vmatprep.mubr.bf16.mxu0 %v1074
    %1617 = vmatmul.mubr.bf16.gmra.mrb[0].mxu0 %v1073
    %v1618 = vpop.f32.mrb[0].mxu0
    %v1619 = vadd.f32 %v1458, %v1618
    %v1620 = vpop.f32.mrb[0].mxu0
    %v1621 = vpop.f32.mrb[0].mxu0
    %v1622 = vadd.f32 %v1461, %v1621
    %v1623 = vpop.f32.mrb[0].mxu0
    %1624 = vdwg.mxu0
    %1625 = vmatprep.subr.bf16.mxu0 0
    %1626 = vmatpush1.bf16.msra.mxu0 %v1239
    %1627 = vmatprep.subr.bf16.mxu0 0
    %1628 = vmatpush1.bf16.msra.mxu0 %v1240
    %1629 = vmatprep.subr.bf16.mxu0 0
    %1630 = vmatpush1.bf16.msra.mxu0 %v1241
    %1631 = vmatprep.subr.bf16.mxu0 0
    %1632 = vmatpush1.bf16.msra.mxu0 %v1242
    %1633 = vmatprep.subr.bf16.mxu0 0
    %1634 = vmatpush1.bf16.msra.mxu0 %v1243
    %1635 = vmatprep.subr.bf16.mxu0 0
    %1636 = vmatpush1.bf16.msra.mxu0 %v1244
    %1637 = vmatprep.subr.bf16.mxu0 0
    %1638 = vmatpush1.bf16.msra.mxu0 %v1245
    %1639 = vmatprep.subr.bf16.mxu0 0
    %1640 = vmatpush1.bf16.msra.mxu0 %v1246
    %1641 = vmatprep.subr.bf16.mxu0 0
    %1642 = vmatpush1.bf16.msra.mxu0 %v1247
    %1643 = vmatprep.subr.bf16.mxu0 0
    %1644 = vmatpush1.bf16.msra.mxu0 %v1248
    %1645 = vmatprep.subr.bf16.mxu0 0
    %1646 = vmatpush1.bf16.msra.mxu0 %v1249
    %1647 = vmatprep.subr.bf16.mxu0 0
    %1648 = vmatpush1.bf16.msra.mxu0 %v1250
    %1649 = vmatprep.subr.bf16.mxu0 0
    %1650 = vmatpush1.bf16.msra.mxu0 %v1251
    %1651 = vmatprep.subr.bf16.mxu0 0
    %1652 = vmatpush1.bf16.msra.mxu0 %v1252
    %1653 = vmatprep.subr.bf16.mxu0 0
    %1654 = vmatpush1.bf16.msra.mxu0 %v1253
    %1655 = vmatprep.subr.bf16.mxu0 0
    %1656 = vmatpush1.bf16.msra.mxu0 %v1254
    %1657 = vmatprep.mubr.bf16.mxu0 %v956
    %1658 = vmatmul.mubr.bf16.gmra.mrb[0].mxu0 %v955
    %v1659 = vpop.f32.mrb[0].mxu0
    %v1660 = vadd.f32 %v1499, %v1659
    %v1661 = vpop.f32.mrb[0].mxu0
    %v1662 = vpop.f32.mrb[0].mxu0
    %v1663 = vadd.f32 %v1502, %v1662
    %v1664 = vpop.f32.mrb[0].mxu0
    %1665 = vmatprep.mubr.bf16.mxu0 %v964
    %1666 = vmatmul.mubr.bf16.gmra.mrb[0].mxu0 %v963
    %v1667 = vpop.f32.mrb[0].mxu0
    %v1668 = vadd.f32 %v1507, %v1667
    %v1669 = vpop.f32.mrb[0].mxu0
    %v1670 = vpop.f32.mrb[0].mxu0
    %v1671 = vadd.f32 %v1510, %v1670
    %v1672 = vpop.f32.mrb[0].mxu0
    %1673 = vmatprep.mubr.bf16.mxu0 %v972
    %1674 = vmatmul.mubr.bf16.gmra.mrb[0].mxu0 %v971
    %v1675 = vpop.f32.mrb[0].mxu0
    %v1676 = vadd.f32 %v1515, %v1675
    %v1677 = vpop.f32.mrb[0].mxu0
    %v1678 = vpop.f32.mrb[0].mxu0
    %v1679 = vadd.f32 %v1518, %v1678
    %v1680 = vpop.f32.mrb[0].mxu0
    %1681 = vmatprep.mubr.bf16.mxu0 %v980
    %1682 = vmatmul.mubr.bf16.gmra.mrb[0].mxu0 %v979
    %v1683 = vpop.f32.mrb[0].mxu0
    %v1684 = vadd.f32 %v1523, %v1683
    %v1685 = vpop.f32.mrb[0].mxu0
    %v1686 = vpop.f32.mrb[0].mxu0
    %v1687 = vadd.f32 %v1526, %v1686
    %v1688 = vpop.f32.mrb[0].mxu0
    %1689 = vmatprep.mubr.bf16.mxu0 %v988
    %1690 = vmatmul.mubr.bf16.gmra.mrb[0].mxu0 %v987
    %v1691 = vpop.f32.mrb[0].mxu0
    %v1692 = vadd.f32 %v1531, %v1691
    %v1693 = vpop.f32.mrb[0].mxu0
    %v1694 = vpop.f32.mrb[0].mxu0
    %v1695 = vadd.f32 %v1534, %v1694
    %v1696 = vpop.f32.mrb[0].mxu0
    %1697 = vmatprep.mubr.bf16.mxu0 %v996
    %1698 = vmatmul.mubr.bf16.gmra.mrb[0].mxu0 %v995
    %v1699 = vpop.f32.mrb[0].mxu0
    %v1700 = vadd.f32 %v1539, %v1699
    %v1701 = vpop.f32.mrb[0].mxu0
    %v1702 = vpop.f32.mrb[0].mxu0
    %v1703 = vadd.f32 %v1542, %v1702
    %v1704 = vpop.f32.mrb[0].mxu0
    %1705 = vmatprep.mubr.bf16.mxu0 %v1004
    %1706 = vmatmul.mubr.bf16.gmra.mrb[0].mxu0 %v1003
    %v1707 = vpop.f32.mrb[0].mxu0
    %v1708 = vadd.f32 %v1547, %v1707
    %v1709 = vpop.f32.mrb[0].mxu0
    %v1710 = vpop.f32.mrb[0].mxu0
    %v1711 = vadd.f32 %v1550, %v1710
    %v1712 = vpop.f32.mrb[0].mxu0
    %1713 = vmatprep.mubr.bf16.mxu0 %v1012
    %1714 = vmatmul.mubr.bf16.gmra.mrb[0].mxu0 %v1011
    %v1715 = vpop.f32.mrb[0].mxu0
    %v1716 = vadd.f32 %v1555, %v1715
    %v1717 = vpop.f32.mrb[0].mxu0
    %v1718 = vpop.f32.mrb[0].mxu0
    %v1719 = vadd.f32 %v1558, %v1718
    %v1720 = vpop.f32.mrb[0].mxu0
    %1721 = vmatprep.mubr.bf16.mxu0 %v1020
    %1722 = vmatmul.mubr.bf16.gmra.mrb[0].mxu0 %v1019
    %v1723 = vpop.f32.mrb[0].mxu0
    %v1724 = vadd.f32 %v1563, %v1723
    %v1725 = vpop.f32.mrb[0].mxu0
    %v1726 = vpop.f32.mrb[0].mxu0
    %v1727 = vadd.f32 %v1566, %v1726
    %v1728 = vpop.f32.mrb[0].mxu0
    %1729 = vmatprep.mubr.bf16.mxu0 %v1028
    %1730 = vmatmul.mubr.bf16.gmra.mrb[0].mxu0 %v1027
    %v1731 = vpop.f32.mrb[0].mxu0
    %v1732 = vadd.f32 %v1571, %v1731
    %v1733 = vpop.f32.mrb[0].mxu0
    %v1734 = vpop.f32.mrb[0].mxu0
    %v1735 = vadd.f32 %v1574, %v1734
    %v1736 = vpop.f32.mrb[0].mxu0
    %1737 = vmatprep.mubr.bf16.mxu0 %v1036
    %1738 = vmatmul.mubr.bf16.gmra.mrb[0].mxu0 %v1035
    %v1739 = vpop.f32.mrb[0].mxu0
    %v1740 = vadd.f32 %v1579, %v1739
    %v1741 = vpop.f32.mrb[0].mxu0
    %v1742 = vpop.f32.mrb[0].mxu0
    %v1743 = vadd.f32 %v1582, %v1742
    %v1744 = vpop.f32.mrb[0].mxu0
    %1745 = vmatprep.mubr.bf16.mxu0 %v1044
    %1746 = vmatmul.mubr.bf16.gmra.mrb[0].mxu0 %v1043
    %v1747 = vpop.f32.mrb[0].mxu0
    %v1748 = vadd.f32 %v1587, %v1747
    %v1749 = vpop.f32.mrb[0].mxu0
    %v1750 = vpop.f32.mrb[0].mxu0
    %v1751 = vadd.f32 %v1590, %v1750
    %v1752 = vpop.f32.mrb[0].mxu0
    %1753 = vmatprep.mubr.bf16.mxu0 %v1052
    %1754 = vmatmul.mubr.bf16.gmra.mrb[0].mxu0 %v1051
    %v1755 = vpop.f32.mrb[0].mxu0
    %v1756 = vadd.f32 %v1595, %v1755
    %v1757 = vpop.f32.mrb[0].mxu0
    %v1758 = vpop.f32.mrb[0].mxu0
    %v1759 = vadd.f32 %v1598, %v1758
    %v1760 = vpop.f32.mrb[0].mxu0
    %1761 = vmatprep.mubr.bf16.mxu0 %v1060
    %1762 = vmatmul.mubr.bf16.gmra.mrb[0].mxu0 %v1059
    %v1763 = vpop.f32.mrb[0].mxu0
    %v1764 = vadd.f32 %v1603, %v1763
    %v1765 = vpop.f32.mrb[0].mxu0
    %v1766 = vpop.f32.mrb[0].mxu0
    %v1767 = vadd.f32 %v1606, %v1766
    %v1768 = vpop.f32.mrb[0].mxu0
    %1769 = vmatprep.mubr.bf16.mxu0 %v1068
    %1770 = vmatmul.mubr.bf16.gmra.mrb[0].mxu0 %v1067
    %v1771 = vpop.f32.mrb[0].mxu0
    %v1772 = vadd.f32 %v1611, %v1771
    %v1773 = vpop.f32.mrb[0].mxu0
    %v1774 = vpop.f32.mrb[0].mxu0
    %v1775 = vadd.f32 %v1614, %v1774
    %v1776 = vpop.f32.mrb[0].mxu0
    %1777 = vmatprep.mubr.bf16.mxu0 %v1076
    %1778 = vmatmul.mubr.bf16.gmra.mrb[0].mxu0 %v1075
    %v1779 = vpop.f32.mrb[0].mxu0
    %v1780 = vadd.f32 %v1619, %v1779
    %v1781 = vpop.f32.mrb[0].mxu0
    %v1782 = vpop.f32.mrb[0].mxu0
    %v1783 = vadd.f32 %v1622, %v1782
    %v1784 = vpop.f32.mrb[0].mxu0
    %1785 = vdwg.mxu0
    %1786 = vmatprep.subr.bf16.mxu0 0
    %1787 = vmatpush1.bf16.msra.mxu0 %v1255
    %1788 = vmatprep.subr.bf16.mxu0 0
    %1789 = vmatpush1.bf16.msra.mxu0 %v1256
    %1790 = vmatprep.subr.bf16.mxu0 0
    %1791 = vmatpush1.bf16.msra.mxu0 %v1257
    %1792 = vmatprep.subr.bf16.mxu0 0
    %1793 = vmatpush1.bf16.msra.mxu0 %v1258
    %1794 = vmatprep.subr.bf16.mxu0 0
    %1795 = vmatpush1.bf16.msra.mxu0 %v1259
    %1796 = vmatprep.subr.bf16.mxu0 0
    %1797 = vmatpush1.bf16.msra.mxu0 %v1260
    %1798 = vmatprep.subr.bf16.mxu0 0
    %1799 = vmatpush1.bf16.msra.mxu0 %v1261
    %1800 = vmatprep.subr.bf16.mxu0 0
    %1801 = vmatpush1.bf16.msra.mxu0 %v1262
    %1802 = vmatprep.subr.bf16.mxu0 0
    %1803 = vmatpush1.bf16.msra.mxu0 %v1263
    %1804 = vmatprep.subr.bf16.mxu0 0
    %1805 = vmatpush1.bf16.msra.mxu0 %v1264
    %1806 = vmatprep.subr.bf16.mxu0 0
    %1807 = vmatpush1.bf16.msra.mxu0 %v1265
    %1808 = vmatprep.subr.bf16.mxu0 0
    %1809 = vmatpush1.bf16.msra.mxu0 %v1266
    %1810 = vmatprep.subr.bf16.mxu0 0
    %1811 = vmatpush1.bf16.msra.mxu0 %v1267
    %1812 = vmatprep.subr.bf16.mxu0 0
    %1813 = vmatpush1.bf16.msra.mxu0 %v1268
    %1814 = vmatprep.subr.bf16.mxu0 0
    %1815 = vmatpush1.bf16.msra.mxu0 %v1269
    %1816 = vmatprep.subr.bf16.mxu0 0
    %1817 = vmatpush1.bf16.msra.mxu0 %v1270
    %1818 = vmatprep.mubr.bf16.mxu0 %v958
    %1819 = vmatmul.mubr.bf16.gmra.mrb[0].mxu0 %v957
    %v1820 = vpop.f32.mrb[0].mxu0
    %v1821 = vadd.f32 %v1660, %v1820
    %v1822 = vpop.f32.mrb[0].mxu0
    %v1823 = vpop.f32.mrb[0].mxu0
    %v1824 = vadd.f32 %v1663, %v1823
    %v1825 = vpop.f32.mrb[0].mxu0
    %1826 = vmatprep.mubr.bf16.mxu0 %v966
    %1827 = vmatmul.mubr.bf16.gmra.mrb[0].mxu0 %v965
    %v1828 = vpop.f32.mrb[0].mxu0
    %v1829 = vadd.f32 %v1668, %v1828
    %v1830 = vpop.f32.mrb[0].mxu0
    %v1831 = vpop.f32.mrb[0].mxu0
    %v1832 = vadd.f32 %v1671, %v1831
    %v1833 = vpop.f32.mrb[0].mxu0
    %1834 = vmatprep.mubr.bf16.mxu0 %v974
    %1835 = vmatmul.mubr.bf16.gmra.mrb[0].mxu0 %v973
    %v1836 = vpop.f32.mrb[0].mxu0
    %v1837 = vadd.f32 %v1676, %v1836
    %v1838 = vpop.f32.mrb[0].mxu0
    %v1839 = vpop.f32.mrb[0].mxu0
    %v1840 = vadd.f32 %v1679, %v1839
    %v1841 = vpop.f32.mrb[0].mxu0
    %1842 = vmatprep.mubr.bf16.mxu0 %v982
    %1843 = vmatmul.mubr.bf16.gmra.mrb[0].mxu0 %v981
    %v1844 = vpop.f32.mrb[0].mxu0
    %v1845 = vadd.f32 %v1684, %v1844
    %v1846 = vpop.f32.mrb[0].mxu0
    %v1847 = vpop.f32.mrb[0].mxu0
    %v1848 = vadd.f32 %v1687, %v1847
    %v1849 = vpop.f32.mrb[0].mxu0
    %1850 = vmatprep.mubr.bf16.mxu0 %v990
    %1851 = vmatmul.mubr.bf16.gmra.mrb[0].mxu0 %v989
    %v1852 = vpop.f32.mrb[0].mxu0
    %v1853 = vadd.f32 %v1692, %v1852
    %v1854 = vpop.f32.mrb[0].mxu0
    %v1855 = vpop.f32.mrb[0].mxu0
    %v1856 = vadd.f32 %v1695, %v1855
    %v1857 = vpop.f32.mrb[0].mxu0
    %1858 = vmatprep.mubr.bf16.mxu0 %v998
    %1859 = vmatmul.mubr.bf16.gmra.mrb[0].mxu0 %v997
    %v1860 = vpop.f32.mrb[0].mxu0
    %v1861 = vadd.f32 %v1700, %v1860
    %v1862 = vpop.f32.mrb[0].mxu0
    %v1863 = vpop.f32.mrb[0].mxu0
    %v1864 = vadd.f32 %v1703, %v1863
    %v1865 = vpop.f32.mrb[0].mxu0
    %1866 = vmatprep.mubr.bf16.mxu0 %v1006
    %1867 = vmatmul.mubr.bf16.gmra.mrb[0].mxu0 %v1005
    %v1868 = vpop.f32.mrb[0].mxu0
    %v1869 = vadd.f32 %v1708, %v1868
    %v1870 = vpop.f32.mrb[0].mxu0
    %v1871 = vpop.f32.mrb[0].mxu0
    %v1872 = vadd.f32 %v1711, %v1871
    %v1873 = vpop.f32.mrb[0].mxu0
    %1874 = vmatprep.mubr.bf16.mxu0 %v1014
    %1875 = vmatmul.mubr.bf16.gmra.mrb[0].mxu0 %v1013
    %v1876 = vpop.f32.mrb[0].mxu0
    %v1877 = vadd.f32 %v1716, %v1876
    %v1878 = vpop.f32.mrb[0].mxu0
    %v1879 = vpop.f32.mrb[0].mxu0
    %v1880 = vadd.f32 %v1719, %v1879
    %v1881 = vpop.f32.mrb[0].mxu0
    %1882 = vmatprep.mubr.bf16.mxu0 %v1022
    %1883 = vmatmul.mubr.bf16.gmra.mrb[0].mxu0 %v1021
    %v1884 = vpop.f32.mrb[0].mxu0
    %v1885 = vadd.f32 %v1724, %v1884
    %v1886 = vpop.f32.mrb[0].mxu0
    %v1887 = vpop.f32.mrb[0].mxu0
    %v1888 = vadd.f32 %v1727, %v1887
    %v1889 = vpop.f32.mrb[0].mxu0
    %1890 = vmatprep.mubr.bf16.mxu0 %v1030
    %1891 = vmatmul.mubr.bf16.gmra.mrb[0].mxu0 %v1029
    %v1892 = vpop.f32.mrb[0].mxu0
    %v1893 = vadd.f32 %v1732, %v1892
    %v1894 = vpop.f32.mrb[0].mxu0
    %v1895 = vpop.f32.mrb[0].mxu0
    %v1896 = vadd.f32 %v1735, %v1895
    %v1897 = vpop.f32.mrb[0].mxu0
    %1898 = vmatprep.mubr.bf16.mxu0 %v1038
    %1899 = vmatmul.mubr.bf16.gmra.mrb[0].mxu0 %v1037
    %v1900 = vpop.f32.mrb[0].mxu0
    %v1901 = vadd.f32 %v1740, %v1900
    %v1902 = vpop.f32.mrb[0].mxu0
    %v1903 = vpop.f32.mrb[0].mxu0
    %v1904 = vadd.f32 %v1743, %v1903
    %v1905 = vpop.f32.mrb[0].mxu0
    %1906 = vmatprep.mubr.bf16.mxu0 %v1046
    %1907 = vmatmul.mubr.bf16.gmra.mrb[0].mxu0 %v1045
    %v1908 = vpop.f32.mrb[0].mxu0
    %v1909 = vadd.f32 %v1748, %v1908
    %v1910 = vpop.f32.mrb[0].mxu0
    %v1911 = vpop.f32.mrb[0].mxu0
    %v1912 = vadd.f32 %v1751, %v1911
    %v1913 = vpop.f32.mrb[0].mxu0
    %1914 = vmatprep.mubr.bf16.mxu0 %v1054
    %1915 = vmatmul.mubr.bf16.gmra.mrb[0].mxu0 %v1053
    %v1916 = vpop.f32.mrb[0].mxu0
    %v1917 = vadd.f32 %v1756, %v1916
    %v1918 = vpop.f32.mrb[0].mxu0
    %v1919 = vpop.f32.mrb[0].mxu0
    %v1920 = vadd.f32 %v1759, %v1919
    %v1921 = vpop.f32.mrb[0].mxu0
    %1922 = vmatprep.mubr.bf16.mxu0 %v1062
    %1923 = vmatmul.mubr.bf16.gmra.mrb[0].mxu0 %v1061
    %v1924 = vpop.f32.mrb[0].mxu0
    %v1925 = vadd.f32 %v1764, %v1924
    %v1926 = vpop.f32.mrb[0].mxu0
    %v1927 = vpop.f32.mrb[0].mxu0
    %v1928 = vadd.f32 %v1767, %v1927
    %v1929 = vpop.f32.mrb[0].mxu0
    %1930 = vmatprep.mubr.bf16.mxu0 %v1070
    %1931 = vmatmul.mubr.bf16.gmra.mrb[0].mxu0 %v1069
    %v1932 = vpop.f32.mrb[0].mxu0
    %v1933 = vadd.f32 %v1772, %v1932
    %v1934 = vpop.f32.mrb[0].mxu0
    %v1935 = vpop.f32.mrb[0].mxu0
    %v1936 = vadd.f32 %v1775, %v1935
    %v1937 = vpop.f32.mrb[0].mxu0
    %1938 = vmatprep.mubr.bf16.mxu0 %v1078
    %1939 = vmatmul.mubr.bf16.gmra.mrb[0].mxu0 %v1077
    %v1940 = vpop.f32.mrb[0].mxu0
    %v1941 = vadd.f32 %v1780, %v1940
    %v1942 = vpop.f32.mrb[0].mxu0
    %v1943 = vpop.f32.mrb[0].mxu0
    %v1944 = vadd.f32 %v1783, %v1943
    %v1945 = vpop.f32.mrb[0].mxu0
    %1946 = vdwg.mxu0
    %v1947 = vadd.f32 %v1271, %v1821
    %v1948 = vadd.f32 %v1272, %v1824
    %v1949 = vadd.f32 %v1273, %v1829
    %v1950 = vadd.f32 %v1274, %v1832
    %v1951 = vadd.f32 %v1275, %v1837
    %v1952 = vadd.f32 %v1276, %v1840
    %v1953 = vadd.f32 %v1277, %v1845
    %v1954 = vadd.f32 %v1278, %v1848
    %v1955 = vadd.f32 %v1279, %v1853
    %v1956 = vadd.f32 %v1280, %v1856
    %v1957 = vadd.f32 %v1281, %v1861
    %v1958 = vadd.f32 %v1282, %v1864
    %v1959 = vadd.f32 %v1283, %v1869
    %v1960 = vadd.f32 %v1284, %v1872
    %v1961 = vadd.f32 %v1285, %v1877
    %v1962 = vadd.f32 %v1286, %v1880
    %v1963 = vadd.f32 %v1287, %v1885
    %v1964 = vadd.f32 %v1288, %v1888
    %v1965 = vadd.f32 %v1289, %v1893
    %v1966 = vadd.f32 %v1290, %v1896
    %v1967 = vadd.f32 %v1291, %v1901
    %v1968 = vadd.f32 %v1292, %v1904
    %v1969 = vadd.f32 %v1293, %v1909
    %v1970 = vadd.f32 %v1294, %v1912
    %v1971 = vadd.f32 %v1295, %v1917
    %v1972 = vadd.f32 %v1296, %v1920
    %v1973 = vadd.f32 %v1297, %v1925
    %v1974 = vadd.f32 %v1298, %v1928
    %v1975 = vadd.f32 %v1299, %v1933
    %v1976 = vadd.f32 %v1300, %v1936
    %v1977 = vadd.f32 %v1301, %v1941
    %v1978 = vadd.f32 %v1302, %v1944
    %1979 = vst [vmem:[#allocation2] sm:$0xff] %v1947
    %1980 = vst [vmem:[#allocation2 + $0x8] sm:$0xff] %v1948
    %1981 = vst [vmem:[#allocation2 + $0x10] sm:$0xff] %v1949
    %1982 = vst [vmem:[#allocation2 + $0x18] sm:$0xff] %v1950
    %1983 = vst [vmem:[#allocation2 + $0x20] sm:$0xff] %v1951
    %1984 = vst [vmem:[#allocation2 + $0x28] sm:$0xff] %v1952
    %1985 = vst [vmem:[#allocation2 + $0x30] sm:$0xff] %v1953
    %1986 = vst [vmem:[#allocation2 + $0x38] sm:$0xff] %v1954
    %1987 = vst [vmem:[#allocation2 + $0x40] sm:$0xff] %v1955
    %1988 = vst [vmem:[#allocation2 + $0x48] sm:$0xff] %v1956
    %1989 = vst [vmem:[#allocation2 + $0x50] sm:$0xff] %v1957
    %1990 = vst [vmem:[#allocation2 + $0x58] sm:$0xff] %v1958
    %1991 = vst [vmem:[#allocation2 + $0x60] sm:$0xff] %v1959
    %1992 = vst [vmem:[#allocation2 + $0x68] sm:$0xff] %v1960
    %1993 = vst [vmem:[#allocation2 + $0x70] sm:$0xff] %v1961
    %1994 = vst [vmem:[#allocation2 + $0x78] sm:$0xff] %v1962
    %1995 = vst [vmem:[#allocation2 + $0x80] sm:$0xff] %v1963
    %1996 = vst [vmem:[#allocation2 + $0x88] sm:$0xff] %v1964
    %1997 = vst [vmem:[#allocation2 + $0x90] sm:$0xff] %v1965
    %1998 = vst [vmem:[#allocation2 + $0x98] sm:$0xff] %v1966
    %1999 = vst [vmem:[#allocation2 + $0xa0] sm:$0xff] %v1967
    %2000 = vst [vmem:[#allocation2 + $0xa8] sm:$0xff] %v1968
    %2001 = vst [vmem:[#allocation2 + $0xb0] sm:$0xff] %v1969
    %2002 = vst [vmem:[#allocation2 + $0xb8] sm:$0xff] %v1970
    %2003 = vst [vmem:[#allocation2 + $0xc0] sm:$0xff] %v1971
    %2004 = vst [vmem:[#allocation2 + $0xc8] sm:$0xff] %v1972
    %2005 = vst [vmem:[#allocation2 + $0xd0] sm:$0xff] %v1973
    %2006 = vst [vmem:[#allocation2 + $0xd8] sm:$0xff] %v1974
    %2007 = vst [vmem:[#allocation2 + $0xe0] sm:$0xff] %v1975
    %2008 = vst [vmem:[#allocation2 + $0xe8] sm:$0xff] %v1976
    %2009 = vst [vmem:[#allocation2 + $0xf0] sm:$0xff] %v1977
    %2010 = vst [vmem:[#allocation2 + $0xf8] sm:$0xff] %v1978
    // Predicated region
    $region62: #{trex_forward.1} parent=1 // pred_check
      %p2011 = pneg %p81
    $region63: #{trex_forward.1} parent=1 // pred_check_branch
      %2013 = sbr.rel (%p2011) target = $region65
    $region64: #{trex_forward.1} parent=1 // pred_region
      %v2014 = vld [vmem:[#allocation2] sm:$0xff]
      %v2015 = vld [vmem:[#allocation2 + $0x8] sm:$0xff]
      %v2016 = vld [vmem:[#allocation2 + $0x10] sm:$0xff]
      %v2017 = vld [vmem:[#allocation2 + $0x18] sm:$0xff]
      %v2018 = vld [vmem:[#allocation2 + $0x20] sm:$0xff]
      %v2019 = vld [vmem:[#allocation2 + $0x28] sm:$0xff]
      %v2020 = vld [vmem:[#allocation2 + $0x30] sm:$0xff]
      %v2021 = vld [vmem:[#allocation2 + $0x38] sm:$0xff]
      %v2022 = vld [vmem:[#allocation2 + $0x40] sm:$0xff]
      %v2023 = vld [vmem:[#allocation2 + $0x48] sm:$0xff]
      %v2024 = vld [vmem:[#allocation2 + $0x50] sm:$0xff]
      %v2025 = vld [vmem:[#allocation2 + $0x58] sm:$0xff]
      %v2026 = vld [vmem:[#allocation2 + $0x60] sm:$0xff]
      %v2027 = vld [vmem:[#allocation2 + $0x68] sm:$0xff]
      %v2028 = vld [vmem:[#allocation2 + $0x70] sm:$0xff]
      %v2029 = vld [vmem:[#allocation2 + $0x78] sm:$0xff]
      %v2030 = vld [vmem:[#allocation2 + $0x80] sm:$0xff]
      %v2031 = vld [vmem:[#allocation2 + $0x88] sm:$0xff]
      %v2032 = vld [vmem:[#allocation2 + $0x90] sm:$0xff]
      %v2033 = vld [vmem:[#allocation2 + $0x98] sm:$0xff]
      %v2034 = vld [vmem:[#allocation2 + $0xa0] sm:$0xff]
      %v2035 = vld [vmem:[#allocation2 + $0xa8] sm:$0xff]
      %v2036 = vld [vmem:[#allocation2 + $0xb0] sm:$0xff]
      %v2037 = vld [vmem:[#allocation2 + $0xb8] sm:$0xff]
      %v2038 = vld [vmem:[#allocation2 + $0xc0] sm:$0xff]
      %v2039 = vld [vmem:[#allocation2 + $0xc8] sm:$0xff]
      %v2040 = vld [vmem:[#allocation2 + $0xd0] sm:$0xff]
      %v2041 = vld [vmem:[#allocation2 + $0xd8] sm:$0xff]
      %v2042 = vld [vmem:[#allocation2 + $0xe0] sm:$0xff]
      %v2043 = vld [vmem:[#allocation2 + $0xe8] sm:$0xff]
      %v2044 = vld [vmem:[#allocation2 + $0xf0] sm:$0xff]
      %v2045 = vld [vmem:[#allocation2 + $0xf8] sm:$0xff]
      %v2046 = vmul.f32 %v2014, %v2014
      %v2047 = vmul.f32 %v2015, %v2015
      %v2048 = vmul.f32 %v2016, %v2016
      %v2049 = vmul.f32 %v2017, %v2017
      %v2050 = vmul.f32 %v2018, %v2018
      %v2051 = vmul.f32 %v2019, %v2019
      %v2052 = vmul.f32 %v2020, %v2020
      %v2053 = vmul.f32 %v2021, %v2021
      %v2054 = vmul.f32 %v2022, %v2022
      %v2055 = vmul.f32 %v2023, %v2023
      %v2056 = vmul.f32 %v2024, %v2024
      %v2057 = vmul.f32 %v2025, %v2025
      %v2058 = vmul.f32 %v2026, %v2026
      %v2059 = vmul.f32 %v2027, %v2027
      %v2060 = vmul.f32 %v2028, %v2028
      %v2061 = vmul.f32 %v2029, %v2029
      %v2062 = vmul.f32 %v2030, %v2030
      %v2063 = vmul.f32 %v2031, %v2031
      %v2064 = vmul.f32 %v2032, %v2032
      %v2065 = vmul.f32 %v2033, %v2033
      %v2066 = vmul.f32 %v2034, %v2034
      %v2067 = vmul.f32 %v2035, %v2035
      %v2068 = vmul.f32 %v2036, %v2036
      %v2069 = vmul.f32 %v2037, %v2037
      %v2070 = vmul.f32 %v2038, %v2038
      %v2071 = vmul.f32 %v2039, %v2039
      %v2072 = vmul.f32 %v2040, %v2040
      %v2073 = vmul.f32 %v2041, %v2041
      %v2074 = vmul.f32 %v2042, %v2042
      %v2075 = vmul.f32 %v2043, %v2043
      %v2076 = vmul.f32 %v2044, %v2044
      %v2077 = vmul.f32 %v2045, %v2045
      %2078 = vadd.xlane.f32.xlu0 %v2046
      %v2079 = vpop.xlane.xlu0 %2078
      %2080 = vadd.xlane.f32.xlu0 %v2047
      %v2081 = vpop.xlane.xlu0 %2080
      %2082 = vadd.xlane.f32.xlu0 %v2048
      %v2083 = vpop.xlane.xlu0 %2082
      %2084 = vadd.xlane.f32.xlu0 %v2049
      %v2085 = vpop.xlane.xlu0 %2084
      %2086 = vadd.xlane.f32.xlu0 %v2050
      %v2087 = vpop.xlane.xlu0 %2086
      %2088 = vadd.xlane.f32.xlu0 %v2051
      %v2089 = vpop.xlane.xlu0 %2088
      %2090 = vadd.xlane.f32.xlu0 %v2052
      %v2091 = vpop.xlane.xlu0 %2090
      %2092 = vadd.xlane.f32.xlu0 %v2053
      %v2093 = vpop.xlane.xlu0 %2092
      %2094 = vadd.xlane.f32.xlu0 %v2054
      %v2095 = vpop.xlane.xlu0 %2094
      %2096 = vadd.xlane.f32.xlu0 %v2055
      %v2097 = vpop.xlane.xlu0 %2096
      %2098 = vadd.xlane.f32.xlu0 %v2056
      %v2099 = vpop.xlane.xlu0 %2098
      %2100 = vadd.xlane.f32.xlu0 %v2057
      %v2101 = vpop.xlane.xlu0 %2100
      %2102 = vadd.xlane.f32.xlu0 %v2058
      %v2103 = vpop.xlane.xlu0 %2102
      %2104 = vadd.xlane.f32.xlu0 %v2059
      %v2105 = vpop.xlane.xlu0 %2104
      %2106 = vadd.xlane.f32.xlu0 %v2060
      %v2107 = vpop.xlane.xlu0 %2106
      %2108 = vadd.xlane.f32.xlu0 %v2061
      %v2109 = vpop.xlane.xlu0 %2108
      %2110 = vadd.xlane.f32.xlu0 %v2062
      %v2111 = vpop.xlane.xlu0 %2110
      %2112 = vadd.xlane.f32.xlu0 %v2063
      %v2113 = vpop.xlane.xlu0 %2112
      %2114 = vadd.xlane.f32.xlu0 %v2064
      %v2115 = vpop.xlane.xlu0 %2114
      %2116 = vadd.xlane.f32.xlu0 %v2065
      %v2117 = vpop.xlane.xlu0 %2116
      %2118 = vadd.xlane.f32.xlu0 %v2066
      %v2119 = vpop.xlane.xlu0 %2118
      %2120 = vadd.xlane.f32.xlu0 %v2067
      %v2121 = vpop.xlane.xlu0 %2120
      %2122 = vadd.xlane.f32.xlu0 %v2068
      %v2123 = vpop.xlane.xlu0 %2122
      %2124 = vadd.xlane.f32.xlu0 %v2069
      %v2125 = vpop.xlane.xlu0 %2124
      %2126 = vadd.xlane.f32.xlu0 %v2070
      %v2127 = vpop.xlane.xlu0 %2126
      %2128 = vadd.xlane.f32.xlu0 %v2071
      %v2129 = vpop.xlane.xlu0 %2128
      %2130 = vadd.xlane.f32.xlu0 %v2072
      %v2131 = vpop.xlane.xlu0 %2130
      %2132 = vadd.xlane.f32.xlu0 %v2073
      %v2133 = vpop.xlane.xlu0 %2132
      %2134 = vadd.xlane.f32.xlu0 %v2074
      %v2135 = vpop.xlane.xlu0 %2134
      %2136 = vadd.xlane.f32.xlu0 %v2075
      %v2137 = vpop.xlane.xlu0 %2136
      %2138 = vadd.xlane.f32.xlu0 %v2076
      %v2139 = vpop.xlane.xlu0 %2138
      %2140 = vadd.xlane.f32.xlu0 %v2077
      %v2141 = vpop.xlane.xlu0 %2140
      %v2142 = vmax.f32 %v2079, 1e-24
      %v2143 = vmax.f32 %v2081, 1e-24
      %v2144 = vmax.f32 %v2083, 1e-24
      %v2145 = vmax.f32 %v2085, 1e-24
      %v2146 = vmax.f32 %v2087, 1e-24
      %v2147 = vmax.f32 %v2089, 1e-24
      %v2148 = vmax.f32 %v2091, 1e-24
      %v2149 = vmax.f32 %v2093, 1e-24
      %v2150 = vmax.f32 %v2095, 1e-24
      %v2151 = vmax.f32 %v2097, 1e-24
      %v2152 = vmax.f32 %v2099, 1e-24
      %v2153 = vmax.f32 %v2101, 1e-24
      %v2154 = vmax.f32 %v2103, 1e-24
      %v2155 = vmax.f32 %v2105, 1e-24
      %v2156 = vmax.f32 %v2107, 1e-24
      %v2157 = vmax.f32 %v2109, 1e-24
      %v2158 = vmax.f32 %v2111, 1e-24
      %v2159 = vmax.f32 %v2113, 1e-24
      %v2160 = vmax.f32 %v2115, 1e-24
      %v2161 = vmax.f32 %v2117, 1e-24
      %v2162 = vmax.f32 %v2119, 1e-24
      %v2163 = vmax.f32 %v2121, 1e-24
      %v2164 = vmax.f32 %v2123, 1e-24
      %v2165 = vmax.f32 %v2125, 1e-24
      %v2166 = vmax.f32 %v2127, 1e-24
      %v2167 = vmax.f32 %v2129, 1e-24
      %v2168 = vmax.f32 %v2131, 1e-24
      %v2169 = vmax.f32 %v2133, 1e-24
      %v2170 = vmax.f32 %v2135, 1e-24
      %v2171 = vmax.f32 %v2137, 1e-24
      %v2172 = vmax.f32 %v2139, 1e-24
      %v2173 = vmax.f32 %v2141, 1e-24
      %v2174 = vrsqrt.pop %v2142
      %v2175 = vrsqrt.pop %v2143
      %v2176 = vrsqrt.pop %v2144
      %v2177 = vrsqrt.pop %v2145
      %v2178 = vrsqrt.pop %v2146
      %v2179 = vrsqrt.pop %v2147
      %v2180 = vrsqrt.pop %v2148
      %v2181 = vrsqrt.pop %v2149
      %v2182 = vrsqrt.pop %v2150
      %v2183 = vrsqrt.pop %v2151
      %v2184 = vrsqrt.pop %v2152
      %v2185 = vrsqrt.pop %v2153
      %v2186 = vrsqrt.pop %v2154
      %v2187 = vrsqrt.pop %v2155
      %v2188 = vrsqrt.pop %v2156
      %v2189 = vrsqrt.pop %v2157
      %v2190 = vrsqrt.pop %v2158
      %v2191 = vrsqrt.pop %v2159
      %v2192 = vrsqrt.pop %v2160
      %v2193 = vrsqrt.pop %v2161
      %v2194 = vrsqrt.pop %v2162
      %v2195 = vrsqrt.pop %v2163
      %v2196 = vrsqrt.pop %v2164
      %v2197 = vrsqrt.pop %v2165
      %v2198 = vrsqrt.pop %v2166
      %v2199 = vrsqrt.pop %v2167
      %v2200 = vrsqrt.pop %v2168
      %v2201 = vrsqrt.pop %v2169
      %v2202 = vrsqrt.pop %v2170
      %v2203 = vrsqrt.pop %v2171
      %v2204 = vrsqrt.pop %v2172
      %v2205 = vrsqrt.pop %v2173
      %v2206 = vmul.f32 %v2014, %v2174
      %v2207 = vmul.f32 %v2015, %v2175
      %v2208 = vmul.f32 %v2016, %v2176
      %v2209 = vmul.f32 %v2017, %v2177
      %v2210 = vmul.f32 %v2018, %v2178
      %v2211 = vmul.f32 %v2019, %v2179
      %v2212 = vmul.f32 %v2020, %v2180
      %v2213 = vmul.f32 %v2021, %v2181
      %v2214 = vmul.f32 %v2022, %v2182
      %v2215 = vmul.f32 %v2023, %v2183
      %v2216 = vmul.f32 %v2024, %v2184
      %v2217 = vmul.f32 %v2025, %v2185
      %v2218 = vmul.f32 %v2026, %v2186
      %v2219 = vmul.f32 %v2027, %v2187
      %v2220 = vmul.f32 %v2028, %v2188
      %v2221 = vmul.f32 %v2029, %v2189
      %v2222 = vmul.f32 %v2030, %v2190
      %v2223 = vmul.f32 %v2031, %v2191
      %v2224 = vmul.f32 %v2032, %v2192
      %v2225 = vmul.f32 %v2033, %v2193
      %v2226 = vmul.f32 %v2034, %v2194
      %v2227 = vmul.f32 %v2035, %v2195
      %v2228 = vmul.f32 %v2036, %v2196
      %v2229 = vmul.f32 %v2037, %v2197
      %v2230 = vmul.f32 %v2038, %v2198
      %v2231 = vmul.f32 %v2039, %v2199
      %v2232 = vmul.f32 %v2040, %v2200
      %v2233 = vmul.f32 %v2041, %v2201
      %v2234 = vmul.f32 %v2042, %v2202
      %v2235 = vmul.f32 %v2043, %v2203
      %v2236 = vmul.f32 %v2044, %v2204
      %v2237 = vmul.f32 %v2045, %v2205
      %v2238 = vpack.c.bf16 %v2207, %v2206
      %v2239 = vpack.c.bf16 %v2209, %v2208
      %v2240 = vpack.c.bf16 %v2211, %v2210
      %v2241 = vpack.c.bf16 %v2213, %v2212
      %v2242 = vpack.c.bf16 %v2215, %v2214
      %v2243 = vpack.c.bf16 %v2217, %v2216
      %v2244 = vpack.c.bf16 %v2219, %v2218
      %v2245 = vpack.c.bf16 %v2221, %v2220
      %v2246 = vpack.c.bf16 %v2223, %v2222
      %v2247 = vpack.c.bf16 %v2225, %v2224
      %v2248 = vpack.c.bf16 %v2227, %v2226
      %v2249 = vpack.c.bf16 %v2229, %v2228
      %v2250 = vpack.c.bf16 %v2231, %v2230
      %v2251 = vpack.c.bf16 %v2233, %v2232
      %v2252 = vpack.c.bf16 %v2235, %v2234
      %v2253 = vpack.c.bf16 %v2237, %v2236
      %v2254 = vld [vmem:[%s2] sm:$0xff]
      %v2255 = vld [vmem:[%s2 + $0x8] sm:$0xff]
      %v2256 = vld [vmem:[%s2 + $0x10] sm:$0xff]
      %v2257 = vld [vmem:[%s2 + $0x18] sm:$0xff]
      %v2258 = vld [vmem:[%s2 + $0x20] sm:$0xff]
      %v2259 = vld [vmem:[%s2 + $0x28] sm:$0xff]
      %v2260 = vld [vmem:[%s3] sm:$0xf]
      %v2261 = vld [vmem:[%s3 + $0x4] sm:$0xf]
      %v2262 = vld [vmem:[%s3 + $0x8] sm:$0xf]
      %v2263 = vld [vmem:[%s3 + $0xc] sm:$0xf]
      %v2264 = vld [vmem:[%s3 + $0x10] sm:$0xf]
      %v2265 = vld [vmem:[%s3 + $0x14] sm:$0xf]
      %v2266 = vld [vmem:[%s3 + $0x18] sm:$0xf]
      %v2267 = vld [vmem:[%s3 + $0x1c] sm:$0xf]
      %v2268 = vld [vmem:[%s3 + $0x20] sm:$0xf]
      %v2269 = vld [vmem:[%s3 + $0x24] sm:$0xf]
      %v2270 = vld [vmem:[%s3 + $0x28] sm:$0xf]
      %v2271 = vld [vmem:[%s3 + $0x2c] sm:$0xf]
      %v2272 = vld [vmem:[%s3 + $0x30] sm:$0xf]
      %v2273 = vld [vmem:[%s3 + $0x34] sm:$0xf]
      %v2274 = vld [vmem:[%s3 + $0x38] sm:$0xf]
      %v2275 = vld [vmem:[%s3 + $0x3c] sm:$0xf]
      %v2276 = vld [vmem:[%s3 + $0x40] sm:$0xf]
      %v2277 = vld [vmem:[%s3 + $0x44] sm:$0xf]
      %v2278 = vld [vmem:[%s3 + $0x48] sm:$0xf]
      %v2279 = vld [vmem:[%s3 + $0x4c] sm:$0xf]
      %v2280 = vld [vmem:[%s3 + $0x50] sm:$0xf]
      %v2281 = vld [vmem:[%s3 + $0x54] sm:$0xf]
      %v2282 = vld [vmem:[%s3 + $0x58] sm:$0xf]
      %v2283 = vld [vmem:[%s3 + $0x5c] sm:$0xf]
      %v2284 = vld [vmem:[%s3 + $0x60] sm:$0xf]
      %v2285 = vld [vmem:[%s3 + $0x64] sm:$0xf]
      %v2286 = vld [vmem:[%s3 + $0x68] sm:$0xf]
      %v2287 = vld [vmem:[%s3 + $0x6c] sm:$0xf]
      %v2288 = vld [vmem:[%s3 + $0x70] sm:$0xf]
      %v2289 = vld [vmem:[%s3 + $0x74] sm:$0xf]
      %v2290 = vld [vmem:[%s3 + $0x78] sm:$0xf]
      %v2291 = vld [vmem:[%s3 + $0x7c] sm:$0xf]
      %v2292 = vld [vmem:[%s3 + $0x80] sm:$0xf]
      %v2293 = vld [vmem:[%s3 + $0x84] sm:$0xf]
      %v2294 = vld [vmem:[%s3 + $0x88] sm:$0xf]
      %v2295 = vld [vmem:[%s3 + $0x8c] sm:$0xf]
      %v2296 = vld [vmem:[%s3 + $0x90] sm:$0xf]
      %v2297 = vld [vmem:[%s3 + $0x94] sm:$0xf]
      %v2298 = vld [vmem:[%s3 + $0x98] sm:$0xf]
      %v2299 = vld [vmem:[%s3 + $0x9c] sm:$0xf]
      %v2300 = vld [vmem:[%s3 + $0xa0] sm:$0xf]
      %v2301 = vld [vmem:[%s3 + $0xa4] sm:$0xf]
      %v2302 = vld [vmem:[%s3 + $0xa8] sm:$0xf]
      %v2303 = vld [vmem:[%s3 + $0xac] sm:$0xf]
      %v2304 = vld [vmem:[%s3 + $0xb0] sm:$0xf]
      %v2305 = vld [vmem:[%s3 + $0xb4] sm:$0xf]
      %v2306 = vld [vmem:[%s3 + $0xb8] sm:$0xf]
      %v2307 = vld [vmem:[%s3 + $0xbc] sm:$0xf]
      %v2308 = vld [vmem:[%s3 + $0xc0] sm:$0xf]
      %v2309 = vld [vmem:[%s3 + $0xc4] sm:$0xf]
      %v2310 = vld [vmem:[%s3 + $0xc8] sm:$0xf]
      %v2311 = vld [vmem:[%s3 + $0xcc] sm:$0xf]
      %v2312 = vld [vmem:[%s3 + $0xd0] sm:$0xf]
      %v2313 = vld [vmem:[%s3 + $0xd4] sm:$0xf]
      %v2314 = vld [vmem:[%s3 + $0xd8] sm:$0xf]
      %v2315 = vld [vmem:[%s3 + $0xdc] sm:$0xf]
      %v2316 = vld [vmem:[%s3 + $0xe0] sm:$0xf]
      %v2317 = vld [vmem:[%s3 + $0xe4] sm:$0xf]
      %v2318 = vld [vmem:[%s3 + $0xe8] sm:$0xf]
      %v2319 = vld [vmem:[%s3 + $0xec] sm:$0xf]
      %v2320 = vld [vmem:[%s3 + $0xf0] sm:$0xf]
      %v2321 = vld [vmem:[%s3 + $0xf4] sm:$0xf]
      %v2322 = vld [vmem:[%s3 + $0xf8] sm:$0xf]
      %v2323 = vld [vmem:[%s3 + $0xfc] sm:$0xf]
      %v2324 = vld [vmem:[%s3 + $0x100] sm:$0xf]
      %v2325 = vld [vmem:[%s3 + $0x104] sm:$0xf]
      %v2326 = vld [vmem:[%s3 + $0x108] sm:$0xf]
      %v2327 = vld [vmem:[%s3 + $0x10c] sm:$0xf]
      %v2328 = vld [vmem:[%s3 + $0x110] sm:$0xf]
      %v2329 = vld [vmem:[%s3 + $0x114] sm:$0xf]
      %v2330 = vld [vmem:[%s3 + $0x118] sm:$0xf]
      %v2331 = vld [vmem:[%s3 + $0x11c] sm:$0xf]
      %v2332 = vld [vmem:[%s3 + $0x120] sm:$0xf]
      %v2333 = vld [vmem:[%s3 + $0x124] sm:$0xf]
      %v2334 = vld [vmem:[%s3 + $0x128] sm:$0xf]
      %v2335 = vld [vmem:[%s3 + $0x12c] sm:$0xf]
      %v2336 = vld [vmem:[%s3 + $0x130] sm:$0xf]
      %v2337 = vld [vmem:[%s3 + $0x134] sm:$0xf]
      %v2338 = vld [vmem:[%s3 + $0x138] sm:$0xf]
      %v2339 = vld [vmem:[%s3 + $0x13c] sm:$0xf]
      %v2340 = vld [vmem:[%s3 + $0x140] sm:$0xf]
      %v2341 = vld [vmem:[%s3 + $0x144] sm:$0xf]
      %v2342 = vld [vmem:[%s3 + $0x148] sm:$0xf]
      %v2343 = vld [vmem:[%s3 + $0x14c] sm:$0xf]
      %v2344 = vld [vmem:[%s3 + $0x150] sm:$0xf]
      %v2345 = vld [vmem:[%s3 + $0x154] sm:$0xf]
      %v2346 = vld [vmem:[%s3 + $0x158] sm:$0xf]
      %v2347 = vld [vmem:[%s3 + $0x15c] sm:$0xf]
      %v2348 = vld [vmem:[%s3 + $0x160] sm:$0xf]
      %v2349 = vld [vmem:[%s3 + $0x164] sm:$0xf]
      %v2350 = vld [vmem:[%s3 + $0x168] sm:$0xf]
      %v2351 = vld [vmem:[%s3 + $0x16c] sm:$0xf]
      %v2352 = vld [vmem:[%s3 + $0x170] sm:$0xf]
      %v2353 = vld [vmem:[%s3 + $0x174] sm:$0xf]
      %v2354 = vld [vmem:[%s3 + $0x178] sm:$0xf]
      %v2355 = vld [vmem:[%s3 + $0x17c] sm:$0xf]
      %v2362 = vunpack.c.l.b16 %v2254
      %v2363 = vunpack.c.h.b16 %v2254
      %v2364 = vunpack.c.l.b16 %v2255
      %v2365 = vunpack.c.h.b16 %v2255
      %v2366 = vunpack.c.l.b16 %v2256
      %v2367 = vunpack.c.h.b16 %v2256
      %v2368 = vunpack.c.l.b16 %v2257
      %v2369 = vunpack.c.h.b16 %v2257
      %v2370 = vunpack.c.l.b16 %v2258
      %v2371 = vunpack.c.h.b16 %v2258
      %v2372 = vunpack.c.l.b16 %v2259
      %v2373 = vunpack.c.h.b16 %v2259
      %v2374 = vpack.c.b16 %v2368, %v2362
      %v2375 = vpack.c.b16 %v2369, %v2363
      %v2376 = vpack.c.b16 %v2370, %v2364
      %v2377 = vpack.c.b16 %v2371, %v2365
      %v2378 = vpack.c.b16 %v2372, %v2366
      %v2379 = vpack.c.b16 %v2373, %v2367
      %v2482 = vunpack.c.l.b16 %v2260
      %v2483 = vunpack.c.l.b16 %v2261
      %v2484 = vunpack.c.l.b16 %v2262
      %v2485 = vunpack.c.l.b16 %v2263
      %v2486 = vunpack.c.l.b16 %v2264
      %v2487 = vunpack.c.l.b16 %v2265
      %v2488 = vunpack.c.l.b16 %v2266
      %v2489 = vunpack.c.l.b16 %v2267
      %v2490 = vunpack.c.l.b16 %v2268
      %v2491 = vunpack.c.l.b16 %v2269
      %v2492 = vunpack.c.l.b16 %v2270
      %v2493 = vunpack.c.l.b16 %v2271
      %v2494 = vunpack.c.l.b16 %v2272
      %v2495 = vunpack.c.l.b16 %v2273
      %v2496 = vunpack.c.l.b16 %v2274
      %v2497 = vunpack.c.l.b16 %v2275
      %v2498 = vunpack.c.l.b16 %v2276
      %v2499 = vunpack.c.l.b16 %v2277
      %v2500 = vunpack.c.l.b16 %v2278
      %v2501 = vunpack.c.l.b16 %v2279
      %v2502 = vunpack.c.l.b16 %v2280
      %v2503 = vunpack.c.l.b16 %v2281
      %v2504 = vunpack.c.l.b16 %v2282
      %v2505 = vunpack.c.l.b16 %v2283
      %v2506 = vunpack.c.l.b16 %v2284
      %v2507 = vunpack.c.l.b16 %v2285
      %v2508 = vunpack.c.l.b16 %v2286
      %v2509 = vunpack.c.l.b16 %v2287
      %v2510 = vunpack.c.l.b16 %v2288
      %v2511 = vunpack.c.l.b16 %v2289
      %v2512 = vunpack.c.l.b16 %v2290
      %v2513 = vunpack.c.l.b16 %v2291
      %v2514 = vunpack.c.l.b16 %v2292
      %v2515 = vunpack.c.l.b16 %v2293
      %v2516 = vunpack.c.l.b16 %v2294
      %v2517 = vunpack.c.l.b16 %v2295
      %v2518 = vunpack.c.l.b16 %v2296
      %v2519 = vunpack.c.l.b16 %v2297
      %v2520 = vunpack.c.l.b16 %v2298
      %v2521 = vunpack.c.l.b16 %v2299
      %v2522 = vunpack.c.l.b16 %v2300
      %v2523 = vunpack.c.l.b16 %v2301
      %v2524 = vunpack.c.l.b16 %v2302
      %v2525 = vunpack.c.l.b16 %v2303
      %v2526 = vunpack.c.l.b16 %v2304
      %v2527 = vunpack.c.l.b16 %v2305
      %v2528 = vunpack.c.l.b16 %v2306
      %v2529 = vunpack.c.l.b16 %v2307
      %v2530 = vunpack.c.l.b16 %v2308
      %v2531 = vunpack.c.l.b16 %v2309
      %v2532 = vunpack.c.l.b16 %v2310
      %v2533 = vunpack.c.l.b16 %v2311
      %v2534 = vunpack.c.l.b16 %v2312
      %v2535 = vunpack.c.l.b16 %v2313
      %v2536 = vunpack.c.l.b16 %v2314
      %v2537 = vunpack.c.l.b16 %v2315
      %v2538 = vunpack.c.l.b16 %v2316
      %v2539 = vunpack.c.l.b16 %v2317
      %v2540 = vunpack.c.l.b16 %v2318
      %v2541 = vunpack.c.l.b16 %v2319
      %v2542 = vunpack.c.l.b16 %v2320
      %v2543 = vunpack.c.l.b16 %v2321
      %v2544 = vunpack.c.l.b16 %v2322
      %v2545 = vunpack.c.l.b16 %v2323
      %v2546 = vunpack.c.l.b16 %v2324
      %v2547 = vunpack.c.l.b16 %v2325
      %v2548 = vunpack.c.l.b16 %v2326
      %v2549 = vunpack.c.l.b16 %v2327
      %v2550 = vunpack.c.l.b16 %v2328
      %v2551 = vunpack.c.l.b16 %v2329
      %v2552 = vunpack.c.l.b16 %v2330
      %v2553 = vunpack.c.l.b16 %v2331
      %v2554 = vunpack.c.l.b16 %v2332
      %v2555 = vunpack.c.l.b16 %v2333
      %v2556 = vunpack.c.l.b16 %v2334
      %v2557 = vunpack.c.l.b16 %v2335
      %v2558 = vunpack.c.l.b16 %v2336
      %v2559 = vunpack.c.l.b16 %v2337
      %v2560 = vunpack.c.l.b16 %v2338
      %v2561 = vunpack.c.l.b16 %v2339
      %v2562 = vunpack.c.l.b16 %v2340
      %v2563 = vunpack.c.l.b16 %v2341
      %v2564 = vunpack.c.l.b16 %v2342
      %v2565 = vunpack.c.l.b16 %v2343
      %v2566 = vunpack.c.l.b16 %v2344
      %v2567 = vunpack.c.l.b16 %v2345
      %v2568 = vunpack.c.l.b16 %v2346
      %v2569 = vunpack.c.l.b16 %v2347
      %v2570 = vunpack.c.l.b16 %v2348
      %v2571 = vunpack.c.l.b16 %v2349
      %v2572 = vunpack.c.l.b16 %v2350
      %v2573 = vunpack.c.l.b16 %v2351
      %v2574 = vunpack.c.l.b16 %v2352
      %v2575 = vunpack.c.l.b16 %v2353
      %v2576 = vunpack.c.l.b16 %v2354
      %v2577 = vunpack.c.l.b16 %v2355
      %v2578 = vpack.c.b16 %v2483, %v2482
      %v2579 = vpack.c.b16 %v2485, %v2484
      %v2580 = vpack.c.b16 %v2487, %v2486
      %v2581 = vpack.c.b16 %v2489, %v2488
      %v2582 = vpack.c.b16 %v2491, %v2490
      %v2583 = vpack.c.b16 %v2493, %v2492
      %v2584 = vpack.c.b16 %v2495, %v2494
      %v2585 = vpack.c.b16 %v2497, %v2496
      %v2586 = vpack.c.b16 %v2499, %v2498
      %v2587 = vpack.c.b16 %v2501, %v2500
      %v2588 = vpack.c.b16 %v2503, %v2502
      %v2589 = vpack.c.b16 %v2505, %v2504
      %v2590 = vpack.c.b16 %v2507, %v2506
      %v2591 = vpack.c.b16 %v2509, %v2508
      %v2592 = vpack.c.b16 %v2511, %v2510
      %v2593 = vpack.c.b16 %v2513, %v2512
      %v2594 = vpack.c.b16 %v2515, %v2514
      %v2595 = vpack.c.b16 %v2517, %v2516
      %v2596 = vpack.c.b16 %v2519, %v2518
      %v2597 = vpack.c.b16 %v2521, %v2520
      %v2598 = vpack.c.b16 %v2523, %v2522
      %v2599 = vpack.c.b16 %v2525, %v2524
      %v2600 = vpack.c.b16 %v2527, %v2526
      %v2601 = vpack.c.b16 %v2529, %v2528
      %v2602 = vpack.c.b16 %v2531, %v2530
      %v2603 = vpack.c.b16 %v2533, %v2532
      %v2604 = vpack.c.b16 %v2535, %v2534
      %v2605 = vpack.c.b16 %v2537, %v2536
      %v2606 = vpack.c.b16 %v2539, %v2538
      %v2607 = vpack.c.b16 %v2541, %v2540
      %v2608 = vpack.c.b16 %v2543, %v2542
      %v2609 = vpack.c.b16 %v2545, %v2544
      %v2610 = vpack.c.b16 %v2547, %v2546
      %v2611 = vpack.c.b16 %v2549, %v2548
      %v2612 = vpack.c.b16 %v2551, %v2550
      %v2613 = vpack.c.b16 %v2553, %v2552
      %v2614 = vpack.c.b16 %v2555, %v2554
      %v2615 = vpack.c.b16 %v2557, %v2556
      %v2616 = vpack.c.b16 %v2559, %v2558
      %v2617 = vpack.c.b16 %v2561, %v2560
      %v2618 = vpack.c.b16 %v2563, %v2562
      %v2619 = vpack.c.b16 %v2565, %v2564
      %v2620 = vpack.c.b16 %v2567, %v2566
      %v2621 = vpack.c.b16 %v2569, %v2568
      %v2622 = vpack.c.b16 %v2571, %v2570
      %v2623 = vpack.c.b16 %v2573, %v2572
      %v2624 = vpack.c.b16 %v2575, %v2574
      %v2625 = vpack.c.b16 %v2577, %v2576
      %2674 = vmatprep.subr.bf16.mxu0 0
      %2675 = vmatpush1.bf16.msra.mxu0 %v2578
      %2676 = vmatprep.subr.bf16.mxu0 0
      %2677 = vmatpush1.bf16.msra.mxu0 %v2579
      %2678 = vmatprep.subr.bf16.mxu0 0
      %2679 = vmatpush1.bf16.msra.mxu0 %v2580
      %2680 = vmatprep.subr.bf16.mxu0 0
      %2681 = vmatpush1.bf16.msra.mxu0 %v2581
      %2682 = vmatprep.subr.bf16.mxu0 0
      %2683 = vmatpush1.bf16.msra.mxu0 %v2582
      %2684 = vmatprep.subr.bf16.mxu0 0
      %2685 = vmatpush1.bf16.msra.mxu0 %v2583
      %2686 = vmatprep.subr.bf16.mxu0 0
      %2687 = vmatpush1.bf16.msra.mxu0 %v2584
      %2688 = vmatprep.subr.bf16.mxu0 0
      %2689 = vmatpush1.bf16.msra.mxu0 %v2585
      %2690 = vmatprep.subr.bf16.mxu0 0
      %2691 = vmatpush1.bf16.msra.mxu0 %v2586
      %2692 = vmatprep.subr.bf16.mxu0 0
      %2693 = vmatpush1.bf16.msra.mxu0 %v2587
      %2694 = vmatprep.subr.bf16.mxu0 0
      %2695 = vmatpush1.bf16.msra.mxu0 %v2588
      %2696 = vmatprep.subr.bf16.mxu0 0
      %2697 = vmatpush1.bf16.msra.mxu0 %v2589
      %2698 = vmatprep.subr.bf16.mxu0 0
      %2699 = vmatpush1.bf16.msra.mxu0 %v2590
      %2700 = vmatprep.subr.bf16.mxu0 0
      %2701 = vmatpush1.bf16.msra.mxu0 %v2591
      %2702 = vmatprep.subr.bf16.mxu0 0
      %2703 = vmatpush1.bf16.msra.mxu0 %v2592
      %2704 = vmatprep.subr.bf16.mxu0 0
      %2705 = vmatpush1.bf16.msra.mxu0 %v2593
      %2706 = vmatprep.mubr.bf16.mxu0 %v2375
      %2707 = vmatmul.mubr.bf16.gmra.mrb[0].mxu0 %v2374
      %v2708 = vpop.f32.mrb[0].mxu0
      %v2709 = vadd.f32 0.0, %v2708
      %v2710 = vpop.f32.mrb[0].mxu0
      %v2711 = vpop.f32.mrb[0].mxu0
      %v2712 = vadd.f32 0.0, %v2711
      %v2713 = vpop.f32.mrb[0].mxu0
      %2714 = vdwg.mxu0
      %2715 = vmatprep.subr.bf16.mxu0 0
      %2716 = vmatpush1.bf16.msra.mxu0 %v2594
      %2717 = vmatprep.subr.bf16.mxu0 0
      %2718 = vmatpush1.bf16.msra.mxu0 %v2595
      %2719 = vmatprep.subr.bf16.mxu0 0
      %2720 = vmatpush1.bf16.msra.mxu0 %v2596
      %2721 = vmatprep.subr.bf16.mxu0 0
      %2722 = vmatpush1.bf16.msra.mxu0 %v2597
      %2723 = vmatprep.subr.bf16.mxu0 0
      %2724 = vmatpush1.bf16.msra.mxu0 %v2598
      %2725 = vmatprep.subr.bf16.mxu0 0
      %2726 = vmatpush1.bf16.msra.mxu0 %v2599
      %2727 = vmatprep.subr.bf16.mxu0 0
      %2728 = vmatpush1.bf16.msra.mxu0 %v2600
      %2729 = vmatprep.subr.bf16.mxu0 0
      %2730 = vmatpush1.bf16.msra.mxu0 %v2601
      %2731 = vmatprep.subr.bf16.mxu0 0
      %2732 = vmatpush1.bf16.msra.mxu0 %v2602
      %2733 = vmatprep.subr.bf16.mxu0 0
      %2734 = vmatpush1.bf16.msra.mxu0 %v2603
      %2735 = vmatprep.subr.bf16.mxu0 0
      %2736 = vmatpush1.bf16.msra.mxu0 %v2604
      %2737 = vmatprep.subr.bf16.mxu0 0
      %2738 = vmatpush1.bf16.msra.mxu0 %v2605
      %2739 = vmatprep.subr.bf16.mxu0 0
      %2740 = vmatpush1.bf16.msra.mxu0 %v2606
      %2741 = vmatprep.subr.bf16.mxu0 0
      %2742 = vmatpush1.bf16.msra.mxu0 %v2607
      %2743 = vmatprep.subr.bf16.mxu0 0
      %2744 = vmatpush1.bf16.msra.mxu0 %v2608
      %2745 = vmatprep.subr.bf16.mxu0 0
      %2746 = vmatpush1.bf16.msra.mxu0 %v2609
      %2747 = vmatprep.mubr.bf16.mxu0 %v2377
      %2748 = vmatmul.mubr.bf16.gmra.mrb[0].mxu0 %v2376
      %v2749 = vpop.f32.mrb[0].mxu0
      %v2750 = vadd.f32 %v2709, %v2749
      %v2751 = vpop.f32.mrb[0].mxu0
      %v2752 = vpop.f32.mrb[0].mxu0
      %v2753 = vadd.f32 %v2712, %v2752
      %v2754 = vpop.f32.mrb[0].mxu0
      %2755 = vdwg.mxu0
      %2756 = vmatprep.subr.bf16.mxu0 0
      %2757 = vmatpush1.bf16.msra.mxu0 %v2610
      %2758 = vmatprep.subr.bf16.mxu0 0
      %2759 = vmatpush1.bf16.msra.mxu0 %v2611
      %2760 = vmatprep.subr.bf16.mxu0 0
      %2761 = vmatpush1.bf16.msra.mxu0 %v2612
      %2762 = vmatprep.subr.bf16.mxu0 0
      %2763 = vmatpush1.bf16.msra.mxu0 %v2613
      %2764 = vmatprep.subr.bf16.mxu0 0
      %2765 = vmatpush1.bf16.msra.mxu0 %v2614
      %2766 = vmatprep.subr.bf16.mxu0 0
      %2767 = vmatpush1.bf16.msra.mxu0 %v2615
      %2768 = vmatprep.subr.bf16.mxu0 0
      %2769 = vmatpush1.bf16.msra.mxu0 %v2616
      %2770 = vmatprep.subr.bf16.mxu0 0
      %2771 = vmatpush1.bf16.msra.mxu0 %v2617
      %2772 = vmatprep.subr.bf16.mxu0 0
      %2773 = vmatpush1.bf16.msra.mxu0 %v2618
      %2774 = vmatprep.subr.bf16.mxu0 0
      %2775 = vmatpush1.bf16.msra.mxu0 %v2619
      %2776 = vmatprep.subr.bf16.mxu0 0
      %2777 = vmatpush1.bf16.msra.mxu0 %v2620
      %2778 = vmatprep.subr.bf16.mxu0 0
      %2779 = vmatpush1.bf16.msra.mxu0 %v2621
      %2780 = vmatprep.subr.bf16.mxu0 0
      %2781 = vmatpush1.bf16.msra.mxu0 %v2622
      %2782 = vmatprep.subr.bf16.mxu0 0
      %2783 = vmatpush1.bf16.msra.mxu0 %v2623
      %2784 = vmatprep.subr.bf16.mxu0 0
      %2785 = vmatpush1.bf16.msra.mxu0 %v2624
      %2786 = vmatprep.subr.bf16.mxu0 0
      %2787 = vmatpush1.bf16.msra.mxu0 %v2625
      %2788 = vmatprep.mubr.bf16.mxu0 %v2379
      %2789 = vmatmul.mubr.bf16.gmra.mrb[0].mxu0 %v2378
      %v2790 = vpop.f32.mrb[0].mxu0
      %v2791 = vadd.f32 %v2750, %v2790
      %v2792 = vpop.f32.mrb[0].mxu0
      %v2793 = vpop.f32.mrb[0].mxu0
      %v2794 = vadd.f32 %v2753, %v2793
      %v2795 = vpop.f32.mrb[0].mxu0
      %2796 = vdwg.mxu0
      %v2797 = vmul.f32 %v2791, %v2791
      %v2798 = vmul.f32 %v2794, %v2794
      %2799 = vadd.xlane.f32.xlu0 %v2797
      %v2800 = vpop.xlane.xlu0 %2799
      %2801 = vadd.xlane.f32.xlu0 %v2798
      %v2802 = vpop.xlane.xlu0 %2801
      %v2803 = vmax.f32 %v2800, 1e-24
      %v2804 = vmax.f32 %v2802, 1e-24
      %v2805 = vrsqrt.pop %v2803
      %v2806 = vrsqrt.pop %v2804
      %v2807 = vmul.f32 %v2791, %v2805
      %v2808 = vmul.f32 %v2794, %v2806
      %v2809 = vld [vmem:[%s4] sm:$0xff]
      %v2810 = vld [vmem:[%s4 + $0x8] sm:$0xff]
      %v2811 = vld [vmem:[%s4 + $0x10] sm:$0xff]
      %v2812 = vld [vmem:[%s4 + $0x18] sm:$0xff]
      %v2813 = vld [vmem:[%s4 + $0x20] sm:$0xff]
      %v2814 = vld [vmem:[%s4 + $0x28] sm:$0xff]
      %v2815 = vld [vmem:[%s4 + $0x30] sm:$0xff]
      %v2816 = vld [vmem:[%s4 + $0x38] sm:$0xff]
      %v2817 = vld [vmem:[%s4 + $0x40] sm:$0xff]
      %v2818 = vld [vmem:[%s4 + $0x48] sm:$0xff]
      %v2819 = vld [vmem:[%s4 + $0x50] sm:$0xff]
      %v2820 = vld [vmem:[%s4 + $0x58] sm:$0xff]
      %v2821 = vld [vmem:[%s4 + $0x60] sm:$0xff]
      %v2822 = vld [vmem:[%s4 + $0x68] sm:$0xff]
      %v2823 = vld [vmem:[%s4 + $0x70] sm:$0xff]
      %v2824 = vld [vmem:[%s4 + $0x78] sm:$0xff]
      %v2825 = vpack.c.bf16 %v2808, %v2807
      %v2826 = vld [vmem:[%s5] sm:$0x3]
      %v2828 = vlaneseq
      %v2829 = vshrl.u32 %v2828, 7
      %v2830 = vsub.s32 0, %v2829
      %v2831 = vrot.slane %v2826, %v2830
      %v2832 = vlaneseq
      %v2833 = vshrl.u32 %v2832, 7
      %v2834 = vsub.s32 1, %v2833
      %v2835 = vrot.slane %v2826, %v2834
      %v2854 = vunpack.c.l.b16 %v2809
      %v2855 = vunpack.c.h.b16 %v2809
      %v2856 = vunpack.c.l.b16 %v2810
      %v2857 = vunpack.c.h.b16 %v2810
      %v2858 = vunpack.c.l.b16 %v2811
      %v2859 = vunpack.c.h.b16 %v2811
      %v2860 = vunpack.c.l.b16 %v2812
      %v2861 = vunpack.c.h.b16 %v2812
      %v2862 = vunpack.c.l.b16 %v2813
      %v2863 = vunpack.c.h.b16 %v2813
      %v2864 = vunpack.c.l.b16 %v2814
      %v2865 = vunpack.c.h.b16 %v2814
      %v2866 = vunpack.c.l.b16 %v2815
      %v2867 = vunpack.c.h.b16 %v2815
      %v2868 = vunpack.c.l.b16 %v2816
      %v2869 = vunpack.c.h.b16 %v2816
      %v2870 = vunpack.c.l.b16 %v2817
      %v2871 = vunpack.c.h.b16 %v2817
      %v2872 = vunpack.c.l.b16 %v2818
      %v2873 = vunpack.c.h.b16 %v2818
      %v2874 = vunpack.c.l.b16 %v2819
      %v2875 = vunpack.c.h.b16 %v2819
      %v2876 = vunpack.c.l.b16 %v2820
      %v2877 = vunpack.c.h.b16 %v2820
      %v2878 = vunpack.c.l.b16 %v2821
      %v2879 = vunpack.c.h.b16 %v2821
      %v2880 = vunpack.c.l.b16 %v2822
      %v2881 = vunpack.c.h.b16 %v2822
      %v2882 = vunpack.c.l.b16 %v2823
      %v2883 = vunpack.c.h.b16 %v2823
      %v2884 = vunpack.c.l.b16 %v2824
      %v2885 = vunpack.c.h.b16 %v2824
      %v2886 = vpack.c.b16 %v2856, %v2854
      %v2887 = vpack.c.b16 %v2857, %v2855
      %v2888 = vpack.c.b16 %v2860, %v2858
      %v2889 = vpack.c.b16 %v2861, %v2859
      %v2890 = vpack.c.b16 %v2864, %v2862
      %v2891 = vpack.c.b16 %v2865, %v2863
      %v2892 = vpack.c.b16 %v2868, %v2866
      %v2893 = vpack.c.b16 %v2869, %v2867
      %v2894 = vpack.c.b16 %v2872, %v2870
      %v2895 = vpack.c.b16 %v2873, %v2871
      %v2896 = vpack.c.b16 %v2876, %v2874
      %v2897 = vpack.c.b16 %v2877, %v2875
      %v2898 = vpack.c.b16 %v2880, %v2878
      %v2899 = vpack.c.b16 %v2881, %v2879
      %v2900 = vpack.c.b16 %v2884, %v2882
      %v2901 = vpack.c.b16 %v2885, %v2883
      %2918 = vmatprep.subr.bf16.mxu0 %v2887
      %2919 = vmatpush1.bf16.msra.mxu0 %v2886
      %2920 = vmatprep.subr.bf16.mxu0 %v2889
      %2921 = vmatpush1.bf16.msra.mxu0 %v2888
      %2922 = vmatprep.subr.bf16.mxu0 %v2891
      %2923 = vmatpush1.bf16.msra.mxu0 %v2890
      %2924 = vmatprep.subr.bf16.mxu0 %v2893
      %2925 = vmatpush1.bf16.msra.mxu0 %v2892
      %2926 = vmatprep.subr.bf16.mxu0 %v2895
      %2927 = vmatpush1.bf16.msra.mxu0 %v2894
      %2928 = vmatprep.subr.bf16.mxu0 %v2897
      %2929 = vmatpush1.bf16.msra.mxu0 %v2896
      %2930 = vmatprep.subr.bf16.mxu0 %v2899
      %2931 = vmatpush1.bf16.msra.mxu0 %v2898
      %2932 = vmatprep.subr.bf16.mxu0 %v2901
      %2933 = vmatpush1.bf16.msra.mxu0 %v2900
      %2934 = vmatprep.subr.bf16.mxu0 0
      %2935 = vmatpush1.bf16.msra.mxu0 0
      %2936 = vmatprep.subr.bf16.mxu0 0
      %2937 = vmatpush1.bf16.msra.mxu0 0
      %2938 = vmatprep.subr.bf16.mxu0 0
      %2939 = vmatpush1.bf16.msra.mxu0 0
      %2940 = vmatprep.subr.bf16.mxu0 0
      %2941 = vmatpush1.bf16.msra.mxu0 0
      %2942 = vmatprep.subr.bf16.mxu0 0
      %2943 = vmatpush1.bf16.msra.mxu0 0
      %2944 = vmatprep.subr.bf16.mxu0 0
      %2945 = vmatpush1.bf16.msra.mxu0 0
      %2946 = vmatprep.subr.bf16.mxu0 0
      %2947 = vmatpush1.bf16.msra.mxu0 0
      %2948 = vmatprep.subr.bf16.mxu0 0
      %2949 = vmatpush1.bf16.msra.mxu0 0
      %2950 = vmatprep.mubr.bf16.mxu0 0
      %2951 = vmatmul.mubr.bf16.gmra.mrb[0].mxu0 %v2825
      %v2952 = vpop.f32.mrb[0].mxu0
      %v2953 = vadd.f32 %v2831, %v2952
      %v2954 = vpop.f32.mrb[0].mxu0
      %v2955 = vadd.f32 %v2835, %v2954
      %v2956 = vpop.f32.mrb[0].mxu0
      %v2957 = vadd.f32 %v2831, %v2956
      %v2958 = vpop.f32.mrb[0].mxu0
      %v2959 = vadd.f32 %v2835, %v2958
      %2960 = vdwg.mxu0
      %v2961 = vadd.f32 %v2953, %v2957
      %v2962 = vrot.slane %v2961, 4
      %v2963 = vadd.f32 %v2961, %v2962
      %v2964 = vrot.slane %v2963, 2
      %v2965 = vadd.f32 %v2963, %v2964
      %v2966 = vrot.slane %v2965, 1
      %v2967 = vadd.f32 %v2965, %v2966
      %v2968 = vadd.f32 %v2955, %v2959
      %v2969 = vrot.slane %v2968, 4
      %v2970 = vadd.f32 %v2968, %v2969
      %v2971 = vrot.slane %v2970, 2
      %v2972 = vadd.f32 %v2970, %v2971
      %v2973 = vrot.slane %v2972, 1
      %v2974 = vadd.f32 %v2972, %v2973
      %v2975 = vrcp.pop 16.0
      %v2976 = vmul.f32 %v2967, %v2975
      %v2977 = vmul.f32 %v2974, %v2975
      %v2978 = vsub.f32 %v2953, %v2976
      %v2979 = vsub.f32 %v2955, %v2977
      %v2980 = vsub.f32 %v2957, %v2976
      %v2981 = vsub.f32 %v2959, %v2977
      %v2982 = vmul.f32 %v2978, %v2978
      %v2983 = vmul.f32 %v2979, %v2979
      %v2984 = vmul.f32 %v2980, %v2980
      %v2985 = vmul.f32 %v2981, %v2981
      %v2986 = vadd.f32 %v2982, %v2984
      %v2987 = vrot.slane %v2986, 4
      %v2988 = vadd.f32 %v2986, %v2987
      %v2989 = vrot.slane %v2988, 2
      %v2990 = vadd.f32 %v2988, %v2989
      %v2991 = vrot.slane %v2990, 1
      %v2992 = vadd.f32 %v2990, %v2991
      %v2993 = vadd.f32 %v2983, %v2985
      %v2994 = vrot.slane %v2993, 4
      %v2995 = vadd.f32 %v2993, %v2994
      %v2996 = vrot.slane %v2995, 2
      %v2997 = vadd.f32 %v2995, %v2996
      %v2998 = vrot.slane %v2997, 1
      %v2999 = vadd.f32 %v2997, %v2998
      %v3000 = vmul.f32 %v2992, %v2975
      %v3001 = vmul.f32 %v2999, %v2975
      %v3002 = vadd.f32 %v3000, 1e-05
      %v3003 = vadd.f32 %v3001, 1e-05
      %v3004 = vrsqrt.pop %v3002
      %v3005 = vrsqrt.pop %v3003
      %v3006 = vmul.f32 %v2978, %v3004
      %v3007 = vmul.f32 %v2979, %v3005
      %v3008 = vmul.f32 %v2980, %v3004
      %v3009 = vmul.f32 %v2981, %v3005
      %v3010 = vmul.f32 %v3006, 0.5
      %v3011 = vmul.f32 %v3007, 0.5
      %v3012 = vmul.f32 %v3008, 0.5
      %v3013 = vmul.f32 %v3009, 0.5
      %v3014 = vmul.f32 %v3006, 0.70710677
      %v3015 = vmul.f32 %v3007, 0.70710677
      %v3016 = vmul.f32 %v3008, 0.70710677
      %v3017 = vmul.f32 %v3009, 0.70710677
      %v3018 = verf.f32.pop %v3014
      %v3019 = verf.f32.pop %v3015
      %v3020 = verf.f32.pop %v3016
      %v3021 = verf.f32.pop %v3017
      %v3022 = vadd.f32 %v3018, 1.0
      %v3023 = vadd.f32 %v3019, 1.0
      %v3024 = vadd.f32 %v3020, 1.0
      %v3025 = vadd.f32 %v3021, 1.0
      %v3026 = vmul.f32 %v3010, %v3022
      %v3027 = vmul.f32 %v3011, %v3023
      %v3028 = vmul.f32 %v3012, %v3024
      %v3029 = vmul.f32 %v3013, %v3025
      %v3030 = vld [vmem:[#allocation3] sm:$0xff]
      %v3031 = vld [vmem:[#allocation3 + $0x8] sm:$0xff]
      %v3032 = vld [vmem:[#allocation3 + $0x10] sm:$0xff]
      %v3033 = vld [vmem:[#allocation3 + $0x18] sm:$0xff]
      %v3034 = vld [vmem:[#allocation3 + $0x20] sm:$0xff]
      %v3035 = vld [vmem:[#allocation3 + $0x28] sm:$0xff]
      %v3036 = vld [vmem:[#allocation3 + $0x30] sm:$0xff]
      %v3037 = vld [vmem:[#allocation3 + $0x38] sm:$0xff]
      %v3038 = vld [vmem:[#allocation3 + $0x40] sm:$0xff]
      %v3039 = vld [vmem:[#allocation3 + $0x48] sm:$0xff]
      %v3040 = vld [vmem:[#allocation3 + $0x50] sm:$0xff]
      %v3041 = vld [vmem:[#allocation3 + $0x58] sm:$0xff]
      %v3042 = vld [vmem:[#allocation3 + $0x60] sm:$0xff]
      %v3043 = vld [vmem:[#allocation3 + $0x68] sm:$0xff]
      %v3044 = vld [vmem:[#allocation3 + $0x70] sm:$0xff]
      %v3045 = vld [vmem:[#allocation3 + $0x78] sm:$0xff]
      %v3046 = vld [vmem:[#allocation3 + $0x80] sm:$0xff]
      %v3047 = vld [vmem:[#allocation3 + $0x88] sm:$0xff]
      %v3048 = vld [vmem:[#allocation3 + $0x90] sm:$0xff]
      %v3049 = vld [vmem:[#allocation3 + $0x98] sm:$0xff]
      %v3050 = vld [vmem:[#allocation3 + $0xa0] sm:$0xff]
      %v3051 = vld [vmem:[#allocation3 + $0xa8] sm:$0xff]
      %v3052 = vld [vmem:[#allocation3 + $0xb0] sm:$0xff]
      %v3053 = vld [vmem:[#allocation3 + $0xb8] sm:$0xff]
      %v3054 = vld [vmem:[#allocation3 + $0xc0] sm:$0xff]
      %v3055 = vld [vmem:[#allocation3 + $0xc8] sm:$0xff]
      %v3056 = vld [vmem:[#allocation3 + $0xd0] sm:$0xff]
      %v3057 = vld [vmem:[#allocation3 + $0xd8] sm:$0xff]
      %v3058 = vld [vmem:[#allocation3 + $0xe0] sm:$0xff]
      %v3059 = vld [vmem:[#allocation3 + $0xe8] sm:$0xff]
      %v3060 = vld [vmem:[#allocation3 + $0xf0] sm:$0xff]
      %v3061 = vld [vmem:[#allocation3 + $0xf8] sm:$0xff]
      %v3062 = vpack.c.bf16 %v3028, %v3026
      %v3063 = vpack.c.bf16 %v3029, %v3027
      %v3064 = vld [vmem:[%s7] sm:$0x3]
      %v3066 = vlaneseq
      %v3067 = vshrl.u32 %v3066, 7
      %v3068 = vsub.s32 0, %v3067
      %v3069 = vrot.slane %v3064, %v3068
      %v3070 = vlaneseq
      %v3071 = vshrl.u32 %v3070, 7
      %v3072 = vsub.s32 1, %v3071
      %v3073 = vrot.slane %v3064, %v3072
      %v3108 = vunpack.c.l.b16 %v3030
      %v3109 = vunpack.c.h.b16 %v3030
      %v3110 = vunpack.c.l.b16 %v3031
      %v3111 = vunpack.c.h.b16 %v3031
      %v3112 = vunpack.c.l.b16 %v3032
      %v3113 = vunpack.c.h.b16 %v3032
      %v3114 = vunpack.c.l.b16 %v3033
      %v3115 = vunpack.c.h.b16 %v3033
      %v3116 = vunpack.c.l.b16 %v3034
      %v3117 = vunpack.c.h.b16 %v3034
      %v3118 = vunpack.c.l.b16 %v3035
      %v3119 = vunpack.c.h.b16 %v3035
      %v3120 = vunpack.c.l.b16 %v3036
      %v3121 = vunpack.c.h.b16 %v3036
      %v3122 = vunpack.c.l.b16 %v3037
      %v3123 = vunpack.c.h.b16 %v3037
      %v3124 = vunpack.c.l.b16 %v3038
      %v3125 = vunpack.c.h.b16 %v3038
      %v3126 = vunpack.c.l.b16 %v3039
      %v3127 = vunpack.c.h.b16 %v3039
      %v3128 = vunpack.c.l.b16 %v3040
      %v3129 = vunpack.c.h.b16 %v3040
      %v3130 = vunpack.c.l.b16 %v3041
      %v3131 = vunpack.c.h.b16 %v3041
      %v3132 = vunpack.c.l.b16 %v3042
      %v3133 = vunpack.c.h.b16 %v3042
      %v3134 = vunpack.c.l.b16 %v3043
      %v3135 = vunpack.c.h.b16 %v3043
      %v3136 = vunpack.c.l.b16 %v3044
      %v3137 = vunpack.c.h.b16 %v3044
      %v3138 = vunpack.c.l.b16 %v3045
      %v3139 = vunpack.c.h.b16 %v3045
      %v3140 = vunpack.c.l.b16 %v3046
      %v3141 = vunpack.c.h.b16 %v3046
      %v3142 = vunpack.c.l.b16 %v3047
      %v3143 = vunpack.c.h.b16 %v3047
      %v3144 = vunpack.c.l.b16 %v3048
      %v3145 = vunpack.c.h.b16 %v3048
      %v3146 = vunpack.c.l.b16 %v3049
      %v3147 = vunpack.c.h.b16 %v3049
      %v3148 = vunpack.c.l.b16 %v3050
      %v3149 = vunpack.c.h.b16 %v3050
      %v3150 = vunpack.c.l.b16 %v3051
      %v3151 = vunpack.c.h.b16 %v3051
      %v3152 = vunpack.c.l.b16 %v3052
      %v3153 = vunpack.c.h.b16 %v3052
      %v3154 = vunpack.c.l.b16 %v3053
      %v3155 = vunpack.c.h.b16 %v3053
      %v3156 = vunpack.c.l.b16 %v3054
      %v3157 = vunpack.c.h.b16 %v3054
      %v3158 = vunpack.c.l.b16 %v3055
      %v3159 = vunpack.c.h.b16 %v3055
      %v3160 = vunpack.c.l.b16 %v3056
      %v3161 = vunpack.c.h.b16 %v3056
      %v3162 = vunpack.c.l.b16 %v3057
      %v3163 = vunpack.c.h.b16 %v3057
      %v3164 = vunpack.c.l.b16 %v3058
      %v3165 = vunpack.c.h.b16 %v3058
      %v3166 = vunpack.c.l.b16 %v3059
      %v3167 = vunpack.c.h.b16 %v3059
      %v3168 = vunpack.c.l.b16 %v3060
      %v3169 = vunpack.c.h.b16 %v3060
      %v3170 = vunpack.c.l.b16 %v3061
      %v3171 = vunpack.c.h.b16 %v3061
      %v3172 = vpack.c.b16 %v3110, %v3108
      %v3173 = vpack.c.b16 %v3111, %v3109
      %v3174 = vpack.c.b16 %v3114, %v3112
      %v3175 = vpack.c.b16 %v3115, %v3113
      %v3176 = vpack.c.b16 %v3118, %v3116
      %v3177 = vpack.c.b16 %v3119, %v3117
      %v3178 = vpack.c.b16 %v3122, %v3120
      %v3179 = vpack.c.b16 %v3123, %v3121
      %v3180 = vpack.c.b16 %v3126, %v3124
      %v3181 = vpack.c.b16 %v3127, %v3125
      %v3182 = vpack.c.b16 %v3130, %v3128
      %v3183 = vpack.c.b16 %v3131, %v3129
      %v3184 = vpack.c.b16 %v3134, %v3132
      %v3185 = vpack.c.b16 %v3135, %v3133
      %v3186 = vpack.c.b16 %v3138, %v3136
      %v3187 = vpack.c.b16 %v3139, %v3137
      %v3188 = vpack.c.b16 %v3142, %v3140
      %v3189 = vpack.c.b16 %v3143, %v3141
      %v3190 = vpack.c.b16 %v3146, %v3144
      %v3191 = vpack.c.b16 %v3147, %v3145
      %v3192 = vpack.c.b16 %v3150, %v3148
      %v3193 = vpack.c.b16 %v3151, %v3149
      %v3194 = vpack.c.b16 %v3154, %v3152
      %v3195 = vpack.c.b16 %v3155, %v3153
      %v3196 = vpack.c.b16 %v3158, %v3156
      %v3197 = vpack.c.b16 %v3159, %v3157
      %v3198 = vpack.c.b16 %v3162, %v3160
      %v3199 = vpack.c.b16 %v3163, %v3161
      %v3200 = vpack.c.b16 %v3166, %v3164
      %v3201 = vpack.c.b16 %v3167, %v3165
      %v3202 = vpack.c.b16 %v3170, %v3168
      %v3203 = vpack.c.b16 %v3171, %v3169
      %3236 = vmatprep.subr.bf16.mxu0 %v3173
      %3237 = vmatpush1.bf16.msra.mxu0 %v3172
      %3238 = vmatprep.subr.bf16.mxu0 %v3175
      %3239 = vmatpush1.bf16.msra.mxu0 %v3174
      %3240 = vmatprep.subr.bf16.mxu0 %v3177
      %3241 = vmatpush1.bf16.msra.mxu0 %v3176
      %3242 = vmatprep.subr.bf16.mxu0 %v3179
      %3243 = vmatpush1.bf16.msra.mxu0 %v3178
      %3244 = vmatprep.subr.bf16.mxu0 %v3181
      %3245 = vmatpush1.bf16.msra.mxu0 %v3180
      %3246 = vmatprep.subr.bf16.mxu0 %v3183
      %3247 = vmatpush1.bf16.msra.mxu0 %v3182
      %3248 = vmatprep.subr.bf16.mxu0 %v3185
      %3249 = vmatpush1.bf16.msra.mxu0 %v3184
      %3250 = vmatprep.subr.bf16.mxu0 %v3187
      %3251 = vmatpush1.bf16.msra.mxu0 %v3186
      %3252 = vmatprep.subr.bf16.mxu0 %v3189
      %3253 = vmatpush1.bf16.msra.mxu0 %v3188
      %3254 = vmatprep.subr.bf16.mxu0 %v3191
      %3255 = vmatpush1.bf16.msra.mxu0 %v3190
      %3256 = vmatprep.subr.bf16.mxu0 %v3193
      %3257 = vmatpush1.bf16.msra.mxu0 %v3192
      %3258 = vmatprep.subr.bf16.mxu0 %v3195
      %3259 = vmatpush1.bf16.msra.mxu0 %v3194
      %3260 = vmatprep.subr.bf16.mxu0 %v3197
      %3261 = vmatpush1.bf16.msra.mxu0 %v3196
      %3262 = vmatprep.subr.bf16.mxu0 %v3199
      %3263 = vmatpush1.bf16.msra.mxu0 %v3198
      %3264 = vmatprep.subr.bf16.mxu0 %v3201
      %3265 = vmatpush1.bf16.msra.mxu0 %v3200
      %3266 = vmatprep.subr.bf16.mxu0 %v3203
      %3267 = vmatpush1.bf16.msra.mxu0 %v3202
      %3268 = vmatprep.mubr.bf16.mxu0 %v3063
      %3269 = vmatmul.mubr.bf16.gmra.mrb[0].mxu0 %v3062
      %v3270 = vpop.f32.mrb[0].mxu0
      %v3271 = vadd.f32 %v3069, %v3270
      %v3272 = vpop.f32.mrb[0].mxu0
      %v3273 = vadd.f32 %v3073, %v3272
      %v3274 = vpop.f32.mrb[0].mxu0
      %v3275 = vadd.f32 %v3069, %v3274
      %v3276 = vpop.f32.mrb[0].mxu0
      %v3277 = vadd.f32 %v3073, %v3276
      %3278 = vdwg.mxu0
      %v3279 = vadd.f32 %v3271, %v3275
      %v3280 = vrot.slane %v3279, 4
      %v3281 = vadd.f32 %v3279, %v3280
      %v3282 = vrot.slane %v3281, 2
      %v3283 = vadd.f32 %v3281, %v3282
      %v3284 = vrot.slane %v3283, 1
      %v3285 = vadd.f32 %v3283, %v3284
      %v3286 = vadd.f32 %v3273, %v3277
      %v3287 = vrot.slane %v3286, 4
      %v3288 = vadd.f32 %v3286, %v3287
      %v3289 = vrot.slane %v3288, 2
      %v3290 = vadd.f32 %v3288, %v3289
      %v3291 = vrot.slane %v3290, 1
      %v3292 = vadd.f32 %v3290, %v3291
      %v3293 = vmul.f32 %v3285, %v2975
      %v3294 = vmul.f32 %v3292, %v2975
      %v3295 = vsub.f32 %v3271, %v3293
      %v3296 = vsub.f32 %v3273, %v3294
      %v3297 = vsub.f32 %v3275, %v3293
      %v3298 = vsub.f32 %v3277, %v3294
      %v3299 = vmul.f32 %v3295, %v3295
      %v3300 = vmul.f32 %v3296, %v3296
      %v3301 = vmul.f32 %v3297, %v3297
      %v3302 = vmul.f32 %v3298, %v3298
      %v3303 = vadd.f32 %v3299, %v3301
      %v3304 = vrot.slane %v3303, 4
      %v3305 = vadd.f32 %v3303, %v3304
      %v3306 = vrot.slane %v3305, 2
      %v3307 = vadd.f32 %v3305, %v3306
      %v3308 = vrot.slane %v3307, 1
      %v3309 = vadd.f32 %v3307, %v3308
      %v3310 = vadd.f32 %v3300, %v3302
      %v3311 = vrot.slane %v3310, 4
      %v3312 = vadd.f32 %v3310, %v3311
      %v3313 = vrot.slane %v3312, 2
      %v3314 = vadd.f32 %v3312, %v3313
      %v3315 = vrot.slane %v3314, 1
      %v3316 = vadd.f32 %v3314, %v3315
      %v3317 = vmul.f32 %v3309, %v2975
      %v3318 = vmul.f32 %v3316, %v2975
      %v3319 = vadd.f32 %v3317, 1e-05
      %v3320 = vadd.f32 %v3318, 1e-05
      %v3321 = vrsqrt.pop %v3319
      %v3322 = vrsqrt.pop %v3320
      %v3323 = vmul.f32 %v3295, %v3321
      %v3324 = vmul.f32 %v3296, %v3322
      %v3325 = vmul.f32 %v3297, %v3321
      %v3326 = vmul.f32 %v3298, %v3322
      %v3327 = vmul.f32 %v3323, 0.5
      %v3328 = vmul.f32 %v3324, 0.5
      %v3329 = vmul.f32 %v3325, 0.5
      %v3330 = vmul.f32 %v3326, 0.5
      %v3331 = vmul.f32 %v3323, 0.70710677
      %v3332 = vmul.f32 %v3324, 0.70710677
      %v3333 = vmul.f32 %v3325, 0.70710677
      %v3334 = vmul.f32 %v3326, 0.70710677
      %v3335 = verf.f32.pop %v3331
      %v3336 = verf.f32.pop %v3332
      %v3337 = verf.f32.pop %v3333
      %v3338 = verf.f32.pop %v3334
      %v3339 = vadd.f32 %v3335, 1.0
      %v3340 = vadd.f32 %v3336, 1.0
      %v3341 = vadd.f32 %v3337, 1.0
      %v3342 = vadd.f32 %v3338, 1.0
      %v3343 = vmul.f32 %v3327, %v3339
      %v3344 = vmul.f32 %v3328, %v3340
      %v3345 = vmul.f32 %v3329, %v3341
      %v3346 = vmul.f32 %v3330, %v3342
      %v3347 = vld [vmem:[#allocation6] sm:$0xff]
      %v3348 = vld [vmem:[#allocation6 + $0x8] sm:$0xff]
      %v3349 = vld [vmem:[#allocation6 + $0x10] sm:$0xff]
      %v3350 = vld [vmem:[#allocation6 + $0x18] sm:$0xff]
      %v3351 = vld [vmem:[#allocation6 + $0x20] sm:$0xff]
      %v3352 = vld [vmem:[#allocation6 + $0x28] sm:$0xff]
      %v3353 = vld [vmem:[#allocation6 + $0x30] sm:$0xff]
      %v3354 = vld [vmem:[#allocation6 + $0x38] sm:$0xff]
      %v3355 = vld [vmem:[#allocation6 + $0x40] sm:$0xff]
      %v3356 = vld [vmem:[#allocation6 + $0x48] sm:$0xff]
      %v3357 = vld [vmem:[#allocation6 + $0x50] sm:$0xff]
      %v3358 = vld [vmem:[#allocation6 + $0x58] sm:$0xff]
      %v3359 = vld [vmem:[#allocation6 + $0x60] sm:$0xff]
      %v3360 = vld [vmem:[#allocation6 + $0x68] sm:$0xff]
      %v3361 = vld [vmem:[#allocation6 + $0x70] sm:$0xff]
      %v3362 = vld [vmem:[#allocation6 + $0x78] sm:$0xff]
      %v3363 = vld [vmem:[#allocation6 + $0x80] sm:$0xff]
      %v3364 = vld [vmem:[#allocation6 + $0x88] sm:$0xff]
      %v3365 = vld [vmem:[#allocation6 + $0x90] sm:$0xff]
      %v3366 = vld [vmem:[#allocation6 + $0x98] sm:$0xff]
      %v3367 = vld [vmem:[#allocation6 + $0xa0] sm:$0xff]
      %v3368 = vld [vmem:[#allocation6 + $0xa8] sm:$0xff]
      %v3369 = vld [vmem:[#allocation6 + $0xb0] sm:$0xff]
      %v3370 = vld [vmem:[#allocation6 + $0xb8] sm:$0xff]
      %v3371 = vld [vmem:[#allocation6 + $0xc0] sm:$0xff]
      %v3372 = vld [vmem:[#allocation6 + $0xc8] sm:$0xff]
      %v3373 = vld [vmem:[#allocation6 + $0xd0] sm:$0xff]
      %v3374 = vld [vmem:[#allocation6 + $0xd8] sm:$0xff]
      %v3375 = vld [vmem:[#allocation6 + $0xe0] sm:$0xff]
      %v3376 = vld [vmem:[#allocation6 + $0xe8] sm:$0xff]
      %v3377 = vld [vmem:[#allocation6 + $0xf0] sm:$0xff]
      %v3378 = vld [vmem:[#allocation6 + $0xf8] sm:$0xff]
      %v3379 = vpack.c.bf16 %v3345, %v3343
      %v3380 = vpack.c.bf16 %v3346, %v3344
      %v3381 = vld [vmem:[%s9] sm:$0x3]
      %v3383 = vlaneseq
      %v3384 = vshrl.u32 %v3383, 7
      %v3385 = vsub.s32 0, %v3384
      %v3386 = vrot.slane %v3381, %v3385
      %v3387 = vlaneseq
      %v3388 = vshrl.u32 %v3387, 7
      %v3389 = vsub.s32 1, %v3388
      %v3390 = vrot.slane %v3381, %v3389
      %v3425 = vunpack.c.l.b16 %v3347
      %v3426 = vunpack.c.h.b16 %v3347
      %v3427 = vunpack.c.l.b16 %v3348
      %v3428 = vunpack.c.h.b16 %v3348
      %v3429 = vunpack.c.l.b16 %v3349
      %v3430 = vunpack.c.h.b16 %v3349
      %v3431 = vunpack.c.l.b16 %v3350
      %v3432 = vunpack.c.h.b16 %v3350
      %v3433 = vunpack.c.l.b16 %v3351
      %v3434 = vunpack.c.h.b16 %v3351
      %v3435 = vunpack.c.l.b16 %v3352
      %v3436 = vunpack.c.h.b16 %v3352
      %v3437 = vunpack.c.l.b16 %v3353
      %v3438 = vunpack.c.h.b16 %v3353
      %v3439 = vunpack.c.l.b16 %v3354
      %v3440 = vunpack.c.h.b16 %v3354
      %v3441 = vunpack.c.l.b16 %v3355
      %v3442 = vunpack.c.h.b16 %v3355
      %v3443 = vunpack.c.l.b16 %v3356
      %v3444 = vunpack.c.h.b16 %v3356
      %v3445 = vunpack.c.l.b16 %v3357
      %v3446 = vunpack.c.h.b16 %v3357
      %v3447 = vunpack.c.l.b16 %v3358
      %v3448 = vunpack.c.h.b16 %v3358
      %v3449 = vunpack.c.l.b16 %v3359
      %v3450 = vunpack.c.h.b16 %v3359
      %v3451 = vunpack.c.l.b16 %v3360
      %v3452 = vunpack.c.h.b16 %v3360
      %v3453 = vunpack.c.l.b16 %v3361
      %v3454 = vunpack.c.h.b16 %v3361
      %v3455 = vunpack.c.l.b16 %v3362
      %v3456 = vunpack.c.h.b16 %v3362
      %v3457 = vunpack.c.l.b16 %v3363
      %v3458 = vunpack.c.h.b16 %v3363
      %v3459 = vunpack.c.l.b16 %v3364
      %v3460 = vunpack.c.h.b16 %v3364
      %v3461 = vunpack.c.l.b16 %v3365
      %v3462 = vunpack.c.h.b16 %v3365
      %v3463 = vunpack.c.l.b16 %v3366
      %v3464 = vunpack.c.h.b16 %v3366
      %v3465 = vunpack.c.l.b16 %v3367
      %v3466 = vunpack.c.h.b16 %v3367
      %v3467 = vunpack.c.l.b16 %v3368
      %v3468 = vunpack.c.h.b16 %v3368
      %v3469 = vunpack.c.l.b16 %v3369
      %v3470 = vunpack.c.h.b16 %v3369
      %v3471 = vunpack.c.l.b16 %v3370
      %v3472 = vunpack.c.h.b16 %v3370
      %v3473 = vunpack.c.l.b16 %v3371
      %v3474 = vunpack.c.h.b16 %v3371
      %v3475 = vunpack.c.l.b16 %v3372
      %v3476 = vunpack.c.h.b16 %v3372
      %v3477 = vunpack.c.l.b16 %v3373
      %v3478 = vunpack.c.h.b16 %v3373
      %v3479 = vunpack.c.l.b16 %v3374
      %v3480 = vunpack.c.h.b16 %v3374
      %v3481 = vunpack.c.l.b16 %v3375
      %v3482 = vunpack.c.h.b16 %v3375
      %v3483 = vunpack.c.l.b16 %v3376
      %v3484 = vunpack.c.h.b16 %v3376
      %v3485 = vunpack.c.l.b16 %v3377
      %v3486 = vunpack.c.h.b16 %v3377
      %v3487 = vunpack.c.l.b16 %v3378
      %v3488 = vunpack.c.h.b16 %v3378
      %v3489 = vpack.c.b16 %v3427, %v3425
      %v3490 = vpack.c.b16 %v3428, %v3426
      %v3491 = vpack.c.b16 %v3431, %v3429
      %v3492 = vpack.c.b16 %v3432, %v3430
      %v3493 = vpack.c.b16 %v3435, %v3433
      %v3494 = vpack.c.b16 %v3436, %v3434
      %v3495 = vpack.c.b16 %v3439, %v3437
      %v3496 = vpack.c.b16 %v3440, %v3438
      %v3497 = vpack.c.b16 %v3443, %v3441
      %v3498 = vpack.c.b16 %v3444, %v3442
      %v3499 = vpack.c.b16 %v3447, %v3445
      %v3500 = vpack.c.b16 %v3448, %v3446
      %v3501 = vpack.c.b16 %v3451, %v3449
      %v3502 = vpack.c.b16 %v3452, %v3450
      %v3503 = vpack.c.b16 %v3455, %v3453
      %v3504 = vpack.c.b16 %v3456, %v3454
      %v3505 = vpack.c.b16 %v3459, %v3457
      %v3506 = vpack.c.b16 %v3460, %v3458
      %v3507 = vpack.c.b16 %v3463, %v3461
      %v3508 = vpack.c.b16 %v3464, %v3462
      %v3509 = vpack.c.b16 %v3467, %v3465
      %v3510 = vpack.c.b16 %v3468, %v3466
      %v3511 = vpack.c.b16 %v3471, %v3469
      %v3512 = vpack.c.b16 %v3472, %v3470
      %v3513 = vpack.c.b16 %v3475, %v3473
      %v3514 = vpack.c.b16 %v3476, %v3474
      %v3515 = vpack.c.b16 %v3479, %v3477
      %v3516 = vpack.c.b16 %v3480, %v3478
      %v3517 = vpack.c.b16 %v3483, %v3481
      %v3518 = vpack.c.b16 %v3484, %v3482
      %v3519 = vpack.c.b16 %v3487, %v3485
      %v3520 = vpack.c.b16 %v3488, %v3486
      %3553 = vmatprep.subr.bf16.mxu0 %v3490
      %3554 = vmatpush1.bf16.msra.mxu0 %v3489
      %3555 = vmatprep.subr.bf16.mxu0 %v3492
      %3556 = vmatpush1.bf16.msra.mxu0 %v3491
      %3557 = vmatprep.subr.bf16.mxu0 %v3494
      %3558 = vmatpush1.bf16.msra.mxu0 %v3493
      %3559 = vmatprep.subr.bf16.mxu0 %v3496
      %3560 = vmatpush1.bf16.msra.mxu0 %v3495
      %3561 = vmatprep.subr.bf16.mxu0 %v3498
      %3562 = vmatpush1.bf16.msra.mxu0 %v3497
      %3563 = vmatprep.subr.bf16.mxu0 %v3500
      %3564 = vmatpush1.bf16.msra.mxu0 %v3499
      %3565 = vmatprep.subr.bf16.mxu0 %v3502
      %3566 = vmatpush1.bf16.msra.mxu0 %v3501
      %3567 = vmatprep.subr.bf16.mxu0 %v3504
      %3568 = vmatpush1.bf16.msra.mxu0 %v3503
      %3569 = vmatprep.subr.bf16.mxu0 %v3506
      %3570 = vmatpush1.bf16.msra.mxu0 %v3505
      %3571 = vmatprep.subr.bf16.mxu0 %v3508
      %3572 = vmatpush1.bf16.msra.mxu0 %v3507
      %3573 = vmatprep.subr.bf16.mxu0 %v3510
      %3574 = vmatpush1.bf16.msra.mxu0 %v3509
      %3575 = vmatprep.subr.bf16.mxu0 %v3512
      %3576 = vmatpush1.bf16.msra.mxu0 %v3511
      %3577 = vmatprep.subr.bf16.mxu0 %v3514
      %3578 = vmatpush1.bf16.msra.mxu0 %v3513
      %3579 = vmatprep.subr.bf16.mxu0 %v3516
      %3580 = vmatpush1.bf16.msra.mxu0 %v3515
      %3581 = vmatprep.subr.bf16.mxu0 %v3518
      %3582 = vmatpush1.bf16.msra.mxu0 %v3517
      %3583 = vmatprep.subr.bf16.mxu0 %v3520
      %3584 = vmatpush1.bf16.msra.mxu0 %v3519
      %3585 = vmatprep.mubr.bf16.mxu0 %v3380
      %3586 = vmatmul.mubr.bf16.gmra.mrb[0].mxu0 %v3379
      %v3587 = vpop.f32.mrb[0].mxu0
      %v3588 = vadd.f32 %v3386, %v3587
      %v3589 = vpop.f32.mrb[0].mxu0
      %v3590 = vadd.f32 %v3390, %v3589
      %v3591 = vpop.f32.mrb[0].mxu0
      %v3592 = vadd.f32 %v3386, %v3591
      %v3593 = vpop.f32.mrb[0].mxu0
      %v3594 = vadd.f32 %v3390, %v3593
      %3595 = vdwg.mxu0
      %v3596 = vadd.f32 %v3588, %v3592
      %v3597 = vrot.slane %v3596, 4
      %v3598 = vadd.f32 %v3596, %v3597
      %v3599 = vrot.slane %v3598, 2
      %v3600 = vadd.f32 %v3598, %v3599
      %v3601 = vrot.slane %v3600, 1
      %v3602 = vadd.f32 %v3600, %v3601
      %v3603 = vadd.f32 %v3590, %v3594
      %v3604 = vrot.slane %v3603, 4
      %v3605 = vadd.f32 %v3603, %v3604
      %v3606 = vrot.slane %v3605, 2
      %v3607 = vadd.f32 %v3605, %v3606
      %v3608 = vrot.slane %v3607, 1
      %v3609 = vadd.f32 %v3607, %v3608
      %v3610 = vmul.f32 %v3602, %v2975
      %v3611 = vmul.f32 %v3609, %v2975
      %v3612 = vsub.f32 %v3588, %v3610
      %v3613 = vsub.f32 %v3590, %v3611
      %v3614 = vsub.f32 %v3592, %v3610
      %v3615 = vsub.f32 %v3594, %v3611
      %v3616 = vmul.f32 %v3612, %v3612
      %v3617 = vmul.f32 %v3613, %v3613
      %v3618 = vmul.f32 %v3614, %v3614
      %v3619 = vmul.f32 %v3615, %v3615
      %v3620 = vadd.f32 %v3616, %v3618
      %v3621 = vrot.slane %v3620, 4
      %v3622 = vadd.f32 %v3620, %v3621
      %v3623 = vrot.slane %v3622, 2
      %v3624 = vadd.f32 %v3622, %v3623
      %v3625 = vrot.slane %v3624, 1
      %v3626 = vadd.f32 %v3624, %v3625
      %v3627 = vadd.f32 %v3617, %v3619
      %v3628 = vrot.slane %v3627, 4
      %v3629 = vadd.f32 %v3627, %v3628
      %v3630 = vrot.slane %v3629, 2
      %v3631 = vadd.f32 %v3629, %v3630
      %v3632 = vrot.slane %v3631, 1
      %v3633 = vadd.f32 %v3631, %v3632
      %v3634 = vmul.f32 %v3626, %v2975
      %v3635 = vmul.f32 %v3633, %v2975
      %v3636 = vadd.f32 %v3634, 1e-05
      %v3637 = vadd.f32 %v3635, 1e-05
      %v3638 = vrsqrt.pop %v3636
      %v3639 = vrsqrt.pop %v3637
      %v3640 = vmul.f32 %v3612, %v3638
      %v3641 = vmul.f32 %v3613, %v3639
      %v3642 = vmul.f32 %v3614, %v3638
      %v3643 = vmul.f32 %v3615, %v3639
      %v3644 = vmul.f32 %v3640, 0.5
      %v3645 = vmul.f32 %v3641, 0.5
      %v3646 = vmul.f32 %v3642, 0.5
      %v3647 = vmul.f32 %v3643, 0.5
      %v3648 = vmul.f32 %v3640, 0.70710677
      %v3649 = vmul.f32 %v3641, 0.70710677
      %v3650 = vmul.f32 %v3642, 0.70710677
      %v3651 = vmul.f32 %v3643, 0.70710677
      %v3652 = verf.f32.pop %v3648
      %v3653 = verf.f32.pop %v3649
      %v3654 = verf.f32.pop %v3650
      %v3655 = verf.f32.pop %v3651
      %v3656 = vadd.f32 %v3652, 1.0
      %v3657 = vadd.f32 %v3653, 1.0
      %v3658 = vadd.f32 %v3654, 1.0
      %v3659 = vadd.f32 %v3655, 1.0
      %v3660 = vmul.f32 %v3644, %v3656
      %v3661 = vmul.f32 %v3645, %v3657
      %v3662 = vmul.f32 %v3646, %v3658
      %v3663 = vmul.f32 %v3647, %v3659
      %v3664 = vld [vmem:[#allocation8] sm:$0xf]
      %v3665 = vld [vmem:[#allocation8 + $0x4] sm:$0xf]
      %v3666 = vld [vmem:[#allocation8 + $0x8] sm:$0xf]
      %v3667 = vld [vmem:[#allocation8 + $0xc] sm:$0xf]
      %v3668 = vld [vmem:[#allocation8 + $0x10] sm:$0xf]
      %v3669 = vld [vmem:[#allocation8 + $0x14] sm:$0xf]
      %v3670 = vld [vmem:[#allocation8 + $0x18] sm:$0xf]
      %v3671 = vld [vmem:[#allocation8 + $0x1c] sm:$0xf]
      %v3672 = vld [vmem:[#allocation8 + $0x20] sm:$0xf]
      %v3673 = vld [vmem:[#allocation8 + $0x24] sm:$0xf]
      %v3674 = vld [vmem:[#allocation8 + $0x28] sm:$0xf]
      %v3675 = vld [vmem:[#allocation8 + $0x2c] sm:$0xf]
      %v3676 = vld [vmem:[#allocation8 + $0x30] sm:$0xf]
      %v3677 = vld [vmem:[#allocation8 + $0x34] sm:$0xf]
      %v3678 = vld [vmem:[#allocation8 + $0x38] sm:$0xf]
      %v3679 = vld [vmem:[#allocation8 + $0x3c] sm:$0xf]
      %v3680 = vld [vmem:[#allocation8 + $0x40] sm:$0xf]
      %v3681 = vld [vmem:[#allocation8 + $0x44] sm:$0xf]
      %v3682 = vld [vmem:[#allocation8 + $0x48] sm:$0xf]
      %v3683 = vld [vmem:[#allocation8 + $0x4c] sm:$0xf]
      %v3684 = vld [vmem:[#allocation8 + $0x50] sm:$0xf]
      %v3685 = vld [vmem:[#allocation8 + $0x54] sm:$0xf]
      %v3686 = vld [vmem:[#allocation8 + $0x58] sm:$0xf]
      %v3687 = vld [vmem:[#allocation8 + $0x5c] sm:$0xf]
      %v3688 = vld [vmem:[#allocation8 + $0x60] sm:$0xf]
      %v3689 = vld [vmem:[#allocation8 + $0x64] sm:$0xf]
      %v3690 = vld [vmem:[#allocation8 + $0x68] sm:$0xf]
      %v3691 = vld [vmem:[#allocation8 + $0x6c] sm:$0xf]
      %v3692 = vld [vmem:[#allocation8 + $0x70] sm:$0xf]
      %v3693 = vld [vmem:[#allocation8 + $0x74] sm:$0xf]
      %v3694 = vld [vmem:[#allocation8 + $0x78] sm:$0xf]
      %v3695 = vld [vmem:[#allocation8 + $0x7c] sm:$0xf]
      %v3696 = vpack.c.bf16 %v3662, %v3660
      %v3697 = vpack.c.bf16 %v3663, %v3661
      %v3730 = vunpack.c.l.b16 %v3664
      %v3731 = vunpack.c.l.b16 %v3665
      %v3732 = vunpack.c.l.b16 %v3666
      %v3733 = vunpack.c.l.b16 %v3667
      %v3734 = vunpack.c.l.b16 %v3668
      %v3735 = vunpack.c.l.b16 %v3669
      %v3736 = vunpack.c.l.b16 %v3670
      %v3737 = vunpack.c.l.b16 %v3671
      %v3738 = vunpack.c.l.b16 %v3672
      %v3739 = vunpack.c.l.b16 %v3673
      %v3740 = vunpack.c.l.b16 %v3674
      %v3741 = vunpack.c.l.b16 %v3675
      %v3742 = vunpack.c.l.b16 %v3676
      %v3743 = vunpack.c.l.b16 %v3677
      %v3744 = vunpack.c.l.b16 %v3678
      %v3745 = vunpack.c.l.b16 %v3679
      %v3746 = vunpack.c.l.b16 %v3680
      %v3747 = vunpack.c.l.b16 %v3681
      %v3748 = vunpack.c.l.b16 %v3682
      %v3749 = vunpack.c.l.b16 %v3683
      %v3750 = vunpack.c.l.b16 %v3684
      %v3751 = vunpack.c.l.b16 %v3685
      %v3752 = vunpack.c.l.b16 %v3686
      %v3753 = vunpack.c.l.b16 %v3687
      %v3754 = vunpack.c.l.b16 %v3688
      %v3755 = vunpack.c.l.b16 %v3689
      %v3756 = vunpack.c.l.b16 %v3690
      %v3757 = vunpack.c.l.b16 %v3691
      %v3758 = vunpack.c.l.b16 %v3692
      %v3759 = vunpack.c.l.b16 %v3693
      %v3760 = vunpack.c.l.b16 %v3694
      %v3761 = vunpack.c.l.b16 %v3695
      %v3762 = vpack.c.b16 %v3731, %v3730
      %v3763 = vpack.c.b16 %v3733, %v3732
      %v3764 = vpack.c.b16 %v3735, %v3734
      %v3765 = vpack.c.b16 %v3737, %v3736
      %v3766 = vpack.c.b16 %v3739, %v3738
      %v3767 = vpack.c.b16 %v3741, %v3740
      %v3768 = vpack.c.b16 %v3743, %v3742
      %v3769 = vpack.c.b16 %v3745, %v3744
      %v3770 = vpack.c.b16 %v3747, %v3746
      %v3771 = vpack.c.b16 %v3749, %v3748
      %v3772 = vpack.c.b16 %v3751, %v3750
      %v3773 = vpack.c.b16 %v3753, %v3752
      %v3774 = vpack.c.b16 %v3755, %v3754
      %v3775 = vpack.c.b16 %v3757, %v3756
      %v3776 = vpack.c.b16 %v3759, %v3758
      %v3777 = vpack.c.b16 %v3761, %v3760
      %3794 = vmatprep.subr.bf16.mxu0 0
      %3795 = vmatpush1.bf16.msra.mxu0 %v3762
      %3796 = vmatprep.subr.bf16.mxu0 0
      %3797 = vmatpush1.bf16.msra.mxu0 %v3763
      %3798 = vmatprep.subr.bf16.mxu0 0
      %3799 = vmatpush1.bf16.msra.mxu0 %v3764
      %3800 = vmatprep.subr.bf16.mxu0 0
      %3801 = vmatpush1.bf16.msra.mxu0 %v3765
      %3802 = vmatprep.subr.bf16.mxu0 0
      %3803 = vmatpush1.bf16.msra.mxu0 %v3766
      %3804 = vmatprep.subr.bf16.mxu0 0
      %3805 = vmatpush1.bf16.msra.mxu0 %v3767
      %3806 = vmatprep.subr.bf16.mxu0 0
      %3807 = vmatpush1.bf16.msra.mxu0 %v3768
      %3808 = vmatprep.subr.bf16.mxu0 0
      %3809 = vmatpush1.bf16.msra.mxu0 %v3769
      %3810 = vmatprep.subr.bf16.mxu0 0
      %3811 = vmatpush1.bf16.msra.mxu0 %v3770
      %3812 = vmatprep.subr.bf16.mxu0 0
      %3813 = vmatpush1.bf16.msra.mxu0 %v3771
      %3814 = vmatprep.subr.bf16.mxu0 0
      %3815 = vmatpush1.bf16.msra.mxu0 %v3772
      %3816 = vmatprep.subr.bf16.mxu0 0
      %3817 = vmatpush1.bf16.msra.mxu0 %v3773
      %3818 = vmatprep.subr.bf16.mxu0 0
      %3819 = vmatpush1.bf16.msra.mxu0 %v3774
      %3820 = vmatprep.subr.bf16.mxu0 0
      %3821 = vmatpush1.bf16.msra.mxu0 %v3775
      %3822 = vmatprep.subr.bf16.mxu0 0
      %3823 = vmatpush1.bf16.msra.mxu0 %v3776
      %3824 = vmatprep.subr.bf16.mxu0 0
      %3825 = vmatpush1.bf16.msra.mxu0 %v3777
      %3826 = vmatprep.mubr.bf16.mxu0 %v3697
      %3827 = vmatmul.mubr.bf16.gmra.mrb[0].mxu0 %v3696
      %v3828 = vpop.f32.mrb[0].mxu0
      %v3829 = vadd.f32 0.0, %v3828
      %v3830 = vpop.f32.mrb[0].mxu0
      %v3831 = vpop.f32.mrb[0].mxu0
      %v3832 = vadd.f32 0.0, %v3831
      %v3833 = vpop.f32.mrb[0].mxu0
      %3834 = vdwg.mxu0
      %v3835 = vmul.f32 %v3829, %v3829
      %v3836 = vmul.f32 %v3832, %v3832
      %3837 = vadd.xlane.f32.xlu0 %v3835
      %v3838 = vpop.xlane.xlu0 %3837
      %3839 = vadd.xlane.f32.xlu0 %v3836
      %v3840 = vpop.xlane.xlu0 %3839
      %v3841 = vmax.f32 %v3838, 1e-24
      %v3842 = vmax.f32 %v3840, 1e-24
      %v3843 = vrsqrt.pop %v3841
      %v3844 = vrsqrt.pop %v3842
      %v3845 = vmul.f32 %v3829, %v3843
      %v3846 = vmul.f32 %v3832, %v3844
      %v3847 = vpack.c.bf16 %v3846, %v3845
      %3848 = vmatprep.subr.bf16.mxu0 0
      %3849 = vmatpush1.bf16.xpose.msra.mxu0 %v2238
      %3850 = vmatprep.subr.bf16.mxu0 0
      %3851 = vmatpush1.bf16.xpose.msra.mxu0 %v2239
      %3852 = vmatprep.subr.bf16.mxu0 0
      %3853 = vmatpush1.bf16.xpose.msra.mxu0 %v2240
      %3854 = vmatprep.subr.bf16.mxu0 0
      %3855 = vmatpush1.bf16.xpose.msra.mxu0 %v2241
      %3856 = vmatprep.subr.bf16.mxu0 0
      %3857 = vmatpush1.bf16.xpose.msra.mxu0 %v2242
      %3858 = vmatprep.subr.bf16.mxu0 0
      %3859 = vmatpush1.bf16.xpose.msra.mxu0 %v2243
      %3860 = vmatprep.subr.bf16.mxu0 0
      %3861 = vmatpush1.bf16.xpose.msra.mxu0 %v2244
      %3862 = vmatprep.subr.bf16.mxu0 0
      %3863 = vmatpush1.bf16.xpose.msra.mxu0 %v2245
      %3864 = vmatprep.subr.bf16.mxu0 0
      %3865 = vmatpush1.bf16.xpose.msra.mxu0 %v2246
      %3866 = vmatprep.subr.bf16.mxu0 0
      %3867 = vmatpush1.bf16.xpose.msra.mxu0 %v2247
      %3868 = vmatprep.subr.bf16.mxu0 0
      %3869 = vmatpush1.bf16.xpose.msra.mxu0 %v2248
      %3870 = vmatprep.subr.bf16.mxu0 0
      %3871 = vmatpush1.bf16.xpose.msra.mxu0 %v2249
      %3872 = vmatprep.subr.bf16.mxu0 0
      %3873 = vmatpush1.bf16.xpose.msra.mxu0 %v2250
      %3874 = vmatprep.subr.bf16.mxu0 0
      %3875 = vmatpush1.bf16.xpose.msra.mxu0 %v2251
      %3876 = vmatprep.subr.bf16.mxu0 0
      %3877 = vmatpush1.bf16.xpose.msra.mxu0 %v2252
      %3878 = vmatprep.subr.bf16.mxu0 0
      %3879 = vmatpush1.bf16.xpose.msra.mxu0 %v2253
      %3880 = vmatprep.mubr.bf16.mxu0 0
      %3881 = vmatmul.mubr.bf16.gmra.mrb[0].mxu0 %v3847
      %v3882 = vpop.f32.mrb[0].mxu0
      %v3883 = vadd.f32 0.0, %v3882
      %v3884 = vpop.f32.mrb[0].mxu0
      %v3885 = vadd.f32 0.0, %v3884
      %v3886 = vpop.f32.mrb[0].mxu0
      %v3887 = vadd.f32 0.0, %v3886
      %v3888 = vpop.f32.mrb[0].mxu0
      %v3889 = vadd.f32 0.0, %v3888
      %3890 = vdwg.mxu0
      %v3891 = vmul.f32 %v3883, 10.0
      %v3892 = vmul.f32 %v3885, 10.0
      %v3893 = vmul.f32 %v3887, 10.0
      %v3894 = vmul.f32 %v3889, 10.0
      %3895 = vst [vmem:[#allocation9] sm:$0xff] %v3891
      %3896 = vst [vmem:[#allocation9 + $0x8] sm:$0xff] %v3892
      %3897 = vst [vmem:[#allocation9 + $0x10] sm:$0xff] %v3893
      %3898 = vst [vmem:[#allocation9 + $0x18] sm:$0xff] %v3894
    $region65: #{trex_forward.1} parent=1 // pred_fallthru
      _
    // Predicated region
    $region66: #{trex_forward.1} parent=1 // pred_check
      _
    $region67: #{trex_forward.1} parent=1 // pred_check_branch
      %3900 = sbr.rel (0) target = $region69
    $region68: #{trex_forward.1} parent=1 // pred_region
      %s3902 = ssub.s32 512, 512
      %3903 = vsyncadd [#allocation5], %s3902
      %s3904 = sshll.u32 [#allocation9], 4
      %s3905 = int_to_ptr.vmem [resolvable:$true] %s3904
      %3910 = dma.vmem_to_hbm [thread:$0]  %s3905, 512, %s11, [#allocation5], 256, 256, 16
    $region69: #{trex_forward.1} parent=1 // pred_fallthru
      _
    // Predicated region
    $region70: #{trex_forward.1} parent=1 // pred_check
      _
    $region71: #{trex_forward.1} parent=1 // pred_check_branch
      %3912 = sbr.rel (0) target = $region73
    $region72: #{trex_forward.1} parent=1 // pred_region
      %3913 = dma.done [#allocation5], 512
    $region73: #{trex_forward.1} parent=1 // pred_fallthru
      _
    %3914 = vsyncpa [#allocation4], 1
    %3915 = vsyncpa [#allocation7], 1
    %3916 = vsyncpa [#allocation5], 1

</llo_original>
